<compile_context>
chip_gen: v6e
topology: v6e:2x2x1
jax: 0.10.0
libtpu: 0.0.40
codegen_flags: <defaults>
</compile_context>

<pallas_src>
import numpy as np
import jax
import jax.numpy as jnp
from jax.experimental import pallas as pl
from jax.experimental.pallas import tpu as pltpu


def _make_encoder_kernel(nhead, d_model, dim_ffd, B, S, eps=1e-5):
    H, D, F = nhead, d_model, dim_ffd
    dh = D // H
    M = S * B
    scale = 1.0 / float(np.sqrt(dh))

    def layernorm(t, g, b):
        mu = jnp.mean(t, axis=-1, keepdims=True)
        var = jnp.mean((t - mu) ** 2, axis=-1, keepdims=True)
        return (t - mu) * jax.lax.rsqrt(var + eps) * g + b

    def kernel(x_ref, pe_ref, wqkv_ref, wo_ref, w1_ref, w2_ref, bias_ref,
               o1_ref, o2_ref):
        # ---- unpack the packed (8, W) bias/gain slab (static, lane-0-based slices) ----
        bias = bias_ref[...]
        b_qkv = bias[0:1, :3 * D]
        bo    = bias[1:2, :D]
        b1    = bias[2:3, :F]
        b2    = bias[3:4, :D]
        g1    = bias[4:5, :D]
        be1   = bias[5:6, :D]
        g2    = bias[6:7, :D]
        be2   = bias[7:8, :D]

        wqkv = wqkv_ref[...]      # (D, 3D) fused in-projection (transposed)
        wo   = wo_ref[...]        # (D, D)  out-projection (transposed)
        w1   = w1_ref[...]        # (D, F)
        w2   = w2_ref[...]        # (F, D)

        # ---- block-diagonal additive mask, generated in-kernel (zero HBM traffic).
        # Rows are the folded (seq, batch) axis with batch minor => batch id = idx % B.
        ri = jax.lax.broadcasted_iota(jnp.int32, (M, M), 0)
        ci = jax.lax.broadcasted_iota(jnp.int32, (M, M), 1)
        mask = jnp.where((ri % B) == (ci % B), 0.0, -1e30)

        def layer(x):  # x: (M, D) f32
            # Fused QKV projection: single dense (M, D) @ (D, 3D) MXU matmul.
            qkv = jnp.dot(x, wqkv, preferred_element_type=jnp.float32) + b_qkv

            # Per-head attention. These are static lane slices of the already-computed
            # qkv slab (not per-head projections); the score matmuls are inherently
            # per-head regardless of formulation.
            ctx_heads = []
            for h in range(H):
                q_h = qkv[:, h * dh:(h + 1) * dh]
                k_h = qkv[:, D + h * dh:D + (h + 1) * dh]
                v_h = qkv[:, 2 * D + h * dh:2 * D + (h + 1) * dh]
                s = jnp.einsum('qe,ke->qk', q_h, k_h,
                               preferred_element_type=jnp.float32) * scale
                s = s + mask                                   # batch block-diagonal
                s = s - jnp.max(s, axis=-1, keepdims=True)
                p = jnp.exp(s)
                p = p / jnp.sum(p, axis=-1, keepdims=True)     # exact f32 divide
                ctx_heads.append(jnp.dot(p, v_h, preferred_element_type=jnp.float32))
            ctx = jnp.concatenate(ctx_heads, axis=-1)          # (M, D), head-major

            # Head recombination + output projection as ONE (M, D) @ (D, D) matmul.
            attn = jnp.dot(ctx, wo, preferred_element_type=jnp.float32) + bo

            # Residual + post-LayerNorm 1 (PyTorch default norm_first=False, eps=1e-5).
            y = layernorm(x + attn, g1, be1)

            # Feed-forward (ReLU), batch folded into the matmul M dimension.
            h1 = jnp.maximum(jnp.dot(y, w1, preferred_element_type=jnp.float32) + b1, 0.0)
            h2 = jnp.dot(h1, w2, preferred_element_type=jnp.float32) + b2

            # Residual + post-LayerNorm 2.
            return layernorm(y + h2, g2, be2)

        # Layer 1: add positional encoding (broadcast over batch), fold (S,B,D) -> (M,D).
        x0 = (x_ref[...] + pe_ref[...]).reshape(M, D)
        y1 = layer(x0)
        o1_ref[...] = y1.astype(o1_ref.dtype)                  # dense 2-D (M, D) store
        # Layer 2 consumes y1 straight from VMEM/vregs (no PE, no HBM round trip,
        # same weights already resident).
        o2_ref[...] = layer(y1).astype(o2_ref.dtype)

    return kernel


def encoder_pallas(x_sbd, pe_s1d, kp, nhead):
    """Both TransformerEncoder layers in one pallas_call.

    x_sbd: (S, B, D) activations in PyTorch seq-major layout (kept end-to-end).
    Returns two (S, B, D) arrays.
    """
    S, B, D = x_sbd.shape
    F = kp["w1_t"].shape[1]
    M = S * B
    kernel = _make_encoder_kernel(nhead, D, F, B, S)

    args = (x_sbd, pe_s1d, kp["wqkv_t"], kp["wo_t"], kp["w1_t"], kp["w2_t"], kp["bias"])
    vmem = lambda: pl.BlockSpec(memory_space=pltpu.MemorySpace.VMEM)

    out1, out2 = pl.pallas_call(
        kernel,
        out_shape=(jax.ShapeDtypeStruct((M, D), jnp.float32),
                   jax.ShapeDtypeStruct((M, D), jnp.float32)),
        in_specs=[vmem() for _ in args],
        out_specs=(vmem(), vmem()),
    )(*args)
    # Contiguous reshape back to (S, B, D): free, no transpose / HBM copy.
    return out1.reshape(S, B, D), out2.reshape(S, B, D)


def encoder_forward(src_tokens, params, nhead):
    """Mirrors Encoder.forward. src_tokens: (S, B) int32 ids -> two (S, B, D) outputs."""
    # TODO(synk): token-embedding gather is data-dependent; kept in plain JAX glue
    # (a scalar-prefetch DMA-gather kernel is possible but not worthwhile here).
    emb = params["embedding"][src_tokens]          # (S, B, D) — already PyTorch layout
    S = emb.shape[0]
    pe = params["pe"][:S][:, None, :]              # (S, 1, D)
    return encoder_pallas(emb, pe, params["kernel"], nhead)


def init_params(key, vocab, d_model, nhead, dim_ffd, max_len=5000):
    ks = jax.random.split(key, 9)

    def xavier(k, shape):
        lim = np.sqrt(6.0 / (shape[0] + shape[1]))
        return jax.random.uniform(k, shape, jnp.float32, -lim, lim)

    def bias(k, n):
        return jax.random.uniform(k, (n,), jnp.float32, -0.1, 0.1)

    embedding = jax.random.normal(ks[0], (vocab, d_model), jnp.float32)  # nn.Embedding ~ N(0,1)

    wqkv = xavier(ks[1], (3 * d_model, d_model))   # PyTorch in_proj_weight layout (3D, D)
    wo   = xavier(ks[2], (d_model, d_model))       # out_proj.weight
    w1   = xavier(ks[3], (dim_ffd, d_model))       # linear1.weight
    w2   = xavier(ks[4], (d_model, dim_ffd))       # linear2.weight
    bqkv = bias(ks[5], 3 * d_model)
    bo   = bias(ks[6], d_model)
    b1   = bias(ks[7], dim_ffd)
    b2   = bias(ks[8], d_model)
    g1  = jnp.ones((d_model,), jnp.float32); be1 = jnp.zeros((d_model,), jnp.float32)
    g2  = jnp.ones((d_model,), jnp.float32); be2 = jnp.zeros((d_model,), jnp.float32)

    # Flat (transposed) weights used by the pure-JAX reference.
    ref = dict(wqkv_t=wqkv.T, bqkv=bqkv[None], wo_t=wo.T, bo=bo[None],
               g1=g1[None], be1=be1[None], w1_t=w1.T, b1=b1[None],
               w2_t=w2.T, b2=b2[None], g2=g2[None], be2=be2[None])

    # Kernel slabs: 4 weight matrices + one packed (8, W) bias/gain slab
    # (rows: bqkv | bo | b1 | b2 | g1 | be1 | g2 | be2; all slices start at lane 0).
    W = max(3 * d_model, dim_ffd, d_model)
    slab = jnp.zeros((8, W), jnp.float32)
    slab = slab.at[0, :3 * d_model].set(bqkv)
    slab = slab.at[1, :d_model].set(bo)
    slab = slab.at[2, :dim_ffd].set(b1)
    slab = slab.at[3, :d_model].set(b2)
    slab = slab.at[4, :d_model].set(g1)
    slab = slab.at[5, :d_model].set(be1)
    slab = slab.at[6, :d_model].set(g2)
    slab = slab.at[7, :d_model].set(be2)
    kernel_p = dict(wqkv_t=wqkv.T, wo_t=wo.T, w1_t=w1.T, w2_t=w2.T, bias=slab)

    # Sinusoidal positional-encoding table (same formula as PositionalEncoding).
    pos = np.arange(max_len, dtype=np.float32)[:, None]
    div = np.exp(np.arange(0, d_model, 2, dtype=np.float32) * (-np.log(10000.0) / d_model))
    pe = np.zeros((max_len, d_model), dtype=np.float32)
    pe[:, 0::2] = np.sin(pos * div)
    pe[:, 1::2] = np.cos(pos * div)

    return dict(embedding=embedding, pe=jnp.asarray(pe), ref=ref, kernel=kernel_p)


# ------------------ pure-JAX reference (for correctness check) ------------------
def _ref_layer(x, pe, p, nhead):
    """Post-norm TransformerEncoderLayer reference. x: (B, S, D); pe: (S, D)."""
    D = x.shape[-1]
    x = x + pe[None]
    qkv = x @ p["wqkv_t"] + p["bqkv"]
    q, k, v = qkv[..., :D], qkv[..., D:2 * D], qkv[..., 2 * D:]
    B, S, _ = x.shape
    dh = D // nhead

    def split(t):
        return t.reshape(B, S, nhead, dh).transpose(0, 2, 1, 3)

    qh, kh, vh = split(q), split(k), split(v)
    s = jnp.einsum("bhqd,bhkd->bhqk", qh, kh) / np.sqrt(dh)
    att = jax.nn.softmax(s, axis=-1)
    o = jnp.einsum("bhqk,bhkd->bhqd", att, vh).transpose(0, 2, 1, 3).reshape(B, S, D)
    o = o @ p["wo_t"] + p["bo"]

    def ln(t, g, b):
        mu = t.mean(-1, keepdims=True)
        var = ((t - mu) ** 2).mean(-1, keepdims=True)
        return (t - mu) * jax.lax.rsqrt(var + 1e-5) * g + b

    y = ln(x + o, p["g1"], p["be1"])
    h = jnp.maximum(y @ p["w1_t"] + p["b1"], 0.0)
    h = h @ p["w2_t"] + p["b2"]
    return ln(y + h, p["g2"], p["be2"])


if __name__ == "__main__":
    S, B = 8, 2
    vocab, d_model, nhead, dim_ffd = 50, 32, 4, 64

    key = jax.random.PRNGKey(0)
    k_tok, k_par = jax.random.split(key)
    src = jax.random.randint(k_tok, (S, B), 0, vocab, dtype=jnp.int32)   # (seq, batch) ids
    params = init_params(k_par, vocab, d_model, nhead, dim_ffd)

    out1, out2 = encoder_forward(src, params, nhead)
    jax.block_until_ready((out1, out2))

    # Verify against a pure-JAX reference. Softmax is an exact f32 divide now, so the
    # tolerance is tight (only matmul-order f32 rounding differences remain).
    emb = params["embedding"][src]                   # (S, B, D)
    xb = jnp.transpose(emb, (1, 0, 2))               # reference is batch-first
    pe = params["pe"][:S]
    r1 = _ref_layer(xb, pe, params["ref"], nhead)
    r2 = _ref_layer(r1, jnp.zeros_like(pe), params["ref"], nhead)
    np.testing.assert_allclose(np.asarray(out1),
                               np.asarray(jnp.transpose(r1, (1, 0, 2))),
                               rtol=1e-4, atol=1e-5)
    np.testing.assert_allclose(np.asarray(out2),
                               np.asarray(jnp.transpose(r2, (1, 0, 2))),
                               rtol=1e-4, atol=1e-5)

    print("KERNEL_OK")
</pallas_src>

<mosaic_0001>
module attributes {stable_mosaic.version = 11 : i64} {
  func.func @kernel(%arg0: memref<8x2x32xf32, #tpu.memory_space<vmem>>, %arg1: memref<8x1x32xf32, #tpu.memory_space<vmem>>, %arg2: memref<32x96xf32, #tpu.memory_space<vmem>>, %arg3: memref<32x32xf32, #tpu.memory_space<vmem>>, %arg4: memref<32x64xf32, #tpu.memory_space<vmem>>, %arg5: memref<64x32xf32, #tpu.memory_space<vmem>>, %arg6: memref<8x96xf32, #tpu.memory_space<vmem>>, %arg7: memref<16x32xf32, #tpu.memory_space<vmem>>, %arg8: memref<16x32xf32, #tpu.memory_space<vmem>>) attributes {dimension_semantics = [], scalar_prefetch = 0 : i64, scratch_operands = 0 : i64, tpu.core_type = #tpu.core_type<tc>} {
    %c0 = arith.constant 0 : index
    %c0_0 = arith.constant 0 : index
    %0 = vector.load %arg6[%c0, %c0_0] : memref<8x96xf32, #tpu.memory_space<vmem>>, vector<8x96xf32>
    %1 = vector.extract_strided_slice %0 {offsets = [0, 0], sizes = [1, 96], strides = [1, 1]} : vector<8x96xf32> to vector<1x96xf32>
    %2 = vector.extract_strided_slice %0 {offsets = [1, 0], sizes = [1, 32], strides = [1, 1]} : vector<8x96xf32> to vector<1x32xf32>
    %3 = vector.extract_strided_slice %0 {offsets = [2, 0], sizes = [1, 64], strides = [1, 1]} : vector<8x96xf32> to vector<1x64xf32>
    %4 = vector.extract_strided_slice %0 {offsets = [3, 0], sizes = [1, 32], strides = [1, 1]} : vector<8x96xf32> to vector<1x32xf32>
    %5 = vector.extract_strided_slice %0 {offsets = [4, 0], sizes = [1, 32], strides = [1, 1]} : vector<8x96xf32> to vector<1x32xf32>
    %6 = vector.extract_strided_slice %0 {offsets = [5, 0], sizes = [1, 32], strides = [1, 1]} : vector<8x96xf32> to vector<1x32xf32>
    %7 = vector.extract_strided_slice %0 {offsets = [6, 0], sizes = [1, 32], strides = [1, 1]} : vector<8x96xf32> to vector<1x32xf32>
    %8 = vector.extract_strided_slice %0 {offsets = [7, 0], sizes = [1, 32], strides = [1, 1]} : vector<8x96xf32> to vector<1x32xf32>
    %c0_1 = arith.constant 0 : index
    %c0_2 = arith.constant 0 : index
    %9 = vector.load %arg2[%c0_1, %c0_2] : memref<32x96xf32, #tpu.memory_space<vmem>>, vector<32x96xf32>
    %c0_3 = arith.constant 0 : index
    %c0_4 = arith.constant 0 : index
    %10 = vector.load %arg3[%c0_3, %c0_4] : memref<32x32xf32, #tpu.memory_space<vmem>>, vector<32x32xf32>
    %c0_5 = arith.constant 0 : index
    %c0_6 = arith.constant 0 : index
    %11 = vector.load %arg4[%c0_5, %c0_6] : memref<32x64xf32, #tpu.memory_space<vmem>>, vector<32x64xf32>
    %c0_7 = arith.constant 0 : index
    %c0_8 = arith.constant 0 : index
    %12 = vector.load %arg5[%c0_7, %c0_8] : memref<64x32xf32, #tpu.memory_space<vmem>>, vector<64x32xf32>
    %13 = tpu.iota {dimensions = array<i32: 0>} : vector<16x16xi32>
    %14 = tpu.iota {dimensions = array<i32: 1>} : vector<16x16xi32>
    %c2_i32 = arith.constant 2 : i32
    %c0_i32 = arith.constant 0 : i32
    %15 = arith.cmpi eq, %c2_i32, %c0_i32 : i32
    %c1_i32 = arith.constant 1 : i32
    %16 = arith.select %15, %c1_i32, %c2_i32 : i32
    %17 = vector.broadcast %16 : i32 to vector<16x16xi32>
    %18 = arith.remsi %13, %17 : vector<16x16xi32>
    %c0_i32_9 = arith.constant 0 : i32
    %19 = vector.broadcast %c0_i32_9 : i32 to vector<16x16xi32>
    %20 = arith.cmpi ne, %18, %19 : vector<16x16xi32>
    %c0_i32_10 = arith.constant 0 : i32
    %21 = vector.broadcast %c0_i32_10 : i32 to vector<16x16xi32>
    %22 = arith.cmpi slt, %18, %21 : vector<16x16xi32>
    %c0_i32_11 = arith.constant 0 : i32
    %23 = arith.cmpi slt, %16, %c0_i32_11 : i32
    %24 = vector.broadcast %23 : i1 to vector<16x16xi1>
    %25 = vector.broadcast %24 : vector<16x16xi1> to vector<16x16xi1>
    %26 = arith.xori %22, %25 : vector<16x16xi1>
    %27 = arith.andi %26, %20 : vector<16x16xi1>
    %28 = vector.broadcast %16 : i32 to vector<16x16xi32>
    %29 = arith.addi %18, %28 : vector<16x16xi32>
    %30 = arith.select %27, %29, %18 : vector<16x16xi1>, vector<16x16xi32>
    %c2_i32_12 = arith.constant 2 : i32
    %c0_i32_13 = arith.constant 0 : i32
    %31 = arith.cmpi eq, %c2_i32_12, %c0_i32_13 : i32
    %c1_i32_14 = arith.constant 1 : i32
    %32 = arith.select %31, %c1_i32_14, %c2_i32_12 : i32
    %33 = vector.broadcast %32 : i32 to vector<16x16xi32>
    %34 = arith.remsi %14, %33 : vector<16x16xi32>
    %c0_i32_15 = arith.constant 0 : i32
    %35 = vector.broadcast %c0_i32_15 : i32 to vector<16x16xi32>
    %36 = arith.cmpi ne, %34, %35 : vector<16x16xi32>
    %c0_i32_16 = arith.constant 0 : i32
    %37 = vector.broadcast %c0_i32_16 : i32 to vector<16x16xi32>
    %38 = arith.cmpi slt, %34, %37 : vector<16x16xi32>
    %c0_i32_17 = arith.constant 0 : i32
    %39 = arith.cmpi slt, %32, %c0_i32_17 : i32
    %40 = vector.broadcast %39 : i1 to vector<16x16xi1>
    %41 = vector.broadcast %40 : vector<16x16xi1> to vector<16x16xi1>
    %42 = arith.xori %38, %41 : vector<16x16xi1>
    %43 = arith.andi %42, %36 : vector<16x16xi1>
    %44 = vector.broadcast %32 : i32 to vector<16x16xi32>
    %45 = arith.addi %34, %44 : vector<16x16xi32>
    %46 = arith.select %43, %45, %34 : vector<16x16xi1>, vector<16x16xi32>
    %47 = arith.cmpi eq, %30, %46 : vector<16x16xi32>
    %cst = arith.constant 0.000000e+00 : f32
    %cst_18 = arith.constant -1.000000e+30 : f32
    %48 = vector.broadcast %cst : f32 to vector<16x16xf32>
    %49 = vector.broadcast %cst_18 : f32 to vector<16x16xf32>
    %50 = arith.select %47, %48, %49 : vector<16x16xi1>, vector<16x16xf32>
    %c0_19 = arith.constant 0 : index
    %c0_20 = arith.constant 0 : index
    %c0_21 = arith.constant 0 : index
    %51 = vector.load %arg0[%c0_19, %c0_20, %c0_21] : memref<8x2x32xf32, #tpu.memory_space<vmem>>, vector<8x2x32xf32>
    %c0_22 = arith.constant 0 : index
    %c0_23 = arith.constant 0 : index
    %c0_24 = arith.constant 0 : index
    %52 = vector.load %arg1[%c0_22, %c0_23, %c0_24] : memref<8x1x32xf32, #tpu.memory_space<vmem>>, vector<8x1x32xf32>
    %53 = vector.broadcast %52 : vector<8x1x32xf32> to vector<8x2x32xf32>
    %54 = arith.addf %51, %53 : vector<8x2x32xf32>
    %55 = vector.shape_cast %54 : vector<8x2x32xf32> to vector<16x32xf32>
    %cst_25 = arith.constant dense<0.000000e+00> : vector<16x96xf32>
    %56 = tpu.matmul %55, %9, %cst_25 {dimension_numbers = #tpu.dot_dimension_numbers<[1], [0], [0], [1], [0, 0, 1, 1], [], []>} : vector<16x32xf32>, vector<32x96xf32>, vector<16x96xf32> -> vector<16x96xf32>
    %57 = vector.broadcast %1 : vector<1x96xf32> to vector<16x96xf32>
    %58 = arith.addf %56, %57 : vector<16x96xf32>
    %59 = vector.extract_strided_slice %58 {offsets = [0, 0], sizes = [16, 8], strides = [1, 1]} : vector<16x96xf32> to vector<16x8xf32>
    %60 = vector.extract_strided_slice %58 {offsets = [0, 32], sizes = [16, 8], strides = [1, 1]} : vector<16x96xf32> to vector<16x8xf32>
    %61 = vector.extract_strided_slice %58 {offsets = [0, 64], sizes = [16, 8], strides = [1, 1]} : vector<16x96xf32> to vector<16x8xf32>
    "tpu.trace_start"() <{level = 10 : i32, message = "qe,ke->qk"}> : () -> ()
    %cst_26 = arith.constant dense<0.000000e+00> : vector<16x16xf32>
    %62 = tpu.matmul %59, %60, %cst_26 {dimension_numbers = #tpu.dot_dimension_numbers<[1], [1], [0], [0], [0, 0, 1, 0], [], []>} : vector<16x8xf32>, vector<16x8xf32>, vector<16x16xf32> -> vector<16x16xf32>
    "tpu.trace_stop"() : () -> ()
    %cst_27 = arith.constant 0.353553385 : f32
    %63 = vector.broadcast %cst_27 : f32 to vector<16x16xf32>
    %64 = arith.mulf %62, %63 : vector<16x16xf32>
    %65 = arith.addf %64, %50 : vector<16x16xf32>
    %cst_28 = arith.constant dense<0xFF800000> : vector<16xf32>
    %66 = vector.multi_reduction <maximumf>, %65, %cst_28 [1] : vector<16x16xf32> to vector<16xf32>
    %67 = vector.shape_cast %66 : vector<16xf32> to vector<16x1xf32>
    %68 = vector.broadcast %67 : vector<16x1xf32> to vector<16x16xf32>
    %69 = arith.subf %65, %68 : vector<16x16xf32>
    %70 = math.exp %69 : vector<16x16xf32>
    %cst_29 = arith.constant dense<0.000000e+00> : vector<16xf32>
    %71 = vector.multi_reduction <add>, %70, %cst_29 [1] : vector<16x16xf32> to vector<16xf32>
    %72 = vector.shape_cast %71 : vector<16xf32> to vector<16x1xf32>
    %73 = vector.broadcast %72 : vector<16x1xf32> to vector<16x16xf32>
    %74 = arith.divf %70, %73 : vector<16x16xf32>
    %cst_30 = arith.constant dense<0.000000e+00> : vector<16x8xf32>
    %75 = tpu.matmul %74, %61, %cst_30 {dimension_numbers = #tpu.dot_dimension_numbers<[1], [0], [0], [1], [0, 0, 1, 1], [], []>} : vector<16x16xf32>, vector<16x8xf32>, vector<16x8xf32> -> vector<16x8xf32>
    %76 = vector.extract_strided_slice %58 {offsets = [0, 8], sizes = [16, 8], strides = [1, 1]} : vector<16x96xf32> to vector<16x8xf32>
    %77 = vector.extract_strided_slice %58 {offsets = [0, 40], sizes = [16, 8], strides = [1, 1]} : vector<16x96xf32> to vector<16x8xf32>
    %78 = vector.extract_strided_slice %58 {offsets = [0, 72], sizes = [16, 8], strides = [1, 1]} : vector<16x96xf32> to vector<16x8xf32>
    "tpu.trace_start"() <{level = 10 : i32, message = "qe,ke->qk"}> : () -> ()
    %cst_31 = arith.constant dense<0.000000e+00> : vector<16x16xf32>
    %79 = tpu.matmul %76, %77, %cst_31 {dimension_numbers = #tpu.dot_dimension_numbers<[1], [1], [0], [0], [0, 0, 1, 0], [], []>} : vector<16x8xf32>, vector<16x8xf32>, vector<16x16xf32> -> vector<16x16xf32>
    "tpu.trace_stop"() : () -> ()
    %cst_32 = arith.constant 0.353553385 : f32
    %80 = vector.broadcast %cst_32 : f32 to vector<16x16xf32>
    %81 = arith.mulf %79, %80 : vector<16x16xf32>
    %82 = arith.addf %81, %50 : vector<16x16xf32>
    %cst_33 = arith.constant dense<0xFF800000> : vector<16xf32>
    %83 = vector.multi_reduction <maximumf>, %82, %cst_33 [1] : vector<16x16xf32> to vector<16xf32>
    %84 = vector.shape_cast %83 : vector<16xf32> to vector<16x1xf32>
    %85 = vector.broadcast %84 : vector<16x1xf32> to vector<16x16xf32>
    %86 = arith.subf %82, %85 : vector<16x16xf32>
    %87 = math.exp %86 : vector<16x16xf32>
    %cst_34 = arith.constant dense<0.000000e+00> : vector<16xf32>
    %88 = vector.multi_reduction <add>, %87, %cst_34 [1] : vector<16x16xf32> to vector<16xf32>
    %89 = vector.shape_cast %88 : vector<16xf32> to vector<16x1xf32>
    %90 = vector.broadcast %89 : vector<16x1xf32> to vector<16x16xf32>
    %91 = arith.divf %87, %90 : vector<16x16xf32>
    %cst_35 = arith.constant dense<0.000000e+00> : vector<16x8xf32>
    %92 = tpu.matmul %91, %78, %cst_35 {dimension_numbers = #tpu.dot_dimension_numbers<[1], [0], [0], [1], [0, 0, 1, 1], [], []>} : vector<16x16xf32>, vector<16x8xf32>, vector<16x8xf32> -> vector<16x8xf32>
    %93 = vector.extract_strided_slice %58 {offsets = [0, 16], sizes = [16, 8], strides = [1, 1]} : vector<16x96xf32> to vector<16x8xf32>
    %94 = vector.extract_strided_slice %58 {offsets = [0, 48], sizes = [16, 8], strides = [1, 1]} : vector<16x96xf32> to vector<16x8xf32>
    %95 = vector.extract_strided_slice %58 {offsets = [0, 80], sizes = [16, 8], strides = [1, 1]} : vector<16x96xf32> to vector<16x8xf32>
    "tpu.trace_start"() <{level = 10 : i32, message = "qe,ke->qk"}> : () -> ()
    %cst_36 = arith.constant dense<0.000000e+00> : vector<16x16xf32>
    %96 = tpu.matmul %93, %94, %cst_36 {dimension_numbers = #tpu.dot_dimension_numbers<[1], [1], [0], [0], [0, 0, 1, 0], [], []>} : vector<16x8xf32>, vector<16x8xf32>, vector<16x16xf32> -> vector<16x16xf32>
    "tpu.trace_stop"() : () -> ()
    %cst_37 = arith.constant 0.353553385 : f32
    %97 = vector.broadcast %cst_37 : f32 to vector<16x16xf32>
    %98 = arith.mulf %96, %97 : vector<16x16xf32>
    %99 = arith.addf %98, %50 : vector<16x16xf32>
    %cst_38 = arith.constant dense<0xFF800000> : vector<16xf32>
    %100 = vector.multi_reduction <maximumf>, %99, %cst_38 [1] : vector<16x16xf32> to vector<16xf32>
    %101 = vector.shape_cast %100 : vector<16xf32> to vector<16x1xf32>
    %102 = vector.broadcast %101 : vector<16x1xf32> to vector<16x16xf32>
    %103 = arith.subf %99, %102 : vector<16x16xf32>
    %104 = math.exp %103 : vector<16x16xf32>
    %cst_39 = arith.constant dense<0.000000e+00> : vector<16xf32>
    %105 = vector.multi_reduction <add>, %104, %cst_39 [1] : vector<16x16xf32> to vector<16xf32>
    %106 = vector.shape_cast %105 : vector<16xf32> to vector<16x1xf32>
    %107 = vector.broadcast %106 : vector<16x1xf32> to vector<16x16xf32>
    %108 = arith.divf %104, %107 : vector<16x16xf32>
    %cst_40 = arith.constant dense<0.000000e+00> : vector<16x8xf32>
    %109 = tpu.matmul %108, %95, %cst_40 {dimension_numbers = #tpu.dot_dimension_numbers<[1], [0], [0], [1], [0, 0, 1, 1], [], []>} : vector<16x16xf32>, vector<16x8xf32>, vector<16x8xf32> -> vector<16x8xf32>
    %110 = vector.extract_strided_slice %58 {offsets = [0, 24], sizes = [16, 8], strides = [1, 1]} : vector<16x96xf32> to vector<16x8xf32>
    %111 = vector.extract_strided_slice %58 {offsets = [0, 56], sizes = [16, 8], strides = [1, 1]} : vector<16x96xf32> to vector<16x8xf32>
    %112 = vector.extract_strided_slice %58 {offsets = [0, 88], sizes = [16, 8], strides = [1, 1]} : vector<16x96xf32> to vector<16x8xf32>
    "tpu.trace_start"() <{level = 10 : i32, message = "qe,ke->qk"}> : () -> ()
    %cst_41 = arith.constant dense<0.000000e+00> : vector<16x16xf32>
    %113 = tpu.matmul %110, %111, %cst_41 {dimension_numbers = #tpu.dot_dimension_numbers<[1], [1], [0], [0], [0, 0, 1, 0], [], []>} : vector<16x8xf32>, vector<16x8xf32>, vector<16x16xf32> -> vector<16x16xf32>
    "tpu.trace_stop"() : () -> ()
    %cst_42 = arith.constant 0.353553385 : f32
    %114 = vector.broadcast %cst_42 : f32 to vector<16x16xf32>
    %115 = arith.mulf %113, %114 : vector<16x16xf32>
    %116 = arith.addf %115, %50 : vector<16x16xf32>
    %cst_43 = arith.constant dense<0xFF800000> : vector<16xf32>
    %117 = vector.multi_reduction <maximumf>, %116, %cst_43 [1] : vector<16x16xf32> to vector<16xf32>
    %118 = vector.shape_cast %117 : vector<16xf32> to vector<16x1xf32>
    %119 = vector.broadcast %118 : vector<16x1xf32> to vector<16x16xf32>
    %120 = arith.subf %116, %119 : vector<16x16xf32>
    %121 = math.exp %120 : vector<16x16xf32>
    %cst_44 = arith.constant dense<0.000000e+00> : vector<16xf32>
    %122 = vector.multi_reduction <add>, %121, %cst_44 [1] : vector<16x16xf32> to vector<16xf32>
    %123 = vector.shape_cast %122 : vector<16xf32> to vector<16x1xf32>
    %124 = vector.broadcast %123 : vector<16x1xf32> to vector<16x16xf32>
    %125 = arith.divf %121, %124 : vector<16x16xf32>
    %cst_45 = arith.constant dense<0.000000e+00> : vector<16x8xf32>
    %126 = tpu.matmul %125, %112, %cst_45 {dimension_numbers = #tpu.dot_dimension_numbers<[1], [0], [0], [1], [0, 0, 1, 1], [], []>} : vector<16x16xf32>, vector<16x8xf32>, vector<16x8xf32> -> vector<16x8xf32>
    %127 = tpu.concatenate %75, %92, %109, %126 in 1 : vector<16x8xf32>, vector<16x8xf32>, vector<16x8xf32>, vector<16x8xf32> -> vector<16x32xf32>
    %cst_46 = arith.constant dense<0.000000e+00> : vector<16x32xf32>
    %128 = tpu.matmul %127, %10, %cst_46 {dimension_numbers = #tpu.dot_dimension_numbers<[1], [0], [0], [1], [0, 0, 1, 1], [], []>} : vector<16x32xf32>, vector<32x32xf32>, vector<16x32xf32> -> vector<16x32xf32>
    %129 = vector.broadcast %2 : vector<1x32xf32> to vector<16x32xf32>
    %130 = arith.addf %128, %129 : vector<16x32xf32>
    %131 = arith.addf %55, %130 : vector<16x32xf32>
    %cst_47 = arith.constant dense<0.000000e+00> : vector<16xf32>
    %132 = vector.multi_reduction <add>, %131, %cst_47 [1] : vector<16x32xf32> to vector<16xf32>
    %133 = vector.shape_cast %132 : vector<16xf32> to vector<16x1xf32>
    %cst_48 = arith.constant 3.200000e+01 : f32
    %134 = vector.broadcast %cst_48 : f32 to vector<16x1xf32>
    %135 = arith.divf %133, %134 : vector<16x1xf32>
    %136 = vector.broadcast %135 : vector<16x1xf32> to vector<16x32xf32>
    %137 = arith.subf %131, %136 : vector<16x32xf32>
    %138 = arith.mulf %137, %137 : vector<16x32xf32>
    %cst_49 = arith.constant dense<0.000000e+00> : vector<16xf32>
    %139 = vector.multi_reduction <add>, %138, %cst_49 [1] : vector<16x32xf32> to vector<16xf32>
    %140 = vector.shape_cast %139 : vector<16xf32> to vector<16x1xf32>
    %cst_50 = arith.constant 3.200000e+01 : f32
    %141 = vector.broadcast %cst_50 : f32 to vector<16x1xf32>
    %142 = arith.divf %140, %141 : vector<16x1xf32>
    %143 = vector.broadcast %135 : vector<16x1xf32> to vector<16x32xf32>
    %144 = arith.subf %131, %143 : vector<16x32xf32>
    %cst_51 = arith.constant 9.99999974E-6 : f32
    %145 = vector.broadcast %cst_51 : f32 to vector<16x1xf32>
    %146 = arith.addf %142, %145 : vector<16x1xf32>
    %147 = math.rsqrt %146 : vector<16x1xf32>
    %148 = vector.broadcast %147 : vector<16x1xf32> to vector<16x32xf32>
    %149 = arith.mulf %144, %148 : vector<16x32xf32>
    %150 = vector.broadcast %5 : vector<1x32xf32> to vector<16x32xf32>
    %151 = arith.mulf %149, %150 : vector<16x32xf32>
    %152 = vector.broadcast %6 : vector<1x32xf32> to vector<16x32xf32>
    %153 = arith.addf %151, %152 : vector<16x32xf32>
    %cst_52 = arith.constant dense<0.000000e+00> : vector<16x64xf32>
    %154 = tpu.matmul %153, %11, %cst_52 {dimension_numbers = #tpu.dot_dimension_numbers<[1], [0], [0], [1], [0, 0, 1, 1], [], []>} : vector<16x32xf32>, vector<32x64xf32>, vector<16x64xf32> -> vector<16x64xf32>
    %155 = vector.broadcast %3 : vector<1x64xf32> to vector<16x64xf32>
    %156 = arith.addf %154, %155 : vector<16x64xf32>
    %cst_53 = arith.constant 0.000000e+00 : f32
    %157 = vector.broadcast %cst_53 : f32 to vector<16x64xf32>
    %158 = arith.maximumf %156, %157 : vector<16x64xf32>
    %cst_54 = arith.constant dense<0.000000e+00> : vector<16x32xf32>
    %159 = tpu.matmul %158, %12, %cst_54 {dimension_numbers = #tpu.dot_dimension_numbers<[1], [0], [0], [1], [0, 0, 1, 1], [], []>} : vector<16x64xf32>, vector<64x32xf32>, vector<16x32xf32> -> vector<16x32xf32>
    %160 = vector.broadcast %4 : vector<1x32xf32> to vector<16x32xf32>
    %161 = arith.addf %159, %160 : vector<16x32xf32>
    %162 = arith.addf %153, %161 : vector<16x32xf32>
    %cst_55 = arith.constant dense<0.000000e+00> : vector<16xf32>
    %163 = vector.multi_reduction <add>, %162, %cst_55 [1] : vector<16x32xf32> to vector<16xf32>
    %164 = vector.shape_cast %163 : vector<16xf32> to vector<16x1xf32>
    %cst_56 = arith.constant 3.200000e+01 : f32
    %165 = vector.broadcast %cst_56 : f32 to vector<16x1xf32>
    %166 = arith.divf %164, %165 : vector<16x1xf32>
    %167 = vector.broadcast %166 : vector<16x1xf32> to vector<16x32xf32>
    %168 = arith.subf %162, %167 : vector<16x32xf32>
    %169 = arith.mulf %168, %168 : vector<16x32xf32>
    %cst_57 = arith.constant dense<0.000000e+00> : vector<16xf32>
    %170 = vector.multi_reduction <add>, %169, %cst_57 [1] : vector<16x32xf32> to vector<16xf32>
    %171 = vector.shape_cast %170 : vector<16xf32> to vector<16x1xf32>
    %cst_58 = arith.constant 3.200000e+01 : f32
    %172 = vector.broadcast %cst_58 : f32 to vector<16x1xf32>
    %173 = arith.divf %171, %172 : vector<16x1xf32>
    %174 = vector.broadcast %166 : vector<16x1xf32> to vector<16x32xf32>
    %175 = arith.subf %162, %174 : vector<16x32xf32>
    %cst_59 = arith.constant 9.99999974E-6 : f32
    %176 = vector.broadcast %cst_59 : f32 to vector<16x1xf32>
    %177 = arith.addf %173, %176 : vector<16x1xf32>
    %178 = math.rsqrt %177 : vector<16x1xf32>
    %179 = vector.broadcast %178 : vector<16x1xf32> to vector<16x32xf32>
    %180 = arith.mulf %175, %179 : vector<16x32xf32>
    %181 = vector.broadcast %7 : vector<1x32xf32> to vector<16x32xf32>
    %182 = arith.mulf %180, %181 : vector<16x32xf32>
    %183 = vector.broadcast %8 : vector<1x32xf32> to vector<16x32xf32>
    %184 = arith.addf %182, %183 : vector<16x32xf32>
    %c0_60 = arith.constant 0 : index
    %c0_61 = arith.constant 0 : index
    %185 = vector.load %arg7[%c0_60, %c0_61] : memref<16x32xf32, #tpu.memory_space<vmem>>, vector<16x32xf32>
    tpu.vector_store %arg7[%c0_60, %c0_61], %184 {strides = array<i32>} : memref<16x32xf32, #tpu.memory_space<vmem>>, vector<16x32xf32>,
    %cst_62 = arith.constant dense<0.000000e+00> : vector<16x96xf32>
    %186 = tpu.matmul %184, %9, %cst_62 {dimension_numbers = #tpu.dot_dimension_numbers<[1], [0], [0], [1], [0, 0, 1, 1], [], []>} : vector<16x32xf32>, vector<32x96xf32>, vector<16x96xf32> -> vector<16x96xf32>
    %187 = vector.broadcast %1 : vector<1x96xf32> to vector<16x96xf32>
    %188 = arith.addf %186, %187 : vector<16x96xf32>
    %189 = vector.extract_strided_slice %188 {offsets = [0, 0], sizes = [16, 8], strides = [1, 1]} : vector<16x96xf32> to vector<16x8xf32>
    %190 = vector.extract_strided_slice %188 {offsets = [0, 32], sizes = [16, 8], strides = [1, 1]} : vector<16x96xf32> to vector<16x8xf32>
    %191 = vector.extract_strided_slice %188 {offsets = [0, 64], sizes = [16, 8], strides = [1, 1]} : vector<16x96xf32> to vector<16x8xf32>
    "tpu.trace_start"() <{level = 10 : i32, message = "qe,ke->qk"}> : () -> ()
    %cst_63 = arith.constant dense<0.000000e+00> : vector<16x16xf32>
    %192 = tpu.matmul %189, %190, %cst_63 {dimension_numbers = #tpu.dot_dimension_numbers<[1], [1], [0], [0], [0, 0, 1, 0], [], []>} : vector<16x8xf32>, vector<16x8xf32>, vector<16x16xf32> -> vector<16x16xf32>
    "tpu.trace_stop"() : () -> ()
    %cst_64 = arith.constant 0.353553385 : f32
    %193 = vector.broadcast %cst_64 : f32 to vector<16x16xf32>
    %194 = arith.mulf %192, %193 : vector<16x16xf32>
    %195 = arith.addf %194, %50 : vector<16x16xf32>
    %cst_65 = arith.constant dense<0xFF800000> : vector<16xf32>
    %196 = vector.multi_reduction <maximumf>, %195, %cst_65 [1] : vector<16x16xf32> to vector<16xf32>
    %197 = vector.shape_cast %196 : vector<16xf32> to vector<16x1xf32>
    %198 = vector.broadcast %197 : vector<16x1xf32> to vector<16x16xf32>
    %199 = arith.subf %195, %198 : vector<16x16xf32>
    %200 = math.exp %199 : vector<16x16xf32>
    %cst_66 = arith.constant dense<0.000000e+00> : vector<16xf32>
    %201 = vector.multi_reduction <add>, %200, %cst_66 [1] : vector<16x16xf32> to vector<16xf32>
    %202 = vector.shape_cast %201 : vector<16xf32> to vector<16x1xf32>
    %203 = vector.broadcast %202 : vector<16x1xf32> to vector<16x16xf32>
    %204 = arith.divf %200, %203 : vector<16x16xf32>
    %cst_67 = arith.constant dense<0.000000e+00> : vector<16x8xf32>
    %205 = tpu.matmul %204, %191, %cst_67 {dimension_numbers = #tpu.dot_dimension_numbers<[1], [0], [0], [1], [0, 0, 1, 1], [], []>} : vector<16x16xf32>, vector<16x8xf32>, vector<16x8xf32> -> vector<16x8xf32>
    %206 = vector.extract_strided_slice %188 {offsets = [0, 8], sizes = [16, 8], strides = [1, 1]} : vector<16x96xf32> to vector<16x8xf32>
    %207 = vector.extract_strided_slice %188 {offsets = [0, 40], sizes = [16, 8], strides = [1, 1]} : vector<16x96xf32> to vector<16x8xf32>
    %208 = vector.extract_strided_slice %188 {offsets = [0, 72], sizes = [16, 8], strides = [1, 1]} : vector<16x96xf32> to vector<16x8xf32>
    "tpu.trace_start"() <{level = 10 : i32, message = "qe,ke->qk"}> : () -> ()
    %cst_68 = arith.constant dense<0.000000e+00> : vector<16x16xf32>
    %209 = tpu.matmul %206, %207, %cst_68 {dimension_numbers = #tpu.dot_dimension_numbers<[1], [1], [0], [0], [0, 0, 1, 0], [], []>} : vector<16x8xf32>, vector<16x8xf32>, vector<16x16xf32> -> vector<16x16xf32>
    "tpu.trace_stop"() : () -> ()
    %cst_69 = arith.constant 0.353553385 : f32
    %210 = vector.broadcast %cst_69 : f32 to vector<16x16xf32>
    %211 = arith.mulf %209, %210 : vector<16x16xf32>
    %212 = arith.addf %211, %50 : vector<16x16xf32>
    %cst_70 = arith.constant dense<0xFF800000> : vector<16xf32>
    %213 = vector.multi_reduction <maximumf>, %212, %cst_70 [1] : vector<16x16xf32> to vector<16xf32>
    %214 = vector.shape_cast %213 : vector<16xf32> to vector<16x1xf32>
    %215 = vector.broadcast %214 : vector<16x1xf32> to vector<16x16xf32>
    %216 = arith.subf %212, %215 : vector<16x16xf32>
    %217 = math.exp %216 : vector<16x16xf32>
    %cst_71 = arith.constant dense<0.000000e+00> : vector<16xf32>
    %218 = vector.multi_reduction <add>, %217, %cst_71 [1] : vector<16x16xf32> to vector<16xf32>
    %219 = vector.shape_cast %218 : vector<16xf32> to vector<16x1xf32>
    %220 = vector.broadcast %219 : vector<16x1xf32> to vector<16x16xf32>
    %221 = arith.divf %217, %220 : vector<16x16xf32>
    %cst_72 = arith.constant dense<0.000000e+00> : vector<16x8xf32>
    %222 = tpu.matmul %221, %208, %cst_72 {dimension_numbers = #tpu.dot_dimension_numbers<[1], [0], [0], [1], [0, 0, 1, 1], [], []>} : vector<16x16xf32>, vector<16x8xf32>, vector<16x8xf32> -> vector<16x8xf32>
    %223 = vector.extract_strided_slice %188 {offsets = [0, 16], sizes = [16, 8], strides = [1, 1]} : vector<16x96xf32> to vector<16x8xf32>
    %224 = vector.extract_strided_slice %188 {offsets = [0, 48], sizes = [16, 8], strides = [1, 1]} : vector<16x96xf32> to vector<16x8xf32>
    %225 = vector.extract_strided_slice %188 {offsets = [0, 80], sizes = [16, 8], strides = [1, 1]} : vector<16x96xf32> to vector<16x8xf32>
    "tpu.trace_start"() <{level = 10 : i32, message = "qe,ke->qk"}> : () -> ()
    %cst_73 = arith.constant dense<0.000000e+00> : vector<16x16xf32>
    %226 = tpu.matmul %223, %224, %cst_73 {dimension_numbers = #tpu.dot_dimension_numbers<[1], [1], [0], [0], [0, 0, 1, 0], [], []>} : vector<16x8xf32>, vector<16x8xf32>, vector<16x16xf32> -> vector<16x16xf32>
    "tpu.trace_stop"() : () -> ()
    %cst_74 = arith.constant 0.353553385 : f32
    %227 = vector.broadcast %cst_74 : f32 to vector<16x16xf32>
    %228 = arith.mulf %226, %227 : vector<16x16xf32>
    %229 = arith.addf %228, %50 : vector<16x16xf32>
    %cst_75 = arith.constant dense<0xFF800000> : vector<16xf32>
    %230 = vector.multi_reduction <maximumf>, %229, %cst_75 [1] : vector<16x16xf32> to vector<16xf32>
    %231 = vector.shape_cast %230 : vector<16xf32> to vector<16x1xf32>
    %232 = vector.broadcast %231 : vector<16x1xf32> to vector<16x16xf32>
    %233 = arith.subf %229, %232 : vector<16x16xf32>
    %234 = math.exp %233 : vector<16x16xf32>
    %cst_76 = arith.constant dense<0.000000e+00> : vector<16xf32>
    %235 = vector.multi_reduction <add>, %234, %cst_76 [1] : vector<16x16xf32> to vector<16xf32>
    %236 = vector.shape_cast %235 : vector<16xf32> to vector<16x1xf32>
    %237 = vector.broadcast %236 : vector<16x1xf32> to vector<16x16xf32>
    %238 = arith.divf %234, %237 : vector<16x16xf32>
    %cst_77 = arith.constant dense<0.000000e+00> : vector<16x8xf32>
    %239 = tpu.matmul %238, %225, %cst_77 {dimension_numbers = #tpu.dot_dimension_numbers<[1], [0], [0], [1], [0, 0, 1, 1], [], []>} : vector<16x16xf32>, vector<16x8xf32>, vector<16x8xf32> -> vector<16x8xf32>
    %240 = vector.extract_strided_slice %188 {offsets = [0, 24], sizes = [16, 8], strides = [1, 1]} : vector<16x96xf32> to vector<16x8xf32>
    %241 = vector.extract_strided_slice %188 {offsets = [0, 56], sizes = [16, 8], strides = [1, 1]} : vector<16x96xf32> to vector<16x8xf32>
    %242 = vector.extract_strided_slice %188 {offsets = [0, 88], sizes = [16, 8], strides = [1, 1]} : vector<16x96xf32> to vector<16x8xf32>
    "tpu.trace_start"() <{level = 10 : i32, message = "qe,ke->qk"}> : () -> ()
    %cst_78 = arith.constant dense<0.000000e+00> : vector<16x16xf32>
    %243 = tpu.matmul %240, %241, %cst_78 {dimension_numbers = #tpu.dot_dimension_numbers<[1], [1], [0], [0], [0, 0, 1, 0], [], []>} : vector<16x8xf32>, vector<16x8xf32>, vector<16x16xf32> -> vector<16x16xf32>
    "tpu.trace_stop"() : () -> ()
    %cst_79 = arith.constant 0.353553385 : f32
    %244 = vector.broadcast %cst_79 : f32 to vector<16x16xf32>
    %245 = arith.mulf %243, %244 : vector<16x16xf32>
    %246 = arith.addf %245, %50 : vector<16x16xf32>
    %cst_80 = arith.constant dense<0xFF800000> : vector<16xf32>
    %247 = vector.multi_reduction <maximumf>, %246, %cst_80 [1] : vector<16x16xf32> to vector<16xf32>
    %248 = vector.shape_cast %247 : vector<16xf32> to vector<16x1xf32>
    %249 = vector.broadcast %248 : vector<16x1xf32> to vector<16x16xf32>
    %250 = arith.subf %246, %249 : vector<16x16xf32>
    %251 = math.exp %250 : vector<16x16xf32>
    %cst_81 = arith.constant dense<0.000000e+00> : vector<16xf32>
    %252 = vector.multi_reduction <add>, %251, %cst_81 [1] : vector<16x16xf32> to vector<16xf32>
    %253 = vector.shape_cast %252 : vector<16xf32> to vector<16x1xf32>
    %254 = vector.broadcast %253 : vector<16x1xf32> to vector<16x16xf32>
    %255 = arith.divf %251, %254 : vector<16x16xf32>
    %cst_82 = arith.constant dense<0.000000e+00> : vector<16x8xf32>
    %256 = tpu.matmul %255, %242, %cst_82 {dimension_numbers = #tpu.dot_dimension_numbers<[1], [0], [0], [1], [0, 0, 1, 1], [], []>} : vector<16x16xf32>, vector<16x8xf32>, vector<16x8xf32> -> vector<16x8xf32>
    %257 = tpu.concatenate %205, %222, %239, %256 in 1 : vector<16x8xf32>, vector<16x8xf32>, vector<16x8xf32>, vector<16x8xf32> -> vector<16x32xf32>
    %cst_83 = arith.constant dense<0.000000e+00> : vector<16x32xf32>
    %258 = tpu.matmul %257, %10, %cst_83 {dimension_numbers = #tpu.dot_dimension_numbers<[1], [0], [0], [1], [0, 0, 1, 1], [], []>} : vector<16x32xf32>, vector<32x32xf32>, vector<16x32xf32> -> vector<16x32xf32>
    %259 = vector.broadcast %2 : vector<1x32xf32> to vector<16x32xf32>
    %260 = arith.addf %258, %259 : vector<16x32xf32>
    %261 = arith.addf %184, %260 : vector<16x32xf32>
    %cst_84 = arith.constant dense<0.000000e+00> : vector<16xf32>
    %262 = vector.multi_reduction <add>, %261, %cst_84 [1] : vector<16x32xf32> to vector<16xf32>
    %263 = vector.shape_cast %262 : vector<16xf32> to vector<16x1xf32>
    %cst_85 = arith.constant 3.200000e+01 : f32
    %264 = vector.broadcast %cst_85 : f32 to vector<16x1xf32>
    %265 = arith.divf %263, %264 : vector<16x1xf32>
    %266 = vector.broadcast %265 : vector<16x1xf32> to vector<16x32xf32>
    %267 = arith.subf %261, %266 : vector<16x32xf32>
    %268 = arith.mulf %267, %267 : vector<16x32xf32>
    %cst_86 = arith.constant dense<0.000000e+00> : vector<16xf32>
    %269 = vector.multi_reduction <add>, %268, %cst_86 [1] : vector<16x32xf32> to vector<16xf32>
    %270 = vector.shape_cast %269 : vector<16xf32> to vector<16x1xf32>
    %cst_87 = arith.constant 3.200000e+01 : f32
    %271 = vector.broadcast %cst_87 : f32 to vector<16x1xf32>
    %272 = arith.divf %270, %271 : vector<16x1xf32>
    %273 = vector.broadcast %265 : vector<16x1xf32> to vector<16x32xf32>
    %274 = arith.subf %261, %273 : vector<16x32xf32>
    %cst_88 = arith.constant 9.99999974E-6 : f32
    %275 = vector.broadcast %cst_88 : f32 to vector<16x1xf32>
    %276 = arith.addf %272, %275 : vector<16x1xf32>
    %277 = math.rsqrt %276 : vector<16x1xf32>
    %278 = vector.broadcast %277 : vector<16x1xf32> to vector<16x32xf32>
    %279 = arith.mulf %274, %278 : vector<16x32xf32>
    %280 = vector.broadcast %5 : vector<1x32xf32> to vector<16x32xf32>
    %281 = arith.mulf %279, %280 : vector<16x32xf32>
    %282 = vector.broadcast %6 : vector<1x32xf32> to vector<16x32xf32>
    %283 = arith.addf %281, %282 : vector<16x32xf32>
    %cst_89 = arith.constant dense<0.000000e+00> : vector<16x64xf32>
    %284 = tpu.matmul %283, %11, %cst_89 {dimension_numbers = #tpu.dot_dimension_numbers<[1], [0], [0], [1], [0, 0, 1, 1], [], []>} : vector<16x32xf32>, vector<32x64xf32>, vector<16x64xf32> -> vector<16x64xf32>
    %285 = vector.broadcast %3 : vector<1x64xf32> to vector<16x64xf32>
    %286 = arith.addf %284, %285 : vector<16x64xf32>
    %cst_90 = arith.constant 0.000000e+00 : f32
    %287 = vector.broadcast %cst_90 : f32 to vector<16x64xf32>
    %288 = arith.maximumf %286, %287 : vector<16x64xf32>
    %cst_91 = arith.constant dense<0.000000e+00> : vector<16x32xf32>
    %289 = tpu.matmul %288, %12, %cst_91 {dimension_numbers = #tpu.dot_dimension_numbers<[1], [0], [0], [1], [0, 0, 1, 1], [], []>} : vector<16x64xf32>, vector<64x32xf32>, vector<16x32xf32> -> vector<16x32xf32>
    %290 = vector.broadcast %4 : vector<1x32xf32> to vector<16x32xf32>
    %291 = arith.addf %289, %290 : vector<16x32xf32>
    %292 = arith.addf %283, %291 : vector<16x32xf32>
    %cst_92 = arith.constant dense<0.000000e+00> : vector<16xf32>
    %293 = vector.multi_reduction <add>, %292, %cst_92 [1] : vector<16x32xf32> to vector<16xf32>
    %294 = vector.shape_cast %293 : vector<16xf32> to vector<16x1xf32>
    %cst_93 = arith.constant 3.200000e+01 : f32
    %295 = vector.broadcast %cst_93 : f32 to vector<16x1xf32>
    %296 = arith.divf %294, %295 : vector<16x1xf32>
    %297 = vector.broadcast %296 : vector<16x1xf32> to vector<16x32xf32>
    %298 = arith.subf %292, %297 : vector<16x32xf32>
    %299 = arith.mulf %298, %298 : vector<16x32xf32>
    %cst_94 = arith.constant dense<0.000000e+00> : vector<16xf32>
    %300 = vector.multi_reduction <add>, %299, %cst_94 [1] : vector<16x32xf32> to vector<16xf32>
    %301 = vector.shape_cast %300 : vector<16xf32> to vector<16x1xf32>
    %cst_95 = arith.constant 3.200000e+01 : f32
    %302 = vector.broadcast %cst_95 : f32 to vector<16x1xf32>
    %303 = arith.divf %301, %302 : vector<16x1xf32>
    %304 = vector.broadcast %296 : vector<16x1xf32> to vector<16x32xf32>
    %305 = arith.subf %292, %304 : vector<16x32xf32>
    %cst_96 = arith.constant 9.99999974E-6 : f32
    %306 = vector.broadcast %cst_96 : f32 to vector<16x1xf32>
    %307 = arith.addf %303, %306 : vector<16x1xf32>
    %308 = math.rsqrt %307 : vector<16x1xf32>
    %309 = vector.broadcast %308 : vector<16x1xf32> to vector<16x32xf32>
    %310 = arith.mulf %305, %309 : vector<16x32xf32>
    %311 = vector.broadcast %7 : vector<1x32xf32> to vector<16x32xf32>
    %312 = arith.mulf %310, %311 : vector<16x32xf32>
    %313 = vector.broadcast %8 : vector<1x32xf32> to vector<16x32xf32>
    %314 = arith.addf %312, %313 : vector<16x32xf32>
    %c0_97 = arith.constant 0 : index
    %c0_98 = arith.constant 0 : index
    %315 = vector.load %arg8[%c0_97, %c0_98] : memref<16x32xf32, #tpu.memory_space<vmem>>, vector<16x32xf32>
    tpu.vector_store %arg8[%c0_97, %c0_98], %314 {strides = array<i32>} : memref<16x32xf32, #tpu.memory_space<vmem>>, vector<16x32xf32>,
    return
  }
}

</mosaic_0001>

<llo_original>
// kernel: tpu_custom_call.1
$region0: #{tpu_custom_call.1}
  #allocation0 [shape = 'u32[]', space=smem, size = 0x4, offset = 0x4, fixed_abs, tag = 'smem constant byte address 0x4 - core index']
  #allocation1 [shape = 'u32[144,128]{1,0:T(1,128)}', space=vmem, size = 0x12000, scoped, tag = 'internal scratch']
  %s0 = inlined_call_operand.hbm [shape: f32[8,2,32], index: 0, kind: input, shape index: {}]
  %s1 = inlined_call_operand.hbm [shape: f32[8,1,32], index: 1, kind: input, shape index: {}]
  %s2 = inlined_call_operand.vmem [shape: f32[32,96], index: 2, kind: input, shape index: {}]
  %s3 = inlined_call_operand.vmem [shape: f32[32,32], index: 3, kind: input, shape index: {}]
  %s4 = inlined_call_operand.vmem [shape: f32[32,64], index: 4, kind: input, shape index: {}]
  %s5 = inlined_call_operand.vmem [shape: f32[64,32], index: 5, kind: input, shape index: {}]
  %s6 = inlined_call_operand.vmem [shape: f32[8,96], index: 6, kind: input, shape index: {}]
  %s7 = inlined_call_operand.hbm [shape: f32[16,32], index: 7, kind: output, shape index: {0}]
  %s8 = inlined_call_operand.hbm [shape: f32[16,32], index: 8, kind: output, shape index: {1}]
  %9 = xla_tuple %s7, %s8
  %s10 = sld [smem:[#allocation0]]
  $region54: #{tpu_custom_call.1} parent=0
    _
  %s12 = ssub.s32 1, %s10
  %s13 = scalar_select 0, %s12, %s10
  $region1: #{tpu_custom_call.1} parent=0
    #allocation2 [shape = 'u8[8192]{0}', space=vmem, size = 0x2000, scoped, tag = 'input window, operand 0, single buffered']
    #allocation3 [shape = 's32[1]{0}', space=sflag, size = 0x4, scoped, tag = 'scoped memory for tpu_custom_call.1']
    #allocation4 [shape = 's32[1]{0}', space=sflag, size = 0x4, scoped, tag = 'scoped memory for tpu_custom_call.1']
    #allocation5 [shape = 'u8[4096]{0}', space=vmem, size = 0x1000, scoped, tag = 'input window, operand 1, single buffered']
    #allocation6 [shape = 's32[1]{0}', space=sflag, size = 0x4, scoped, tag = 'scoped memory for tpu_custom_call.1']
    #allocation7 [shape = 'u8[8192]{0}', space=vmem, size = 0x2000, scoped, tag = 'output window, operand 0, single buffered']
    #allocation8 [shape = 'u8[8192]{0}', space=vmem, size = 0x2000, scoped, tag = 'output window, operand 1, single buffered']
    #allocation9 [shape = 's32[1]{0}', space=sflag, size = 0x4, scoped, tag = 'scoped memory for tpu_custom_call.1']
    %14 = vsyncpa [#allocation3], 0
    %15 = vsyncpa [#allocation6], 0
    %16 = vsyncpa [#allocation4], 0
    %17 = vsyncpa [#allocation9], 0
    // Predicated region
    $region2: #{tpu_custom_call.1} parent=1 // pred_check
      _
    $region3: #{tpu_custom_call.1} parent=1 // pred_check_branch
      %19 = sbr.rel (0) target = $region5
    $region4: #{tpu_custom_call.1} parent=1 // pred_region
      %s21 = ssub.s32 256, 256
      %22 = vsyncadd [#allocation3], %s21
      %s23 = sshll.u32 [#allocation2], 4
      %s24 = int_to_ptr.vmem [resolvable:$true] %s23
      %29 = dma.hbm_to_vmem [thread:$0]  %s0, 256, %s24, [#allocation3], 32, 32, 2
    $region5: #{tpu_custom_call.1} parent=1 // pred_fallthru
      _
    // Predicated region
    $region6: #{tpu_custom_call.1} parent=1 // pred_check
      _
    $region7: #{tpu_custom_call.1} parent=1 // pred_check_branch
      %31 = sbr.rel (0) target = $region9
    $region8: #{tpu_custom_call.1} parent=1 // pred_region
      %s33 = ssub.s32 128, 128
      %34 = vsyncadd [#allocation6], %s33
      %s35 = sshll.u32 [#allocation5], 4
      %s36 = int_to_ptr.vmem [resolvable:$true] %s35
      %41 = dma.hbm_to_vmem [thread:$0]  %s1, 128, %s36, [#allocation6], 16, 16, 1
    $region9: #{tpu_custom_call.1} parent=1 // pred_fallthru
      _
    // Predicated region
    $region10: #{tpu_custom_call.1} parent=1 // pred_check
      _
    $region11: #{tpu_custom_call.1} parent=1 // pred_check_branch
      %43 = sbr.rel (0) target = $region13
    $region12: #{tpu_custom_call.1} parent=1 // pred_region
      _
    $region13: #{tpu_custom_call.1} parent=1 // pred_fallthru
      _
    // Predicated region
    $region14: #{tpu_custom_call.1} parent=1 // pred_check
      _
    $region15: #{tpu_custom_call.1} parent=1 // pred_check_branch
      %45 = sbr.rel (0) target = $region17
    $region16: #{tpu_custom_call.1} parent=1 // pred_region
      _
    $region17: #{tpu_custom_call.1} parent=1 // pred_fallthru
      _
    // Predicated region
    $region18: #{tpu_custom_call.1} parent=1 // pred_check
      _
    $region19: #{tpu_custom_call.1} parent=1 // pred_check_branch
      %47 = sbr.rel (0) target = $region21
    $region20: #{tpu_custom_call.1} parent=1 // pred_region
      _
    $region21: #{tpu_custom_call.1} parent=1 // pred_fallthru
      _
    // Predicated region
    $region22: #{tpu_custom_call.1} parent=1 // pred_check
      _
    $region23: #{tpu_custom_call.1} parent=1 // pred_check_branch
      %49 = sbr.rel (0) target = $region25
    $region24: #{tpu_custom_call.1} parent=1 // pred_region
      _
    $region25: #{tpu_custom_call.1} parent=1 // pred_fallthru
      _
    // Predicated region
    $region26: #{tpu_custom_call.1} parent=1 // pred_check
      _
    $region27: #{tpu_custom_call.1} parent=1 // pred_check_branch
      %51 = sbr.rel (0) target = $region29
    $region28: #{tpu_custom_call.1} parent=1 // pred_region
      _
    $region29: #{tpu_custom_call.1} parent=1 // pred_fallthru
      _
    // Predicated region
    $region30: #{tpu_custom_call.1} parent=1 // pred_check
      _
    $region31: #{tpu_custom_call.1} parent=1 // pred_check_branch
      %53 = sbr.rel (0) target = $region33
    $region32: #{tpu_custom_call.1} parent=1 // pred_region
      %54 = dma.done [#allocation3], 256
    $region33: #{tpu_custom_call.1} parent=1 // pred_fallthru
      _
    // Predicated region
    $region34: #{tpu_custom_call.1} parent=1 // pred_check
      _
    $region35: #{tpu_custom_call.1} parent=1 // pred_check_branch
      %56 = sbr.rel (0) target = $region37
    $region36: #{tpu_custom_call.1} parent=1 // pred_region
      %57 = dma.done [#allocation6], 128
    $region37: #{tpu_custom_call.1} parent=1 // pred_fallthru
      _
    %v58 = vld [vmem:[%s6] sm:$0xff]
    %v59 = vld [vmem:[%s2] sm:$0xff]
    %v60 = vld [vmem:[%s2 + $0x8] sm:$0xff]
    %v61 = vld [vmem:[%s2 + $0x10] sm:$0xff]
    %v62 = vld [vmem:[%s2 + $0x18] sm:$0xff]
    %v63 = vld [vmem:[%s3] sm:$0xff]
    %v64 = vld [vmem:[%s3 + $0x8] sm:$0xff]
    %v65 = vld [vmem:[%s3 + $0x10] sm:$0xff]
    %v66 = vld [vmem:[%s3 + $0x18] sm:$0xff]
    %v67 = vld [vmem:[%s4] sm:$0xff]
    %v68 = vld [vmem:[%s4 + $0x8] sm:$0xff]
    %v69 = vld [vmem:[%s4 + $0x10] sm:$0xff]
    %v70 = vld [vmem:[%s4 + $0x18] sm:$0xff]
    %v71 = vld [vmem:[%s5] sm:$0xff]
    %v72 = vld [vmem:[%s5 + $0x8] sm:$0xff]
    %v73 = vld [vmem:[%s5 + $0x10] sm:$0xff]
    %v74 = vld [vmem:[%s5 + $0x18] sm:$0xff]
    %v75 = vld [vmem:[%s5 + $0x20] sm:$0xff]
    %v76 = vld [vmem:[%s5 + $0x28] sm:$0xff]
    %v77 = vld [vmem:[%s5 + $0x30] sm:$0xff]
    %v78 = vld [vmem:[%s5 + $0x38] sm:$0xff]
    %v79 = vlaneseq
    %v80 = vshrl.u32 %v79, 7
    %v81 = vadd.s32 %v80, 8
    %v82 = vlaneseq
    %v83 = vand.u32 %v82, 127
    %vm84 = vcmp.lt.s32.totalorder %v80, 0
    %v85 = vsub.s32 0, %v80
    %v86 = vsel %vm84, %v85, %v80
    %v87 = vshrl.u32 %v86, 1
    %v88 = vand.u32 %v86, 1
    %v89 = vsub.s32 0, %v88
    %v90 = vsel %vm84, %v89, %v88
    %vm91 = vcmp.lt.s32.totalorder %v81, 0
    %v92 = vsub.s32 0, %v81
    %v93 = vsel %vm91, %v92, %v81
    %v94 = vshrl.u32 %v93, 1
    %v95 = vand.u32 %v93, 1
    %v96 = vsub.s32 0, %v95
    %v97 = vsel %vm91, %v96, %v95
    %vm98 = vcmp.ne.s32.totalorder %v90, 0
    %vm99 = vcmp.ne.s32.totalorder %v97, 0
    %vm100 = vcmp.lt.s32.totalorder %v90, 0
    %vm101 = vcmp.lt.s32.totalorder %v97, 0
    %vm102 = vmand %vm100, %vm98
    %vm103 = vmand %vm101, %vm99
    %v104 = vadd.s32 %v90, 2
    %v105 = vadd.s32 %v97, 2
    %v106 = vsel %vm102, %v104, %v90
    %v107 = vsel %vm103, %v105, %v97
    %vm108 = vcmp.lt.s32.totalorder %v83, 0
    %v109 = vsub.s32 0, %v83
    %v110 = vsel %vm108, %v109, %v83
    %v111 = vshrl.u32 %v110, 1
    %v112 = vand.u32 %v110, 1
    %v113 = vsub.s32 0, %v112
    %v114 = vsel %vm108, %v113, %v112
    %vm115 = vcmp.ne.s32.totalorder %v114, 0
    %vm116 = vcmp.lt.s32.totalorder %v114, 0
    %vm117 = vmand %vm116, %vm115
    %v118 = vadd.s32 %v114, 2
    %v119 = vsel %vm117, %v118, %v114
    %vm120 = vcmp.eq.s32.totalorder %v106, %v119
    %vm121 = vcmp.eq.s32.totalorder %v107, %v119
    %v122 = vsel %vm120, 0.0, -1e+30
    %v123 = vsel %vm121, 0.0, -1e+30
    %v124 = vld [vmem:[#allocation2] sm:$0x3]
    %v125 = vld [vmem:[#allocation2 + $0x2] sm:$0x3]
    %v126 = vld [vmem:[#allocation2 + $0x4] sm:$0x3]
    %v127 = vld [vmem:[#allocation2 + $0x6] sm:$0x3]
    %v128 = vld [vmem:[#allocation2 + $0x8] sm:$0x3]
    %v129 = vld [vmem:[#allocation2 + $0xa] sm:$0x3]
    %v130 = vld [vmem:[#allocation2 + $0xc] sm:$0x3]
    %v131 = vld [vmem:[#allocation2 + $0xe] sm:$0x3]
    %v132 = vld [vmem:[#allocation5] sm:$0x1]
    %v133 = vld [vmem:[#allocation5 + $0x1] sm:$0x1]
    %v134 = vld [vmem:[#allocation5 + $0x2] sm:$0x1]
    %v135 = vld [vmem:[#allocation5 + $0x3] sm:$0x1]
    %v136 = vld [vmem:[#allocation5 + $0x4] sm:$0x1]
    %v137 = vld [vmem:[#allocation5 + $0x5] sm:$0x1]
    %v138 = vld [vmem:[#allocation5 + $0x6] sm:$0x1]
    %v139 = vld [vmem:[#allocation5 + $0x7] sm:$0x1]
    %v148 = vlaneseq
    %v149 = vshrl.u32 %v148, 7
    %v150 = vsub.s32 0, %v149
    %v151 = vrot.slane %v132, %v150
    %v152 = vlaneseq
    %v153 = vshrl.u32 %v152, 7
    %v154 = vsub.s32 0, %v153
    %v155 = vrot.slane %v133, %v154
    %v156 = vlaneseq
    %v157 = vshrl.u32 %v156, 7
    %v158 = vsub.s32 0, %v157
    %v159 = vrot.slane %v134, %v158
    %v160 = vlaneseq
    %v161 = vshrl.u32 %v160, 7
    %v162 = vsub.s32 0, %v161
    %v163 = vrot.slane %v135, %v162
    %v164 = vlaneseq
    %v165 = vshrl.u32 %v164, 7
    %v166 = vsub.s32 0, %v165
    %v167 = vrot.slane %v136, %v166
    %v168 = vlaneseq
    %v169 = vshrl.u32 %v168, 7
    %v170 = vsub.s32 0, %v169
    %v171 = vrot.slane %v137, %v170
    %v172 = vlaneseq
    %v173 = vshrl.u32 %v172, 7
    %v174 = vsub.s32 0, %v173
    %v175 = vrot.slane %v138, %v174
    %v176 = vlaneseq
    %v177 = vshrl.u32 %v176, 7
    %v178 = vsub.s32 0, %v177
    %v179 = vrot.slane %v139, %v178
    %v188 = vadd.f32 %v124, %v151
    %v189 = vadd.f32 %v125, %v155
    %v190 = vadd.f32 %v126, %v159
    %v191 = vadd.f32 %v127, %v163
    %v192 = vadd.f32 %v128, %v167
    %v193 = vadd.f32 %v129, %v171
    %v194 = vadd.f32 %v130, %v175
    %v195 = vadd.f32 %v131, %v179
    %v196 = vlaneseq
    %v197 = vshrl.u32 %v196, 7
    %v198 = vsub.s32 0, %v197
    %v199 = vrot.slane %v58, %v198
    %v208 = vcombine.low %v188, %v189
    %v209 = vcombine.low %v190, %v191
    %v211 = vunpack.c.l.s4 1983009808
    %v212 = vunpack.c.0.s8 %v211
    %v213 = vlaneseq
    %v214 = vshrl.u32 %v213, 7
    %v215 = vsub.s32 %v212, %v214
    %v216 = vrot.slane %v208, %v215
    %v218 = vunpack.c.l.s4 1983009808
    %v219 = vunpack.c.0.s8 %v218
    %v220 = vlaneseq
    %v221 = vshrl.u32 %v220, 7
    %v222 = vsub.s32 %v219, %v221
    %v223 = vrot.slane %v209, %v222
    %v224 = vcombine.low %v216, %v223
    %v225 = vcombine.low %v192, %v193
    %v226 = vcombine.low %v194, %v195
    %v228 = vunpack.c.l.s4 1983009808
    %v229 = vunpack.c.0.s8 %v228
    %v230 = vlaneseq
    %v231 = vshrl.u32 %v230, 7
    %v232 = vsub.s32 %v229, %v231
    %v233 = vrot.slane %v225, %v232
    %v235 = vunpack.c.l.s4 1983009808
    %v236 = vunpack.c.0.s8 %v235
    %v237 = vlaneseq
    %v238 = vshrl.u32 %v237, 7
    %v239 = vsub.s32 %v236, %v238
    %v240 = vrot.slane %v226, %v239
    %v241 = vcombine.low %v233, %v240
    %vm242 = vcmask 261120
    %v243 = vsel %vm242, %v224, 0
    %v245 = vsel %vm242, %v241, 0
    %247 = vmatprep.subr.mxu0 0.0
    %248 = vmatpush1.msra.mxu0 0.0
    %249 = vmatprep.subr.mxu0 0.0
    %250 = vmatpush1.msra.mxu0 0.0
    %251 = vmatprep.subr.mxu0 0.0
    %252 = vmatpush1.msra.mxu0 0.0
    %253 = vmatprep.subr.mxu0 0.0
    %254 = vmatpush1.msra.mxu0 0.0
    %255 = vmatprep.subr.mxu0 0.0
    %256 = vmatpush1.msra.mxu0 0.0
    %257 = vmatprep.subr.mxu0 0.0
    %258 = vmatpush1.msra.mxu0 0.0
    %259 = vmatprep.subr.mxu0 0.0
    %260 = vmatpush1.msra.mxu0 0.0
    %261 = vmatprep.subr.mxu0 0.0
    %262 = vmatpush1.msra.mxu0 0.0
    %263 = vmatprep.subr.mxu0 0.0
    %264 = vmatpush1.msra.mxu0 0.0
    %265 = vmatprep.subr.mxu0 0.0
    %266 = vmatpush1.msra.mxu0 0.0
    %267 = vmatprep.subr.mxu0 0.0
    %268 = vmatpush1.msra.mxu0 0.0
    %269 = vmatprep.subr.mxu0 0.0
    %270 = vmatpush1.msra.mxu0 0.0
    %271 = vmatprep.subr.mxu0 0.0
    %272 = vmatpush1.msra.mxu0 %v62
    %273 = vmatprep.subr.mxu0 0.0
    %274 = vmatpush1.msra.mxu0 %v61
    %275 = vmatprep.subr.mxu0 0.0
    %276 = vmatpush1.msra.mxu0 %v60
    %277 = vmatprep.subr.mxu0 0.0
    %278 = vmatpush1.msra.mxu0 %v59
    %279 = vmatprep.subr.mxu0 0.0
    %280 = vmatpush2.msra.mxu0 0.0
    %281 = vmatprep.subr.mxu0 0.0
    %282 = vmatpush2.msra.mxu0 0.0
    %283 = vmatprep.subr.mxu0 0.0
    %284 = vmatpush2.msra.mxu0 0.0
    %285 = vmatprep.subr.mxu0 0.0
    %286 = vmatpush2.msra.mxu0 0.0
    %287 = vmatprep.subr.mxu0 0.0
    %288 = vmatpush2.msra.mxu0 0.0
    %289 = vmatprep.subr.mxu0 0.0
    %290 = vmatpush2.msra.mxu0 0.0
    %291 = vmatprep.subr.mxu0 0.0
    %292 = vmatpush2.msra.mxu0 0.0
    %293 = vmatprep.subr.mxu0 0.0
    %294 = vmatpush2.msra.mxu0 0.0
    %295 = vmatprep.subr.mxu0 0.0
    %296 = vmatpush2.msra.mxu0 0.0
    %297 = vmatprep.subr.mxu0 0.0
    %298 = vmatpush2.msra.mxu0 0.0
    %299 = vmatprep.subr.mxu0 0.0
    %300 = vmatpush2.msra.mxu0 0.0
    %301 = vmatprep.subr.mxu0 0.0
    %302 = vmatpush2.msra.mxu0 0.0
    %303 = vmatprep.subr.mxu0 0.0
    %304 = vmatpush2.msra.mxu0 0.0
    %305 = vmatprep.subr.mxu0 0.0
    %306 = vmatpush2.msra.mxu0 0.0
    %307 = vmatprep.subr.mxu0 0.0
    %308 = vmatpush2.msra.mxu0 0.0
    %309 = vmatprep.subr.mxu0 0.0
    %310 = vmatpush2.msra.mxu0 0.0
    %311 = vmatprep.mubr.f32.mxu0 0.0
    %312 = vmatmul.mubr.f32.gmra.mxu0 %v243
    %v313 = vpop.f32.mrf.mxu0
    %v314 = vadd.f32 %v199, %v313
    %v315 = vpop.f32.mrf.mxu0
    %316 = vmatprep.mubr.f32.mxu0 0.0
    %317 = vmatmul.mubr.f32.gmra.mxu0 %v245
    %v318 = vpop.f32.mrf.mxu0
    %v319 = vadd.f32 %v199, %v318
    %v320 = vpop.f32.mrf.mxu0
    %321 = vdwg.mxu0
    %324 = vrot.lane.b32.xlu0 %v314, 96
    %v325 = vpop.permute.xlu0 %324
    %326 = vrot.lane.b32.xlu0 %v319, 96
    %v327 = vpop.permute.xlu0 %326
    %vm328 = vcmask 64512
    %v329 = vsel %vm328, %v314, 0
    %v331 = vsel %vm328, %v319, 0
    %v333 = vsel %vm328, %v325, 0
    %v335 = vsel %vm328, %v327, 0
    %337 = vmatprep.subr.mxu0 0.0
    %338 = vmatpush1.xpose.msra.mxu0 0.0
    %339 = vmatprep.subr.mxu0 0.0
    %340 = vmatpush1.xpose.msra.mxu0 0.0
    %341 = vmatprep.subr.mxu0 0.0
    %342 = vmatpush1.xpose.msra.mxu0 0.0
    %343 = vmatprep.subr.mxu0 0.0
    %344 = vmatpush1.xpose.msra.mxu0 0.0
    %345 = vmatprep.subr.mxu0 0.0
    %346 = vmatpush1.xpose.msra.mxu0 0.0
    %347 = vmatprep.subr.mxu0 0.0
    %348 = vmatpush1.xpose.msra.mxu0 0.0
    %349 = vmatprep.subr.mxu0 0.0
    %350 = vmatpush1.xpose.msra.mxu0 0.0
    %351 = vmatprep.subr.mxu0 0.0
    %352 = vmatpush1.xpose.msra.mxu0 0.0
    %353 = vmatprep.subr.mxu0 0.0
    %354 = vmatpush1.xpose.msra.mxu0 0.0
    %355 = vmatprep.subr.mxu0 0.0
    %356 = vmatpush1.xpose.msra.mxu0 0.0
    %357 = vmatprep.subr.mxu0 0.0
    %358 = vmatpush1.xpose.msra.mxu0 0.0
    %359 = vmatprep.subr.mxu0 0.0
    %360 = vmatpush1.xpose.msra.mxu0 0.0
    %361 = vmatprep.subr.mxu0 0.0
    %362 = vmatpush1.xpose.msra.mxu0 0.0
    %363 = vmatprep.subr.mxu0 0.0
    %364 = vmatpush1.xpose.msra.mxu0 0.0
    %365 = vmatprep.subr.mxu0 0.0
    %366 = vmatpush1.xpose.msra.mxu0 %v335
    %367 = vmatprep.subr.mxu0 0.0
    %368 = vmatpush1.xpose.msra.mxu0 %v333
    %369 = vmatprep.subr.mxu0 0.0
    %370 = vmatpush2.xpose.msra.mxu0 0.0
    %371 = vmatprep.subr.mxu0 0.0
    %372 = vmatpush2.xpose.msra.mxu0 0.0
    %373 = vmatprep.subr.mxu0 0.0
    %374 = vmatpush2.xpose.msra.mxu0 0.0
    %375 = vmatprep.subr.mxu0 0.0
    %376 = vmatpush2.xpose.msra.mxu0 0.0
    %377 = vmatprep.subr.mxu0 0.0
    %378 = vmatpush2.xpose.msra.mxu0 0.0
    %379 = vmatprep.subr.mxu0 0.0
    %380 = vmatpush2.xpose.msra.mxu0 0.0
    %381 = vmatprep.subr.mxu0 0.0
    %382 = vmatpush2.xpose.msra.mxu0 0.0
    %383 = vmatprep.subr.mxu0 0.0
    %384 = vmatpush2.xpose.msra.mxu0 0.0
    %385 = vmatprep.subr.mxu0 0.0
    %386 = vmatpush2.xpose.msra.mxu0 0.0
    %387 = vmatprep.subr.mxu0 0.0
    %388 = vmatpush2.xpose.msra.mxu0 0.0
    %389 = vmatprep.subr.mxu0 0.0
    %390 = vmatpush2.xpose.msra.mxu0 0.0
    %391 = vmatprep.subr.mxu0 0.0
    %392 = vmatpush2.xpose.msra.mxu0 0.0
    %393 = vmatprep.subr.mxu0 0.0
    %394 = vmatpush2.xpose.msra.mxu0 0.0
    %395 = vmatprep.subr.mxu0 0.0
    %396 = vmatpush2.xpose.msra.mxu0 0.0
    %397 = vmatprep.subr.mxu0 0.0
    %398 = vmatpush2.xpose.msra.mxu0 0.0
    %399 = vmatprep.subr.mxu0 0.0
    %400 = vmatpush2.xpose.msra.mxu0 0.0
    %401 = vmatprep.mubr.f32.mxu0 0.0
    %402 = vmatmul.mubr.f32.gmra.mxu0 %v329
    %v403 = vpop.f32.mrf.mxu0
    %v404 = vadd.f32 0.0, %v403
    %v405 = vpop.f32.mrf.mxu0
    %406 = vmatprep.mubr.f32.mxu0 0.0
    %407 = vmatmul.mubr.f32.gmra.mxu0 %v331
    %v408 = vpop.f32.mrf.mxu0
    %v409 = vadd.f32 0.0, %v408
    %v410 = vpop.f32.mrf.mxu0
    %411 = vdwg.mxu0
    %v412 = vmul.f32 %v404, 0.35355338
    %v413 = vmul.f32 %v409, 0.35355338
    %v414 = vadd.f32 %v412, %v122
    %v415 = vadd.f32 %v413, %v123
    %vm416 = vcmask 130048
    %v417 = vsel %vm416, %v414, -inf
    %418 = vmax.xlane.f32.xlu0 %v417
    %v419 = vpop.xlane.xlu0 %418
    %v420 = vsel %vm416, %v415, -inf
    %421 = vmax.xlane.f32.xlu0 %v420
    %v422 = vpop.xlane.xlu0 %421
    %v423 = vsub.f32 %v414, %v419
    %v424 = vsub.f32 %v415, %v422
    %v425 = vmul.f32 %v423, 1.442695
    %v426 = vpow.pop %v425
    %v427 = vmul.f32 %v424, 1.442695
    %v428 = vpow.pop %v427
    %v429 = vsel %vm416, %v426, 0.0
    %430 = vadd.xlane.f32.xlu0 %v429
    %v431 = vpop.xlane.xlu0 %430
    %v432 = vsel %vm416, %v428, 0.0
    %433 = vadd.xlane.f32.xlu0 %v432
    %v434 = vpop.xlane.xlu0 %433
    %v435 = vrcp.pop %v431
    %v436 = vmul.f32 %v426, %v435
    %v437 = vrcp.pop %v434
    %v438 = vmul.f32 %v428, %v437
    %439 = vrot.lane.b32.xlu0 %v314, 64
    %v440 = vpop.permute.xlu0 %439
    %441 = vrot.lane.b32.xlu0 %v319, 64
    %v442 = vpop.permute.xlu0 %441
    %v446 = vsel %vm416, %v436, 0
    %v449 = vsel %vm416, %v438, 0
    %451 = vmatprep.subr.mxu0 0.0
    %452 = vmatpush1.msra.mxu0 0.0
    %453 = vmatprep.subr.mxu0 0.0
    %454 = vmatpush1.msra.mxu0 0.0
    %455 = vmatprep.subr.mxu0 0.0
    %456 = vmatpush1.msra.mxu0 0.0
    %457 = vmatprep.subr.mxu0 0.0
    %458 = vmatpush1.msra.mxu0 0.0
    %459 = vmatprep.subr.mxu0 0.0
    %460 = vmatpush1.msra.mxu0 0.0
    %461 = vmatprep.subr.mxu0 0.0
    %462 = vmatpush1.msra.mxu0 0.0
    %463 = vmatprep.subr.mxu0 0.0
    %464 = vmatpush1.msra.mxu0 0.0
    %465 = vmatprep.subr.mxu0 0.0
    %466 = vmatpush1.msra.mxu0 0.0
    %467 = vmatprep.subr.mxu0 0.0
    %468 = vmatpush1.msra.mxu0 0.0
    %469 = vmatprep.subr.mxu0 0.0
    %470 = vmatpush1.msra.mxu0 0.0
    %471 = vmatprep.subr.mxu0 0.0
    %472 = vmatpush1.msra.mxu0 0.0
    %473 = vmatprep.subr.mxu0 0.0
    %474 = vmatpush1.msra.mxu0 0.0
    %475 = vmatprep.subr.mxu0 0.0
    %476 = vmatpush1.msra.mxu0 0.0
    %477 = vmatprep.subr.mxu0 0.0
    %478 = vmatpush1.msra.mxu0 0.0
    %479 = vmatprep.subr.mxu0 0.0
    %480 = vmatpush1.msra.mxu0 %v442
    %481 = vmatprep.subr.mxu0 0.0
    %482 = vmatpush1.msra.mxu0 %v440
    %483 = vmatprep.subr.mxu0 0.0
    %484 = vmatpush2.msra.mxu0 0.0
    %485 = vmatprep.subr.mxu0 0.0
    %486 = vmatpush2.msra.mxu0 0.0
    %487 = vmatprep.subr.mxu0 0.0
    %488 = vmatpush2.msra.mxu0 0.0
    %489 = vmatprep.subr.mxu0 0.0
    %490 = vmatpush2.msra.mxu0 0.0
    %491 = vmatprep.subr.mxu0 0.0
    %492 = vmatpush2.msra.mxu0 0.0
    %493 = vmatprep.subr.mxu0 0.0
    %494 = vmatpush2.msra.mxu0 0.0
    %495 = vmatprep.subr.mxu0 0.0
    %496 = vmatpush2.msra.mxu0 0.0
    %497 = vmatprep.subr.mxu0 0.0
    %498 = vmatpush2.msra.mxu0 0.0
    %499 = vmatprep.subr.mxu0 0.0
    %500 = vmatpush2.msra.mxu0 0.0
    %501 = vmatprep.subr.mxu0 0.0
    %502 = vmatpush2.msra.mxu0 0.0
    %503 = vmatprep.subr.mxu0 0.0
    %504 = vmatpush2.msra.mxu0 0.0
    %505 = vmatprep.subr.mxu0 0.0
    %506 = vmatpush2.msra.mxu0 0.0
    %507 = vmatprep.subr.mxu0 0.0
    %508 = vmatpush2.msra.mxu0 0.0
    %509 = vmatprep.subr.mxu0 0.0
    %510 = vmatpush2.msra.mxu0 0.0
    %511 = vmatprep.subr.mxu0 0.0
    %512 = vmatpush2.msra.mxu0 0.0
    %513 = vmatprep.subr.mxu0 0.0
    %514 = vmatpush2.msra.mxu0 0.0
    %515 = vmatprep.mubr.f32.mxu0 0.0
    %516 = vmatmul.mubr.f32.gmra.mxu0 %v446
    %v517 = vpop.f32.mrf.mxu0
    %v518 = vadd.f32 0.0, %v517
    %v519 = vpop.f32.mrf.mxu0
    %520 = vmatprep.mubr.f32.mxu0 0.0
    %521 = vmatmul.mubr.f32.gmra.mxu0 %v449
    %v522 = vpop.f32.mrf.mxu0
    %v523 = vadd.f32 0.0, %v522
    %v524 = vpop.f32.mrf.mxu0
    %525 = vdwg.mxu0
    %526 = vrot.lane.b32.xlu0 %v314, 120
    %v527 = vpop.permute.xlu0 %526
    %528 = vrot.lane.b32.xlu0 %v319, 120
    %v529 = vpop.permute.xlu0 %528
    %530 = vrot.lane.b32.xlu0 %v314, 88
    %v531 = vpop.permute.xlu0 %530
    %532 = vrot.lane.b32.xlu0 %v319, 88
    %v533 = vpop.permute.xlu0 %532
    %v534 = vsel %vm328, %v527, 0
    %v536 = vsel %vm328, %v529, 0
    %v538 = vsel %vm328, %v531, 0
    %v540 = vsel %vm328, %v533, 0
    %542 = vmatprep.subr.mxu0 0.0
    %543 = vmatpush1.xpose.msra.mxu0 0.0
    %544 = vmatprep.subr.mxu0 0.0
    %545 = vmatpush1.xpose.msra.mxu0 0.0
    %546 = vmatprep.subr.mxu0 0.0
    %547 = vmatpush1.xpose.msra.mxu0 0.0
    %548 = vmatprep.subr.mxu0 0.0
    %549 = vmatpush1.xpose.msra.mxu0 0.0
    %550 = vmatprep.subr.mxu0 0.0
    %551 = vmatpush1.xpose.msra.mxu0 0.0
    %552 = vmatprep.subr.mxu0 0.0
    %553 = vmatpush1.xpose.msra.mxu0 0.0
    %554 = vmatprep.subr.mxu0 0.0
    %555 = vmatpush1.xpose.msra.mxu0 0.0
    %556 = vmatprep.subr.mxu0 0.0
    %557 = vmatpush1.xpose.msra.mxu0 0.0
    %558 = vmatprep.subr.mxu0 0.0
    %559 = vmatpush1.xpose.msra.mxu0 0.0
    %560 = vmatprep.subr.mxu0 0.0
    %561 = vmatpush1.xpose.msra.mxu0 0.0
    %562 = vmatprep.subr.mxu0 0.0
    %563 = vmatpush1.xpose.msra.mxu0 0.0
    %564 = vmatprep.subr.mxu0 0.0
    %565 = vmatpush1.xpose.msra.mxu0 0.0
    %566 = vmatprep.subr.mxu0 0.0
    %567 = vmatpush1.xpose.msra.mxu0 0.0
    %568 = vmatprep.subr.mxu0 0.0
    %569 = vmatpush1.xpose.msra.mxu0 0.0
    %570 = vmatprep.subr.mxu0 0.0
    %571 = vmatpush1.xpose.msra.mxu0 %v540
    %572 = vmatprep.subr.mxu0 0.0
    %573 = vmatpush1.xpose.msra.mxu0 %v538
    %574 = vmatprep.subr.mxu0 0.0
    %575 = vmatpush2.xpose.msra.mxu0 0.0
    %576 = vmatprep.subr.mxu0 0.0
    %577 = vmatpush2.xpose.msra.mxu0 0.0
    %578 = vmatprep.subr.mxu0 0.0
    %579 = vmatpush2.xpose.msra.mxu0 0.0
    %580 = vmatprep.subr.mxu0 0.0
    %581 = vmatpush2.xpose.msra.mxu0 0.0
    %582 = vmatprep.subr.mxu0 0.0
    %583 = vmatpush2.xpose.msra.mxu0 0.0
    %584 = vmatprep.subr.mxu0 0.0
    %585 = vmatpush2.xpose.msra.mxu0 0.0
    %586 = vmatprep.subr.mxu0 0.0
    %587 = vmatpush2.xpose.msra.mxu0 0.0
    %588 = vmatprep.subr.mxu0 0.0
    %589 = vmatpush2.xpose.msra.mxu0 0.0
    %590 = vmatprep.subr.mxu0 0.0
    %591 = vmatpush2.xpose.msra.mxu0 0.0
    %592 = vmatprep.subr.mxu0 0.0
    %593 = vmatpush2.xpose.msra.mxu0 0.0
    %594 = vmatprep.subr.mxu0 0.0
    %595 = vmatpush2.xpose.msra.mxu0 0.0
    %596 = vmatprep.subr.mxu0 0.0
    %597 = vmatpush2.xpose.msra.mxu0 0.0
    %598 = vmatprep.subr.mxu0 0.0
    %599 = vmatpush2.xpose.msra.mxu0 0.0
    %600 = vmatprep.subr.mxu0 0.0
    %601 = vmatpush2.xpose.msra.mxu0 0.0
    %602 = vmatprep.subr.mxu0 0.0
    %603 = vmatpush2.xpose.msra.mxu0 0.0
    %604 = vmatprep.subr.mxu0 0.0
    %605 = vmatpush2.xpose.msra.mxu0 0.0
    %606 = vmatprep.mubr.f32.mxu0 0.0
    %607 = vmatmul.mubr.f32.gmra.mxu0 %v534
    %v608 = vpop.f32.mrf.mxu0
    %v609 = vadd.f32 0.0, %v608
    %v610 = vpop.f32.mrf.mxu0
    %611 = vmatprep.mubr.f32.mxu0 0.0
    %612 = vmatmul.mubr.f32.gmra.mxu0 %v536
    %v613 = vpop.f32.mrf.mxu0
    %v614 = vadd.f32 0.0, %v613
    %v615 = vpop.f32.mrf.mxu0
    %616 = vdwg.mxu0
    %v617 = vmul.f32 %v609, 0.35355338
    %v618 = vmul.f32 %v614, 0.35355338
    %v619 = vadd.f32 %v617, %v122
    %v620 = vadd.f32 %v618, %v123
    %v621 = vsel %vm416, %v619, -inf
    %622 = vmax.xlane.f32.xlu0 %v621
    %v623 = vpop.xlane.xlu0 %622
    %v624 = vsel %vm416, %v620, -inf
    %625 = vmax.xlane.f32.xlu0 %v624
    %v626 = vpop.xlane.xlu0 %625
    %v627 = vsub.f32 %v619, %v623
    %v628 = vsub.f32 %v620, %v626
    %v629 = vmul.f32 %v627, 1.442695
    %v630 = vpow.pop %v629
    %v631 = vmul.f32 %v628, 1.442695
    %v632 = vpow.pop %v631
    %v633 = vsel %vm416, %v630, 0.0
    %634 = vadd.xlane.f32.xlu0 %v633
    %v635 = vpop.xlane.xlu0 %634
    %v636 = vsel %vm416, %v632, 0.0
    %637 = vadd.xlane.f32.xlu0 %v636
    %v638 = vpop.xlane.xlu0 %637
    %v639 = vrcp.pop %v635
    %v640 = vmul.f32 %v630, %v639
    %v641 = vrcp.pop %v638
    %v642 = vmul.f32 %v632, %v641
    %643 = vrot.lane.b32.xlu0 %v314, 56
    %v644 = vpop.permute.xlu0 %643
    %645 = vrot.lane.b32.xlu0 %v319, 56
    %v646 = vpop.permute.xlu0 %645
    %v650 = vsel %vm416, %v640, 0
    %v653 = vsel %vm416, %v642, 0
    %655 = vmatprep.subr.mxu0 0.0
    %656 = vmatpush1.msra.mxu0 0.0
    %657 = vmatprep.subr.mxu0 0.0
    %658 = vmatpush1.msra.mxu0 0.0
    %659 = vmatprep.subr.mxu0 0.0
    %660 = vmatpush1.msra.mxu0 0.0
    %661 = vmatprep.subr.mxu0 0.0
    %662 = vmatpush1.msra.mxu0 0.0
    %663 = vmatprep.subr.mxu0 0.0
    %664 = vmatpush1.msra.mxu0 0.0
    %665 = vmatprep.subr.mxu0 0.0
    %666 = vmatpush1.msra.mxu0 0.0
    %667 = vmatprep.subr.mxu0 0.0
    %668 = vmatpush1.msra.mxu0 0.0
    %669 = vmatprep.subr.mxu0 0.0
    %670 = vmatpush1.msra.mxu0 0.0
    %671 = vmatprep.subr.mxu0 0.0
    %672 = vmatpush1.msra.mxu0 0.0
    %673 = vmatprep.subr.mxu0 0.0
    %674 = vmatpush1.msra.mxu0 0.0
    %675 = vmatprep.subr.mxu0 0.0
    %676 = vmatpush1.msra.mxu0 0.0
    %677 = vmatprep.subr.mxu0 0.0
    %678 = vmatpush1.msra.mxu0 0.0
    %679 = vmatprep.subr.mxu0 0.0
    %680 = vmatpush1.msra.mxu0 0.0
    %681 = vmatprep.subr.mxu0 0.0
    %682 = vmatpush1.msra.mxu0 0.0
    %683 = vmatprep.subr.mxu0 0.0
    %684 = vmatpush1.msra.mxu0 %v646
    %685 = vmatprep.subr.mxu0 0.0
    %686 = vmatpush1.msra.mxu0 %v644
    %687 = vmatprep.subr.mxu0 0.0
    %688 = vmatpush2.msra.mxu0 0.0
    %689 = vmatprep.subr.mxu0 0.0
    %690 = vmatpush2.msra.mxu0 0.0
    %691 = vmatprep.subr.mxu0 0.0
    %692 = vmatpush2.msra.mxu0 0.0
    %693 = vmatprep.subr.mxu0 0.0
    %694 = vmatpush2.msra.mxu0 0.0
    %695 = vmatprep.subr.mxu0 0.0
    %696 = vmatpush2.msra.mxu0 0.0
    %697 = vmatprep.subr.mxu0 0.0
    %698 = vmatpush2.msra.mxu0 0.0
    %699 = vmatprep.subr.mxu0 0.0
    %700 = vmatpush2.msra.mxu0 0.0
    %701 = vmatprep.subr.mxu0 0.0
    %702 = vmatpush2.msra.mxu0 0.0
    %703 = vmatprep.subr.mxu0 0.0
    %704 = vmatpush2.msra.mxu0 0.0
    %705 = vmatprep.subr.mxu0 0.0
    %706 = vmatpush2.msra.mxu0 0.0
    %707 = vmatprep.subr.mxu0 0.0
    %708 = vmatpush2.msra.mxu0 0.0
    %709 = vmatprep.subr.mxu0 0.0
    %710 = vmatpush2.msra.mxu0 0.0
    %711 = vmatprep.subr.mxu0 0.0
    %712 = vmatpush2.msra.mxu0 0.0
    %713 = vmatprep.subr.mxu0 0.0
    %714 = vmatpush2.msra.mxu0 0.0
    %715 = vmatprep.subr.mxu0 0.0
    %716 = vmatpush2.msra.mxu0 0.0
    %717 = vmatprep.subr.mxu0 0.0
    %718 = vmatpush2.msra.mxu0 0.0
    %719 = vmatprep.mubr.f32.mxu0 0.0
    %720 = vmatmul.mubr.f32.gmra.mxu0 %v650
    %v721 = vpop.f32.mrf.mxu0
    %v722 = vadd.f32 0.0, %v721
    %v723 = vpop.f32.mrf.mxu0
    %724 = vmatprep.mubr.f32.mxu0 0.0
    %725 = vmatmul.mubr.f32.gmra.mxu0 %v653
    %v726 = vpop.f32.mrf.mxu0
    %v727 = vadd.f32 0.0, %v726
    %v728 = vpop.f32.mrf.mxu0
    %729 = vdwg.mxu0
    %730 = vrot.lane.b32.xlu0 %v314, 112
    %v731 = vpop.permute.xlu0 %730
    %732 = vrot.lane.b32.xlu0 %v319, 112
    %v733 = vpop.permute.xlu0 %732
    %734 = vrot.lane.b32.xlu0 %v314, 80
    %v735 = vpop.permute.xlu0 %734
    %736 = vrot.lane.b32.xlu0 %v319, 80
    %v737 = vpop.permute.xlu0 %736
    %v738 = vsel %vm328, %v731, 0
    %v740 = vsel %vm328, %v733, 0
    %v742 = vsel %vm328, %v735, 0
    %v744 = vsel %vm328, %v737, 0
    %746 = vmatprep.subr.mxu0 0.0
    %747 = vmatpush1.xpose.msra.mxu0 0.0
    %748 = vmatprep.subr.mxu0 0.0
    %749 = vmatpush1.xpose.msra.mxu0 0.0
    %750 = vmatprep.subr.mxu0 0.0
    %751 = vmatpush1.xpose.msra.mxu0 0.0
    %752 = vmatprep.subr.mxu0 0.0
    %753 = vmatpush1.xpose.msra.mxu0 0.0
    %754 = vmatprep.subr.mxu0 0.0
    %755 = vmatpush1.xpose.msra.mxu0 0.0
    %756 = vmatprep.subr.mxu0 0.0
    %757 = vmatpush1.xpose.msra.mxu0 0.0
    %758 = vmatprep.subr.mxu0 0.0
    %759 = vmatpush1.xpose.msra.mxu0 0.0
    %760 = vmatprep.subr.mxu0 0.0
    %761 = vmatpush1.xpose.msra.mxu0 0.0
    %762 = vmatprep.subr.mxu0 0.0
    %763 = vmatpush1.xpose.msra.mxu0 0.0
    %764 = vmatprep.subr.mxu0 0.0
    %765 = vmatpush1.xpose.msra.mxu0 0.0
    %766 = vmatprep.subr.mxu0 0.0
    %767 = vmatpush1.xpose.msra.mxu0 0.0
    %768 = vmatprep.subr.mxu0 0.0
    %769 = vmatpush1.xpose.msra.mxu0 0.0
    %770 = vmatprep.subr.mxu0 0.0
    %771 = vmatpush1.xpose.msra.mxu0 0.0
    %772 = vmatprep.subr.mxu0 0.0
    %773 = vmatpush1.xpose.msra.mxu0 0.0
    %774 = vmatprep.subr.mxu0 0.0
    %775 = vmatpush1.xpose.msra.mxu0 %v744
    %776 = vmatprep.subr.mxu0 0.0
    %777 = vmatpush1.xpose.msra.mxu0 %v742
    %778 = vmatprep.subr.mxu0 0.0
    %779 = vmatpush2.xpose.msra.mxu0 0.0
    %780 = vmatprep.subr.mxu0 0.0
    %781 = vmatpush2.xpose.msra.mxu0 0.0
    %782 = vmatprep.subr.mxu0 0.0
    %783 = vmatpush2.xpose.msra.mxu0 0.0
    %784 = vmatprep.subr.mxu0 0.0
    %785 = vmatpush2.xpose.msra.mxu0 0.0
    %786 = vmatprep.subr.mxu0 0.0
    %787 = vmatpush2.xpose.msra.mxu0 0.0
    %788 = vmatprep.subr.mxu0 0.0
    %789 = vmatpush2.xpose.msra.mxu0 0.0
    %790 = vmatprep.subr.mxu0 0.0
    %791 = vmatpush2.xpose.msra.mxu0 0.0
    %792 = vmatprep.subr.mxu0 0.0
    %793 = vmatpush2.xpose.msra.mxu0 0.0
    %794 = vmatprep.subr.mxu0 0.0
    %795 = vmatpush2.xpose.msra.mxu0 0.0
    %796 = vmatprep.subr.mxu0 0.0
    %797 = vmatpush2.xpose.msra.mxu0 0.0
    %798 = vmatprep.subr.mxu0 0.0
    %799 = vmatpush2.xpose.msra.mxu0 0.0
    %800 = vmatprep.subr.mxu0 0.0
    %801 = vmatpush2.xpose.msra.mxu0 0.0
    %802 = vmatprep.subr.mxu0 0.0
    %803 = vmatpush2.xpose.msra.mxu0 0.0
    %804 = vmatprep.subr.mxu0 0.0
    %805 = vmatpush2.xpose.msra.mxu0 0.0
    %806 = vmatprep.subr.mxu0 0.0
    %807 = vmatpush2.xpose.msra.mxu0 0.0
    %808 = vmatprep.subr.mxu0 0.0
    %809 = vmatpush2.xpose.msra.mxu0 0.0
    %810 = vmatprep.mubr.f32.mxu0 0.0
    %811 = vmatmul.mubr.f32.gmra.mxu0 %v738
    %v812 = vpop.f32.mrf.mxu0
    %v813 = vadd.f32 0.0, %v812
    %v814 = vpop.f32.mrf.mxu0
    %815 = vmatprep.mubr.f32.mxu0 0.0
    %816 = vmatmul.mubr.f32.gmra.mxu0 %v740
    %v817 = vpop.f32.mrf.mxu0
    %v818 = vadd.f32 0.0, %v817
    %v819 = vpop.f32.mrf.mxu0
    %820 = vdwg.mxu0
    %v821 = vmul.f32 %v813, 0.35355338
    %v822 = vmul.f32 %v818, 0.35355338
    %v823 = vadd.f32 %v821, %v122
    %v824 = vadd.f32 %v822, %v123
    %v825 = vsel %vm416, %v823, -inf
    %826 = vmax.xlane.f32.xlu0 %v825
    %v827 = vpop.xlane.xlu0 %826
    %v828 = vsel %vm416, %v824, -inf
    %829 = vmax.xlane.f32.xlu0 %v828
    %v830 = vpop.xlane.xlu0 %829
    %v831 = vsub.f32 %v823, %v827
    %v832 = vsub.f32 %v824, %v830
    %v833 = vmul.f32 %v831, 1.442695
    %v834 = vpow.pop %v833
    %v835 = vmul.f32 %v832, 1.442695
    %v836 = vpow.pop %v835
    %v837 = vsel %vm416, %v834, 0.0
    %838 = vadd.xlane.f32.xlu0 %v837
    %v839 = vpop.xlane.xlu0 %838
    %v840 = vsel %vm416, %v836, 0.0
    %841 = vadd.xlane.f32.xlu0 %v840
    %v842 = vpop.xlane.xlu0 %841
    %v843 = vrcp.pop %v839
    %v844 = vmul.f32 %v834, %v843
    %v845 = vrcp.pop %v842
    %v846 = vmul.f32 %v836, %v845
    %847 = vrot.lane.b32.xlu0 %v314, 48
    %v848 = vpop.permute.xlu0 %847
    %849 = vrot.lane.b32.xlu0 %v319, 48
    %v850 = vpop.permute.xlu0 %849
    %v854 = vsel %vm416, %v844, 0
    %v857 = vsel %vm416, %v846, 0
    %859 = vmatprep.subr.mxu0 0.0
    %860 = vmatpush1.msra.mxu0 0.0
    %861 = vmatprep.subr.mxu0 0.0
    %862 = vmatpush1.msra.mxu0 0.0
    %863 = vmatprep.subr.mxu0 0.0
    %864 = vmatpush1.msra.mxu0 0.0
    %865 = vmatprep.subr.mxu0 0.0
    %866 = vmatpush1.msra.mxu0 0.0
    %867 = vmatprep.subr.mxu0 0.0
    %868 = vmatpush1.msra.mxu0 0.0
    %869 = vmatprep.subr.mxu0 0.0
    %870 = vmatpush1.msra.mxu0 0.0
    %871 = vmatprep.subr.mxu0 0.0
    %872 = vmatpush1.msra.mxu0 0.0
    %873 = vmatprep.subr.mxu0 0.0
    %874 = vmatpush1.msra.mxu0 0.0
    %875 = vmatprep.subr.mxu0 0.0
    %876 = vmatpush1.msra.mxu0 0.0
    %877 = vmatprep.subr.mxu0 0.0
    %878 = vmatpush1.msra.mxu0 0.0
    %879 = vmatprep.subr.mxu0 0.0
    %880 = vmatpush1.msra.mxu0 0.0
    %881 = vmatprep.subr.mxu0 0.0
    %882 = vmatpush1.msra.mxu0 0.0
    %883 = vmatprep.subr.mxu0 0.0
    %884 = vmatpush1.msra.mxu0 0.0
    %885 = vmatprep.subr.mxu0 0.0
    %886 = vmatpush1.msra.mxu0 0.0
    %887 = vmatprep.subr.mxu0 0.0
    %888 = vmatpush1.msra.mxu0 %v850
    %889 = vmatprep.subr.mxu0 0.0
    %890 = vmatpush1.msra.mxu0 %v848
    %891 = vmatprep.subr.mxu0 0.0
    %892 = vmatpush2.msra.mxu0 0.0
    %893 = vmatprep.subr.mxu0 0.0
    %894 = vmatpush2.msra.mxu0 0.0
    %895 = vmatprep.subr.mxu0 0.0
    %896 = vmatpush2.msra.mxu0 0.0
    %897 = vmatprep.subr.mxu0 0.0
    %898 = vmatpush2.msra.mxu0 0.0
    %899 = vmatprep.subr.mxu0 0.0
    %900 = vmatpush2.msra.mxu0 0.0
    %901 = vmatprep.subr.mxu0 0.0
    %902 = vmatpush2.msra.mxu0 0.0
    %903 = vmatprep.subr.mxu0 0.0
    %904 = vmatpush2.msra.mxu0 0.0
    %905 = vmatprep.subr.mxu0 0.0
    %906 = vmatpush2.msra.mxu0 0.0
    %907 = vmatprep.subr.mxu0 0.0
    %908 = vmatpush2.msra.mxu0 0.0
    %909 = vmatprep.subr.mxu0 0.0
    %910 = vmatpush2.msra.mxu0 0.0
    %911 = vmatprep.subr.mxu0 0.0
    %912 = vmatpush2.msra.mxu0 0.0
    %913 = vmatprep.subr.mxu0 0.0
    %914 = vmatpush2.msra.mxu0 0.0
    %915 = vmatprep.subr.mxu0 0.0
    %916 = vmatpush2.msra.mxu0 0.0
    %917 = vmatprep.subr.mxu0 0.0
    %918 = vmatpush2.msra.mxu0 0.0
    %919 = vmatprep.subr.mxu0 0.0
    %920 = vmatpush2.msra.mxu0 0.0
    %921 = vmatprep.subr.mxu0 0.0
    %922 = vmatpush2.msra.mxu0 0.0
    %923 = vmatprep.mubr.f32.mxu0 0.0
    %924 = vmatmul.mubr.f32.gmra.mxu0 %v854
    %v925 = vpop.f32.mrf.mxu0
    %v926 = vadd.f32 0.0, %v925
    %v927 = vpop.f32.mrf.mxu0
    %928 = vmatprep.mubr.f32.mxu0 0.0
    %929 = vmatmul.mubr.f32.gmra.mxu0 %v857
    %v930 = vpop.f32.mrf.mxu0
    %v931 = vadd.f32 0.0, %v930
    %v932 = vpop.f32.mrf.mxu0
    %933 = vdwg.mxu0
    %934 = vrot.lane.b32.xlu0 %v314, 104
    %v935 = vpop.permute.xlu0 %934
    %936 = vrot.lane.b32.xlu0 %v319, 104
    %v937 = vpop.permute.xlu0 %936
    %938 = vrot.lane.b32.xlu0 %v314, 72
    %v939 = vpop.permute.xlu0 %938
    %940 = vrot.lane.b32.xlu0 %v319, 72
    %v941 = vpop.permute.xlu0 %940
    %v942 = vsel %vm328, %v935, 0
    %v944 = vsel %vm328, %v937, 0
    %v946 = vsel %vm328, %v939, 0
    %v948 = vsel %vm328, %v941, 0
    %950 = vmatprep.subr.mxu0 0.0
    %951 = vmatpush1.xpose.msra.mxu0 0.0
    %952 = vmatprep.subr.mxu0 0.0
    %953 = vmatpush1.xpose.msra.mxu0 0.0
    %954 = vmatprep.subr.mxu0 0.0
    %955 = vmatpush1.xpose.msra.mxu0 0.0
    %956 = vmatprep.subr.mxu0 0.0
    %957 = vmatpush1.xpose.msra.mxu0 0.0
    %958 = vmatprep.subr.mxu0 0.0
    %959 = vmatpush1.xpose.msra.mxu0 0.0
    %960 = vmatprep.subr.mxu0 0.0
    %961 = vmatpush1.xpose.msra.mxu0 0.0
    %962 = vmatprep.subr.mxu0 0.0
    %963 = vmatpush1.xpose.msra.mxu0 0.0
    %964 = vmatprep.subr.mxu0 0.0
    %965 = vmatpush1.xpose.msra.mxu0 0.0
    %966 = vmatprep.subr.mxu0 0.0
    %967 = vmatpush1.xpose.msra.mxu0 0.0
    %968 = vmatprep.subr.mxu0 0.0
    %969 = vmatpush1.xpose.msra.mxu0 0.0
    %970 = vmatprep.subr.mxu0 0.0
    %971 = vmatpush1.xpose.msra.mxu0 0.0
    %972 = vmatprep.subr.mxu0 0.0
    %973 = vmatpush1.xpose.msra.mxu0 0.0
    %974 = vmatprep.subr.mxu0 0.0
    %975 = vmatpush1.xpose.msra.mxu0 0.0
    %976 = vmatprep.subr.mxu0 0.0
    %977 = vmatpush1.xpose.msra.mxu0 0.0
    %978 = vmatprep.subr.mxu0 0.0
    %979 = vmatpush1.xpose.msra.mxu0 %v948
    %980 = vmatprep.subr.mxu0 0.0
    %981 = vmatpush1.xpose.msra.mxu0 %v946
    %982 = vmatprep.subr.mxu0 0.0
    %983 = vmatpush2.xpose.msra.mxu0 0.0
    %984 = vmatprep.subr.mxu0 0.0
    %985 = vmatpush2.xpose.msra.mxu0 0.0
    %986 = vmatprep.subr.mxu0 0.0
    %987 = vmatpush2.xpose.msra.mxu0 0.0
    %988 = vmatprep.subr.mxu0 0.0
    %989 = vmatpush2.xpose.msra.mxu0 0.0
    %990 = vmatprep.subr.mxu0 0.0
    %991 = vmatpush2.xpose.msra.mxu0 0.0
    %992 = vmatprep.subr.mxu0 0.0
    %993 = vmatpush2.xpose.msra.mxu0 0.0
    %994 = vmatprep.subr.mxu0 0.0
    %995 = vmatpush2.xpose.msra.mxu0 0.0
    %996 = vmatprep.subr.mxu0 0.0
    %997 = vmatpush2.xpose.msra.mxu0 0.0
    %998 = vmatprep.subr.mxu0 0.0
    %999 = vmatpush2.xpose.msra.mxu0 0.0
    %1000 = vmatprep.subr.mxu0 0.0
    %1001 = vmatpush2.xpose.msra.mxu0 0.0
    %1002 = vmatprep.subr.mxu0 0.0
    %1003 = vmatpush2.xpose.msra.mxu0 0.0
    %1004 = vmatprep.subr.mxu0 0.0
    %1005 = vmatpush2.xpose.msra.mxu0 0.0
    %1006 = vmatprep.subr.mxu0 0.0
    %1007 = vmatpush2.xpose.msra.mxu0 0.0
    %1008 = vmatprep.subr.mxu0 0.0
    %1009 = vmatpush2.xpose.msra.mxu0 0.0
    %1010 = vmatprep.subr.mxu0 0.0
    %1011 = vmatpush2.xpose.msra.mxu0 0.0
    %1012 = vmatprep.subr.mxu0 0.0
    %1013 = vmatpush2.xpose.msra.mxu0 0.0
    %1014 = vmatprep.mubr.f32.mxu0 0.0
    %1015 = vmatmul.mubr.f32.gmra.mxu0 %v942
    %v1016 = vpop.f32.mrf.mxu0
    %v1017 = vadd.f32 0.0, %v1016
    %v1018 = vpop.f32.mrf.mxu0
    %1019 = vmatprep.mubr.f32.mxu0 0.0
    %1020 = vmatmul.mubr.f32.gmra.mxu0 %v944
    %v1021 = vpop.f32.mrf.mxu0
    %v1022 = vadd.f32 0.0, %v1021
    %v1023 = vpop.f32.mrf.mxu0
    %1024 = vdwg.mxu0
    %v1025 = vmul.f32 %v1017, 0.35355338
    %v1026 = vmul.f32 %v1022, 0.35355338
    %v1027 = vadd.f32 %v1025, %v122
    %v1028 = vadd.f32 %v1026, %v123
    %v1029 = vsel %vm416, %v1027, -inf
    %1030 = vmax.xlane.f32.xlu0 %v1029
    %v1031 = vpop.xlane.xlu0 %1030
    %v1032 = vsel %vm416, %v1028, -inf
    %1033 = vmax.xlane.f32.xlu0 %v1032
    %v1034 = vpop.xlane.xlu0 %1033
    %v1035 = vsub.f32 %v1027, %v1031
    %v1036 = vsub.f32 %v1028, %v1034
    %v1037 = vmul.f32 %v1035, 1.442695
    %v1038 = vpow.pop %v1037
    %v1039 = vmul.f32 %v1036, 1.442695
    %v1040 = vpow.pop %v1039
    %v1041 = vsel %vm416, %v1038, 0.0
    %1042 = vadd.xlane.f32.xlu0 %v1041
    %v1043 = vpop.xlane.xlu0 %1042
    %v1044 = vsel %vm416, %v1040, 0.0
    %1045 = vadd.xlane.f32.xlu0 %v1044
    %v1046 = vpop.xlane.xlu0 %1045
    %v1047 = vrcp.pop %v1043
    %v1048 = vmul.f32 %v1038, %v1047
    %v1049 = vrcp.pop %v1046
    %v1050 = vmul.f32 %v1040, %v1049
    %1051 = vrot.lane.b32.xlu0 %v314, 40
    %v1052 = vpop.permute.xlu0 %1051
    %1053 = vrot.lane.b32.xlu0 %v319, 40
    %v1054 = vpop.permute.xlu0 %1053
    %v1058 = vsel %vm416, %v1048, 0
    %v1061 = vsel %vm416, %v1050, 0
    %1063 = vmatprep.subr.mxu0 0.0
    %1064 = vmatpush1.msra.mxu0 0.0
    %1065 = vmatprep.subr.mxu0 0.0
    %1066 = vmatpush1.msra.mxu0 0.0
    %1067 = vmatprep.subr.mxu0 0.0
    %1068 = vmatpush1.msra.mxu0 0.0
    %1069 = vmatprep.subr.mxu0 0.0
    %1070 = vmatpush1.msra.mxu0 0.0
    %1071 = vmatprep.subr.mxu0 0.0
    %1072 = vmatpush1.msra.mxu0 0.0
    %1073 = vmatprep.subr.mxu0 0.0
    %1074 = vmatpush1.msra.mxu0 0.0
    %1075 = vmatprep.subr.mxu0 0.0
    %1076 = vmatpush1.msra.mxu0 0.0
    %1077 = vmatprep.subr.mxu0 0.0
    %1078 = vmatpush1.msra.mxu0 0.0
    %1079 = vmatprep.subr.mxu0 0.0
    %1080 = vmatpush1.msra.mxu0 0.0
    %1081 = vmatprep.subr.mxu0 0.0
    %1082 = vmatpush1.msra.mxu0 0.0
    %1083 = vmatprep.subr.mxu0 0.0
    %1084 = vmatpush1.msra.mxu0 0.0
    %1085 = vmatprep.subr.mxu0 0.0
    %1086 = vmatpush1.msra.mxu0 0.0
    %1087 = vmatprep.subr.mxu0 0.0
    %1088 = vmatpush1.msra.mxu0 0.0
    %1089 = vmatprep.subr.mxu0 0.0
    %1090 = vmatpush1.msra.mxu0 0.0
    %1091 = vmatprep.subr.mxu0 0.0
    %1092 = vmatpush1.msra.mxu0 %v1054
    %1093 = vmatprep.subr.mxu0 0.0
    %1094 = vmatpush1.msra.mxu0 %v1052
    %1095 = vmatprep.subr.mxu0 0.0
    %1096 = vmatpush2.msra.mxu0 0.0
    %1097 = vmatprep.subr.mxu0 0.0
    %1098 = vmatpush2.msra.mxu0 0.0
    %1099 = vmatprep.subr.mxu0 0.0
    %1100 = vmatpush2.msra.mxu0 0.0
    %1101 = vmatprep.subr.mxu0 0.0
    %1102 = vmatpush2.msra.mxu0 0.0
    %1103 = vmatprep.subr.mxu0 0.0
    %1104 = vmatpush2.msra.mxu0 0.0
    %1105 = vmatprep.subr.mxu0 0.0
    %1106 = vmatpush2.msra.mxu0 0.0
    %1107 = vmatprep.subr.mxu0 0.0
    %1108 = vmatpush2.msra.mxu0 0.0
    %1109 = vmatprep.subr.mxu0 0.0
    %1110 = vmatpush2.msra.mxu0 0.0
    %1111 = vmatprep.subr.mxu0 0.0
    %1112 = vmatpush2.msra.mxu0 0.0
    %1113 = vmatprep.subr.mxu0 0.0
    %1114 = vmatpush2.msra.mxu0 0.0
    %1115 = vmatprep.subr.mxu0 0.0
    %1116 = vmatpush2.msra.mxu0 0.0
    %1117 = vmatprep.subr.mxu0 0.0
    %1118 = vmatpush2.msra.mxu0 0.0
    %1119 = vmatprep.subr.mxu0 0.0
    %1120 = vmatpush2.msra.mxu0 0.0
    %1121 = vmatprep.subr.mxu0 0.0
    %1122 = vmatpush2.msra.mxu0 0.0
    %1123 = vmatprep.subr.mxu0 0.0
    %1124 = vmatpush2.msra.mxu0 0.0
    %1125 = vmatprep.subr.mxu0 0.0
    %1126 = vmatpush2.msra.mxu0 0.0
    %1127 = vmatprep.mubr.f32.mxu0 0.0
    %1128 = vmatmul.mubr.f32.gmra.mxu0 %v1058
    %v1129 = vpop.f32.mrf.mxu0
    %v1130 = vadd.f32 0.0, %v1129
    %v1131 = vpop.f32.mrf.mxu0
    %1132 = vmatprep.mubr.f32.mxu0 0.0
    %1133 = vmatmul.mubr.f32.gmra.mxu0 %v1061
    %v1134 = vpop.f32.mrf.mxu0
    %v1135 = vadd.f32 0.0, %v1134
    %v1136 = vpop.f32.mrf.mxu0
    %1137 = vdwg.mxu0
    %1140 = vrot.lane.b32.xlu0 %v722, 8
    %v1141 = vpop.permute.xlu0 %1140
    %1142 = vrot.lane.b32.xlu0 %v727, 8
    %v1143 = vpop.permute.xlu0 %1142
    %1148 = vrot.lane.b32.xlu0 %v926, 16
    %v1149 = vpop.permute.xlu0 %1148
    %1150 = vrot.lane.b32.xlu0 %v931, 16
    %v1151 = vpop.permute.xlu0 %1150
    %1156 = vrot.lane.b32.xlu0 %v1130, 24
    %v1157 = vpop.permute.xlu0 %1156
    %1158 = vrot.lane.b32.xlu0 %v1135, 24
    %v1159 = vpop.permute.xlu0 %1158
    %v1162 = vsel %vm328, %v518, %v1141
    %v1163 = vsel %vm328, %v523, %v1143
    %v1164 = vsel %vm416, %v1162, %v1149
    %v1165 = vsel %vm416, %v1163, %v1151
    %vm1166 = vcmask 195584
    %v1167 = vsel %vm1166, %v1164, %v1157
    %v1168 = vsel %vm1166, %v1165, %v1159
    %v1169 = vlaneseq
    %v1170 = vshrl.u32 %v1169, 7
    %v1171 = vsub.s32 1, %v1170
    %v1172 = vrot.slane %v58, %v1171
    %v1174 = vsel %vm242, %v1167, 0
    %v1177 = vsel %vm242, %v1168, 0
    %1179 = vmatprep.subr.mxu0 0.0
    %1180 = vmatpush1.msra.mxu0 0.0
    %1181 = vmatprep.subr.mxu0 0.0
    %1182 = vmatpush1.msra.mxu0 0.0
    %1183 = vmatprep.subr.mxu0 0.0
    %1184 = vmatpush1.msra.mxu0 0.0
    %1185 = vmatprep.subr.mxu0 0.0
    %1186 = vmatpush1.msra.mxu0 0.0
    %1187 = vmatprep.subr.mxu0 0.0
    %1188 = vmatpush1.msra.mxu0 0.0
    %1189 = vmatprep.subr.mxu0 0.0
    %1190 = vmatpush1.msra.mxu0 0.0
    %1191 = vmatprep.subr.mxu0 0.0
    %1192 = vmatpush1.msra.mxu0 0.0
    %1193 = vmatprep.subr.mxu0 0.0
    %1194 = vmatpush1.msra.mxu0 0.0
    %1195 = vmatprep.subr.mxu0 0.0
    %1196 = vmatpush1.msra.mxu0 0.0
    %1197 = vmatprep.subr.mxu0 0.0
    %1198 = vmatpush1.msra.mxu0 0.0
    %1199 = vmatprep.subr.mxu0 0.0
    %1200 = vmatpush1.msra.mxu0 0.0
    %1201 = vmatprep.subr.mxu0 0.0
    %1202 = vmatpush1.msra.mxu0 0.0
    %1203 = vmatprep.subr.mxu0 0.0
    %1204 = vmatpush1.msra.mxu0 %v66
    %1205 = vmatprep.subr.mxu0 0.0
    %1206 = vmatpush1.msra.mxu0 %v65
    %1207 = vmatprep.subr.mxu0 0.0
    %1208 = vmatpush1.msra.mxu0 %v64
    %1209 = vmatprep.subr.mxu0 0.0
    %1210 = vmatpush1.msra.mxu0 %v63
    %1211 = vmatprep.subr.mxu0 0.0
    %1212 = vmatpush2.msra.mxu0 0.0
    %1213 = vmatprep.subr.mxu0 0.0
    %1214 = vmatpush2.msra.mxu0 0.0
    %1215 = vmatprep.subr.mxu0 0.0
    %1216 = vmatpush2.msra.mxu0 0.0
    %1217 = vmatprep.subr.mxu0 0.0
    %1218 = vmatpush2.msra.mxu0 0.0
    %1219 = vmatprep.subr.mxu0 0.0
    %1220 = vmatpush2.msra.mxu0 0.0
    %1221 = vmatprep.subr.mxu0 0.0
    %1222 = vmatpush2.msra.mxu0 0.0
    %1223 = vmatprep.subr.mxu0 0.0
    %1224 = vmatpush2.msra.mxu0 0.0
    %1225 = vmatprep.subr.mxu0 0.0
    %1226 = vmatpush2.msra.mxu0 0.0
    %1227 = vmatprep.subr.mxu0 0.0
    %1228 = vmatpush2.msra.mxu0 0.0
    %1229 = vmatprep.subr.mxu0 0.0
    %1230 = vmatpush2.msra.mxu0 0.0
    %1231 = vmatprep.subr.mxu0 0.0
    %1232 = vmatpush2.msra.mxu0 0.0
    %1233 = vmatprep.subr.mxu0 0.0
    %1234 = vmatpush2.msra.mxu0 0.0
    %1235 = vmatprep.subr.mxu0 0.0
    %1236 = vmatpush2.msra.mxu0 0.0
    %1237 = vmatprep.subr.mxu0 0.0
    %1238 = vmatpush2.msra.mxu0 0.0
    %1239 = vmatprep.subr.mxu0 0.0
    %1240 = vmatpush2.msra.mxu0 0.0
    %1241 = vmatprep.subr.mxu0 0.0
    %1242 = vmatpush2.msra.mxu0 0.0
    %1243 = vmatprep.mubr.f32.mxu0 0.0
    %1244 = vmatmul.mubr.f32.gmra.mxu0 %v1174
    %v1245 = vpop.f32.mrf.mxu0
    %v1246 = vadd.f32 %v1172, %v1245
    %v1247 = vpop.f32.mrf.mxu0
    %1248 = vmatprep.mubr.f32.mxu0 0.0
    %1249 = vmatmul.mubr.f32.gmra.mxu0 %v1177
    %v1250 = vpop.f32.mrf.mxu0
    %v1251 = vadd.f32 %v1172, %v1250
    %v1252 = vpop.f32.mrf.mxu0
    %1253 = vdwg.mxu0
    %v1256 = vcombine.high %v1246, %v1246
    %v1258 = vunpack.c.l.s4 1983009808
    %v1259 = vunpack.c.0.s8 %v1258
    %v1260 = vlaneseq
    %v1261 = vshrl.u32 %v1260, 7
    %v1262 = vsub.s32 %v1259, %v1261
    %v1263 = vrot.slane %v1246, %v1262
    %v1265 = vunpack.c.l.s4 1983009808
    %v1266 = vunpack.c.0.s8 %v1265
    %v1267 = vlaneseq
    %v1268 = vshrl.u32 %v1267, 7
    %v1269 = vsub.s32 %v1266, %v1268
    %v1270 = vrot.slane %v1256, %v1269
    %v1271 = vcombine.high %v1263, %v1263
    %v1272 = vcombine.high %v1270, %v1270
    %v1273 = vcombine.high %v1251, %v1251
    %v1275 = vunpack.c.l.s4 1983009808
    %v1276 = vunpack.c.0.s8 %v1275
    %v1277 = vlaneseq
    %v1278 = vshrl.u32 %v1277, 7
    %v1279 = vsub.s32 %v1276, %v1278
    %v1280 = vrot.slane %v1251, %v1279
    %v1282 = vunpack.c.l.s4 1983009808
    %v1283 = vunpack.c.0.s8 %v1282
    %v1284 = vlaneseq
    %v1285 = vshrl.u32 %v1284, 7
    %v1286 = vsub.s32 %v1283, %v1285
    %v1287 = vrot.slane %v1273, %v1286
    %v1288 = vcombine.high %v1280, %v1280
    %v1289 = vcombine.high %v1287, %v1287
    %v1298 = vadd.f32 %v188, %v1263
    %v1299 = vadd.f32 %v189, %v1271
    %v1300 = vadd.f32 %v190, %v1270
    %v1301 = vadd.f32 %v191, %v1272
    %v1302 = vadd.f32 %v192, %v1280
    %v1303 = vadd.f32 %v193, %v1288
    %v1304 = vadd.f32 %v194, %v1287
    %v1305 = vadd.f32 %v195, %v1289
    %v1314 = vcombine.low %v1298, %v1299
    %v1315 = vcombine.low %v1300, %v1301
    %v1317 = vunpack.c.l.s4 1983009808
    %v1318 = vunpack.c.0.s8 %v1317
    %v1319 = vlaneseq
    %v1320 = vshrl.u32 %v1319, 7
    %v1321 = vsub.s32 %v1318, %v1320
    %v1322 = vrot.slane %v1314, %v1321
    %v1324 = vunpack.c.l.s4 1983009808
    %v1325 = vunpack.c.0.s8 %v1324
    %v1326 = vlaneseq
    %v1327 = vshrl.u32 %v1326, 7
    %v1328 = vsub.s32 %v1325, %v1327
    %v1329 = vrot.slane %v1315, %v1328
    %v1330 = vcombine.low %v1322, %v1329
    %v1331 = vcombine.low %v1302, %v1303
    %v1332 = vcombine.low %v1304, %v1305
    %v1334 = vunpack.c.l.s4 1983009808
    %v1335 = vunpack.c.0.s8 %v1334
    %v1336 = vlaneseq
    %v1337 = vshrl.u32 %v1336, 7
    %v1338 = vsub.s32 %v1335, %v1337
    %v1339 = vrot.slane %v1331, %v1338
    %v1341 = vunpack.c.l.s4 1983009808
    %v1342 = vunpack.c.0.s8 %v1341
    %v1343 = vlaneseq
    %v1344 = vshrl.u32 %v1343, 7
    %v1345 = vsub.s32 %v1342, %v1344
    %v1346 = vrot.slane %v1332, %v1345
    %v1347 = vcombine.low %v1339, %v1346
    %v1350 = vsel %vm242, %v1330, 0.0
    %1351 = vadd.xlane.f32.xlu0 %v1350
    %v1352 = vpop.xlane.xlu0 %1351
    %v1353 = vsel %vm242, %v1347, 0.0
    %1354 = vadd.xlane.f32.xlu0 %v1353
    %v1355 = vpop.xlane.xlu0 %1354
    %v1356 = vrcp.pop 32.0
    %v1357 = vmul.f32 %v1352, %v1356
    %v1358 = vmul.f32 %v1355, %v1356
    %v1362 = vunpack.c.l.s4 269488144
    %v1363 = vunpack.c.0.s8 %v1362
    %v1364 = vlaneseq
    %v1365 = vshrl.u32 %v1364, 7
    %v1366 = vsub.s32 %v1363, %v1365
    %v1367 = vrot.slane %v1357, %v1366
    %v1369 = vunpack.c.l.s4 842150450
    %v1370 = vunpack.c.0.s8 %v1369
    %v1371 = vlaneseq
    %v1372 = vshrl.u32 %v1371, 7
    %v1373 = vsub.s32 %v1370, %v1372
    %v1374 = vrot.slane %v1357, %v1373
    %v1376 = vunpack.c.l.s4 1414812756
    %v1377 = vunpack.c.0.s8 %v1376
    %v1378 = vlaneseq
    %v1379 = vshrl.u32 %v1378, 7
    %v1380 = vsub.s32 %v1377, %v1379
    %v1381 = vrot.slane %v1357, %v1380
    %v1383 = vunpack.c.l.s4 1987475062
    %v1384 = vunpack.c.0.s8 %v1383
    %v1385 = vlaneseq
    %v1386 = vshrl.u32 %v1385, 7
    %v1387 = vsub.s32 %v1384, %v1386
    %v1388 = vrot.slane %v1357, %v1387
    %v1390 = vunpack.c.l.s4 269488144
    %v1391 = vunpack.c.0.s8 %v1390
    %v1392 = vlaneseq
    %v1393 = vshrl.u32 %v1392, 7
    %v1394 = vsub.s32 %v1391, %v1393
    %v1395 = vrot.slane %v1358, %v1394
    %v1397 = vunpack.c.l.s4 842150450
    %v1398 = vunpack.c.0.s8 %v1397
    %v1399 = vlaneseq
    %v1400 = vshrl.u32 %v1399, 7
    %v1401 = vsub.s32 %v1398, %v1400
    %v1402 = vrot.slane %v1358, %v1401
    %v1404 = vunpack.c.l.s4 1414812756
    %v1405 = vunpack.c.0.s8 %v1404
    %v1406 = vlaneseq
    %v1407 = vshrl.u32 %v1406, 7
    %v1408 = vsub.s32 %v1405, %v1407
    %v1409 = vrot.slane %v1358, %v1408
    %v1411 = vunpack.c.l.s4 1987475062
    %v1412 = vunpack.c.0.s8 %v1411
    %v1413 = vlaneseq
    %v1414 = vshrl.u32 %v1413, 7
    %v1415 = vsub.s32 %v1412, %v1414
    %v1416 = vrot.slane %v1358, %v1415
    %v1425 = vsub.f32 %v1298, %v1367
    %v1426 = vsub.f32 %v1299, %v1374
    %v1427 = vsub.f32 %v1300, %v1381
    %v1428 = vsub.f32 %v1301, %v1388
    %v1429 = vsub.f32 %v1302, %v1395
    %v1430 = vsub.f32 %v1303, %v1402
    %v1431 = vsub.f32 %v1304, %v1409
    %v1432 = vsub.f32 %v1305, %v1416
    %v1433 = vmul.f32 %v1425, %v1425
    %v1434 = vmul.f32 %v1426, %v1426
    %v1435 = vmul.f32 %v1427, %v1427
    %v1436 = vmul.f32 %v1428, %v1428
    %v1437 = vmul.f32 %v1429, %v1429
    %v1438 = vmul.f32 %v1430, %v1430
    %v1439 = vmul.f32 %v1431, %v1431
    %v1440 = vmul.f32 %v1432, %v1432
    %v1449 = vcombine.low %v1433, %v1434
    %v1450 = vcombine.low %v1435, %v1436
    %v1452 = vunpack.c.l.s4 1983009808
    %v1453 = vunpack.c.0.s8 %v1452
    %v1454 = vlaneseq
    %v1455 = vshrl.u32 %v1454, 7
    %v1456 = vsub.s32 %v1453, %v1455
    %v1457 = vrot.slane %v1449, %v1456
    %v1459 = vunpack.c.l.s4 1983009808
    %v1460 = vunpack.c.0.s8 %v1459
    %v1461 = vlaneseq
    %v1462 = vshrl.u32 %v1461, 7
    %v1463 = vsub.s32 %v1460, %v1462
    %v1464 = vrot.slane %v1450, %v1463
    %v1465 = vcombine.low %v1457, %v1464
    %v1466 = vcombine.low %v1437, %v1438
    %v1467 = vcombine.low %v1439, %v1440
    %v1469 = vunpack.c.l.s4 1983009808
    %v1470 = vunpack.c.0.s8 %v1469
    %v1471 = vlaneseq
    %v1472 = vshrl.u32 %v1471, 7
    %v1473 = vsub.s32 %v1470, %v1472
    %v1474 = vrot.slane %v1466, %v1473
    %v1476 = vunpack.c.l.s4 1983009808
    %v1477 = vunpack.c.0.s8 %v1476
    %v1478 = vlaneseq
    %v1479 = vshrl.u32 %v1478, 7
    %v1480 = vsub.s32 %v1477, %v1479
    %v1481 = vrot.slane %v1467, %v1480
    %v1482 = vcombine.low %v1474, %v1481
    %v1485 = vsel %vm242, %v1465, 0.0
    %1486 = vadd.xlane.f32.xlu0 %v1485
    %v1487 = vpop.xlane.xlu0 %1486
    %v1488 = vsel %vm242, %v1482, 0.0
    %1489 = vadd.xlane.f32.xlu0 %v1488
    %v1490 = vpop.xlane.xlu0 %1489
    %v1491 = vmul.f32 %v1487, %v1356
    %v1492 = vmul.f32 %v1490, %v1356
    %v1493 = vadd.f32 %v1491, 1e-05
    %v1494 = vadd.f32 %v1492, 1e-05
    %v1495 = vrsqrt.pop %v1493
    %v1496 = vrsqrt.pop %v1494
    %v1500 = vunpack.c.l.s4 269488144
    %v1501 = vunpack.c.0.s8 %v1500
    %v1502 = vlaneseq
    %v1503 = vshrl.u32 %v1502, 7
    %v1504 = vsub.s32 %v1501, %v1503
    %v1505 = vrot.slane %v1495, %v1504
    %v1507 = vunpack.c.l.s4 842150450
    %v1508 = vunpack.c.0.s8 %v1507
    %v1509 = vlaneseq
    %v1510 = vshrl.u32 %v1509, 7
    %v1511 = vsub.s32 %v1508, %v1510
    %v1512 = vrot.slane %v1495, %v1511
    %v1514 = vunpack.c.l.s4 1414812756
    %v1515 = vunpack.c.0.s8 %v1514
    %v1516 = vlaneseq
    %v1517 = vshrl.u32 %v1516, 7
    %v1518 = vsub.s32 %v1515, %v1517
    %v1519 = vrot.slane %v1495, %v1518
    %v1521 = vunpack.c.l.s4 1987475062
    %v1522 = vunpack.c.0.s8 %v1521
    %v1523 = vlaneseq
    %v1524 = vshrl.u32 %v1523, 7
    %v1525 = vsub.s32 %v1522, %v1524
    %v1526 = vrot.slane %v1495, %v1525
    %v1528 = vunpack.c.l.s4 269488144
    %v1529 = vunpack.c.0.s8 %v1528
    %v1530 = vlaneseq
    %v1531 = vshrl.u32 %v1530, 7
    %v1532 = vsub.s32 %v1529, %v1531
    %v1533 = vrot.slane %v1496, %v1532
    %v1535 = vunpack.c.l.s4 842150450
    %v1536 = vunpack.c.0.s8 %v1535
    %v1537 = vlaneseq
    %v1538 = vshrl.u32 %v1537, 7
    %v1539 = vsub.s32 %v1536, %v1538
    %v1540 = vrot.slane %v1496, %v1539
    %v1542 = vunpack.c.l.s4 1414812756
    %v1543 = vunpack.c.0.s8 %v1542
    %v1544 = vlaneseq
    %v1545 = vshrl.u32 %v1544, 7
    %v1546 = vsub.s32 %v1543, %v1545
    %v1547 = vrot.slane %v1496, %v1546
    %v1549 = vunpack.c.l.s4 1987475062
    %v1550 = vunpack.c.0.s8 %v1549
    %v1551 = vlaneseq
    %v1552 = vshrl.u32 %v1551, 7
    %v1553 = vsub.s32 %v1550, %v1552
    %v1554 = vrot.slane %v1496, %v1553
    %v1563 = vmul.f32 %v1425, %v1505
    %v1564 = vmul.f32 %v1426, %v1512
    %v1565 = vmul.f32 %v1427, %v1519
    %v1566 = vmul.f32 %v1428, %v1526
    %v1567 = vmul.f32 %v1429, %v1533
    %v1568 = vmul.f32 %v1430, %v1540
    %v1569 = vmul.f32 %v1431, %v1547
    %v1570 = vmul.f32 %v1432, %v1554
    %v1571 = vlaneseq
    %v1572 = vshrl.u32 %v1571, 7
    %v1573 = vsub.s32 4, %v1572
    %v1574 = vrot.slane %v58, %v1573
    %v1576 = vcombine.high %v1574, %v1574
    %v1578 = vunpack.c.l.s4 1983009808
    %v1579 = vunpack.c.0.s8 %v1578
    %v1580 = vlaneseq
    %v1581 = vshrl.u32 %v1580, 7
    %v1582 = vsub.s32 %v1579, %v1581
    %v1583 = vrot.slane %v1574, %v1582
    %v1585 = vunpack.c.l.s4 1983009808
    %v1586 = vunpack.c.0.s8 %v1585
    %v1587 = vlaneseq
    %v1588 = vshrl.u32 %v1587, 7
    %v1589 = vsub.s32 %v1586, %v1588
    %v1590 = vrot.slane %v1576, %v1589
    %v1591 = vcombine.high %v1583, %v1583
    %v1592 = vcombine.high %v1590, %v1590
    %v1597 = vmul.f32 %v1563, %v1583
    %v1598 = vmul.f32 %v1564, %v1591
    %v1599 = vmul.f32 %v1565, %v1590
    %v1600 = vmul.f32 %v1566, %v1592
    %v1601 = vmul.f32 %v1567, %v1583
    %v1602 = vmul.f32 %v1568, %v1591
    %v1603 = vmul.f32 %v1569, %v1590
    %v1604 = vmul.f32 %v1570, %v1592
    %v1605 = vlaneseq
    %v1606 = vshrl.u32 %v1605, 7
    %v1607 = vsub.s32 5, %v1606
    %v1608 = vrot.slane %v58, %v1607
    %v1610 = vcombine.high %v1608, %v1608
    %v1612 = vunpack.c.l.s4 1983009808
    %v1613 = vunpack.c.0.s8 %v1612
    %v1614 = vlaneseq
    %v1615 = vshrl.u32 %v1614, 7
    %v1616 = vsub.s32 %v1613, %v1615
    %v1617 = vrot.slane %v1608, %v1616
    %v1619 = vunpack.c.l.s4 1983009808
    %v1620 = vunpack.c.0.s8 %v1619
    %v1621 = vlaneseq
    %v1622 = vshrl.u32 %v1621, 7
    %v1623 = vsub.s32 %v1620, %v1622
    %v1624 = vrot.slane %v1610, %v1623
    %v1625 = vcombine.high %v1617, %v1617
    %v1626 = vcombine.high %v1624, %v1624
    %v1631 = vadd.f32 %v1597, %v1617
    %v1632 = vadd.f32 %v1598, %v1625
    %v1633 = vadd.f32 %v1599, %v1624
    %v1634 = vadd.f32 %v1600, %v1626
    %v1635 = vadd.f32 %v1601, %v1617
    %v1636 = vadd.f32 %v1602, %v1625
    %v1637 = vadd.f32 %v1603, %v1624
    %v1638 = vadd.f32 %v1604, %v1626
    %v1639 = vlaneseq
    %v1640 = vshrl.u32 %v1639, 7
    %v1641 = vsub.s32 2, %v1640
    %v1642 = vrot.slane %v58, %v1641
    %v1651 = vcombine.low %v1631, %v1632
    %v1652 = vcombine.low %v1633, %v1634
    %v1654 = vunpack.c.l.s4 1983009808
    %v1655 = vunpack.c.0.s8 %v1654
    %v1656 = vlaneseq
    %v1657 = vshrl.u32 %v1656, 7
    %v1658 = vsub.s32 %v1655, %v1657
    %v1659 = vrot.slane %v1651, %v1658
    %v1661 = vunpack.c.l.s4 1983009808
    %v1662 = vunpack.c.0.s8 %v1661
    %v1663 = vlaneseq
    %v1664 = vshrl.u32 %v1663, 7
    %v1665 = vsub.s32 %v1662, %v1664
    %v1666 = vrot.slane %v1652, %v1665
    %v1667 = vcombine.low %v1659, %v1666
    %v1668 = vcombine.low %v1635, %v1636
    %v1669 = vcombine.low %v1637, %v1638
    %v1671 = vunpack.c.l.s4 1983009808
    %v1672 = vunpack.c.0.s8 %v1671
    %v1673 = vlaneseq
    %v1674 = vshrl.u32 %v1673, 7
    %v1675 = vsub.s32 %v1672, %v1674
    %v1676 = vrot.slane %v1668, %v1675
    %v1678 = vunpack.c.l.s4 1983009808
    %v1679 = vunpack.c.0.s8 %v1678
    %v1680 = vlaneseq
    %v1681 = vshrl.u32 %v1680, 7
    %v1682 = vsub.s32 %v1679, %v1681
    %v1683 = vrot.slane %v1669, %v1682
    %v1684 = vcombine.low %v1676, %v1683
    %v1685 = vsel %vm242, %v1667, 0
    %v1687 = vsel %vm242, %v1684, 0
    %1689 = vmatprep.subr.mxu0 0.0
    %1690 = vmatpush1.msra.mxu0 0.0
    %1691 = vmatprep.subr.mxu0 0.0
    %1692 = vmatpush1.msra.mxu0 0.0
    %1693 = vmatprep.subr.mxu0 0.0
    %1694 = vmatpush1.msra.mxu0 0.0
    %1695 = vmatprep.subr.mxu0 0.0
    %1696 = vmatpush1.msra.mxu0 0.0
    %1697 = vmatprep.subr.mxu0 0.0
    %1698 = vmatpush1.msra.mxu0 0.0
    %1699 = vmatprep.subr.mxu0 0.0
    %1700 = vmatpush1.msra.mxu0 0.0
    %1701 = vmatprep.subr.mxu0 0.0
    %1702 = vmatpush1.msra.mxu0 0.0
    %1703 = vmatprep.subr.mxu0 0.0
    %1704 = vmatpush1.msra.mxu0 0.0
    %1705 = vmatprep.subr.mxu0 0.0
    %1706 = vmatpush1.msra.mxu0 0.0
    %1707 = vmatprep.subr.mxu0 0.0
    %1708 = vmatpush1.msra.mxu0 0.0
    %1709 = vmatprep.subr.mxu0 0.0
    %1710 = vmatpush1.msra.mxu0 0.0
    %1711 = vmatprep.subr.mxu0 0.0
    %1712 = vmatpush1.msra.mxu0 0.0
    %1713 = vmatprep.subr.mxu0 0.0
    %1714 = vmatpush1.msra.mxu0 %v70
    %1715 = vmatprep.subr.mxu0 0.0
    %1716 = vmatpush1.msra.mxu0 %v69
    %1717 = vmatprep.subr.mxu0 0.0
    %1718 = vmatpush1.msra.mxu0 %v68
    %1719 = vmatprep.subr.mxu0 0.0
    %1720 = vmatpush1.msra.mxu0 %v67
    %1721 = vmatprep.subr.mxu0 0.0
    %1722 = vmatpush2.msra.mxu0 0.0
    %1723 = vmatprep.subr.mxu0 0.0
    %1724 = vmatpush2.msra.mxu0 0.0
    %1725 = vmatprep.subr.mxu0 0.0
    %1726 = vmatpush2.msra.mxu0 0.0
    %1727 = vmatprep.subr.mxu0 0.0
    %1728 = vmatpush2.msra.mxu0 0.0
    %1729 = vmatprep.subr.mxu0 0.0
    %1730 = vmatpush2.msra.mxu0 0.0
    %1731 = vmatprep.subr.mxu0 0.0
    %1732 = vmatpush2.msra.mxu0 0.0
    %1733 = vmatprep.subr.mxu0 0.0
    %1734 = vmatpush2.msra.mxu0 0.0
    %1735 = vmatprep.subr.mxu0 0.0
    %1736 = vmatpush2.msra.mxu0 0.0
    %1737 = vmatprep.subr.mxu0 0.0
    %1738 = vmatpush2.msra.mxu0 0.0
    %1739 = vmatprep.subr.mxu0 0.0
    %1740 = vmatpush2.msra.mxu0 0.0
    %1741 = vmatprep.subr.mxu0 0.0
    %1742 = vmatpush2.msra.mxu0 0.0
    %1743 = vmatprep.subr.mxu0 0.0
    %1744 = vmatpush2.msra.mxu0 0.0
    %1745 = vmatprep.subr.mxu0 0.0
    %1746 = vmatpush2.msra.mxu0 0.0
    %1747 = vmatprep.subr.mxu0 0.0
    %1748 = vmatpush2.msra.mxu0 0.0
    %1749 = vmatprep.subr.mxu0 0.0
    %1750 = vmatpush2.msra.mxu0 0.0
    %1751 = vmatprep.subr.mxu0 0.0
    %1752 = vmatpush2.msra.mxu0 0.0
    %1753 = vmatprep.mubr.f32.mxu0 0.0
    %1754 = vmatmul.mubr.f32.gmra.mxu0 %v1685
    %v1755 = vpop.f32.mrf.mxu0
    %v1756 = vadd.f32 %v1642, %v1755
    %v1757 = vpop.f32.mrf.mxu0
    %1758 = vmatprep.mubr.f32.mxu0 0.0
    %1759 = vmatmul.mubr.f32.gmra.mxu0 %v1687
    %v1760 = vpop.f32.mrf.mxu0
    %v1761 = vadd.f32 %v1642, %v1760
    %v1762 = vpop.f32.mrf.mxu0
    %1763 = vdwg.mxu0
    %v1764 = vmax.f32 %v1756, 0.0
    %v1765 = vmax.f32 %v1761, 0.0
    %v1766 = vlaneseq
    %v1767 = vshrl.u32 %v1766, 7
    %v1768 = vsub.s32 3, %v1767
    %v1769 = vrot.slane %v58, %v1768
    %vm1770 = vcmask 523264
    %v1772 = vsel %vm1770, %v1764, 0
    %v1775 = vsel %vm1770, %v1765, 0
    %1777 = vmatprep.subr.mxu0 0.0
    %1778 = vmatpush1.msra.mxu0 0.0
    %1779 = vmatprep.subr.mxu0 0.0
    %1780 = vmatpush1.msra.mxu0 0.0
    %1781 = vmatprep.subr.mxu0 0.0
    %1782 = vmatpush1.msra.mxu0 0.0
    %1783 = vmatprep.subr.mxu0 0.0
    %1784 = vmatpush1.msra.mxu0 0.0
    %1785 = vmatprep.subr.mxu0 0.0
    %1786 = vmatpush1.msra.mxu0 0.0
    %1787 = vmatprep.subr.mxu0 0.0
    %1788 = vmatpush1.msra.mxu0 0.0
    %1789 = vmatprep.subr.mxu0 0.0
    %1790 = vmatpush1.msra.mxu0 0.0
    %1791 = vmatprep.subr.mxu0 0.0
    %1792 = vmatpush1.msra.mxu0 0.0
    %1793 = vmatprep.subr.mxu0 0.0
    %1794 = vmatpush1.msra.mxu0 %v78
    %1795 = vmatprep.subr.mxu0 0.0
    %1796 = vmatpush1.msra.mxu0 %v77
    %1797 = vmatprep.subr.mxu0 0.0
    %1798 = vmatpush1.msra.mxu0 %v76
    %1799 = vmatprep.subr.mxu0 0.0
    %1800 = vmatpush1.msra.mxu0 %v75
    %1801 = vmatprep.subr.mxu0 0.0
    %1802 = vmatpush1.msra.mxu0 %v74
    %1803 = vmatprep.subr.mxu0 0.0
    %1804 = vmatpush1.msra.mxu0 %v73
    %1805 = vmatprep.subr.mxu0 0.0
    %1806 = vmatpush1.msra.mxu0 %v72
    %1807 = vmatprep.subr.mxu0 0.0
    %1808 = vmatpush1.msra.mxu0 %v71
    %1809 = vmatprep.subr.mxu0 0.0
    %1810 = vmatpush2.msra.mxu0 0.0
    %1811 = vmatprep.subr.mxu0 0.0
    %1812 = vmatpush2.msra.mxu0 0.0
    %1813 = vmatprep.subr.mxu0 0.0
    %1814 = vmatpush2.msra.mxu0 0.0
    %1815 = vmatprep.subr.mxu0 0.0
    %1816 = vmatpush2.msra.mxu0 0.0
    %1817 = vmatprep.subr.mxu0 0.0
    %1818 = vmatpush2.msra.mxu0 0.0
    %1819 = vmatprep.subr.mxu0 0.0
    %1820 = vmatpush2.msra.mxu0 0.0
    %1821 = vmatprep.subr.mxu0 0.0
    %1822 = vmatpush2.msra.mxu0 0.0
    %1823 = vmatprep.subr.mxu0 0.0
    %1824 = vmatpush2.msra.mxu0 0.0
    %1825 = vmatprep.subr.mxu0 0.0
    %1826 = vmatpush2.msra.mxu0 0.0
    %1827 = vmatprep.subr.mxu0 0.0
    %1828 = vmatpush2.msra.mxu0 0.0
    %1829 = vmatprep.subr.mxu0 0.0
    %1830 = vmatpush2.msra.mxu0 0.0
    %1831 = vmatprep.subr.mxu0 0.0
    %1832 = vmatpush2.msra.mxu0 0.0
    %1833 = vmatprep.subr.mxu0 0.0
    %1834 = vmatpush2.msra.mxu0 0.0
    %1835 = vmatprep.subr.mxu0 0.0
    %1836 = vmatpush2.msra.mxu0 0.0
    %1837 = vmatprep.subr.mxu0 0.0
    %1838 = vmatpush2.msra.mxu0 0.0
    %1839 = vmatprep.subr.mxu0 0.0
    %1840 = vmatpush2.msra.mxu0 0.0
    %1841 = vmatprep.mubr.f32.mxu0 0.0
    %1842 = vmatmul.mubr.f32.gmra.mxu0 %v1772
    %v1843 = vpop.f32.mrf.mxu0
    %v1844 = vadd.f32 %v1769, %v1843
    %v1845 = vpop.f32.mrf.mxu0
    %1846 = vmatprep.mubr.f32.mxu0 0.0
    %1847 = vmatmul.mubr.f32.gmra.mxu0 %v1775
    %v1848 = vpop.f32.mrf.mxu0
    %v1849 = vadd.f32 %v1769, %v1848
    %v1850 = vpop.f32.mrf.mxu0
    %1851 = vdwg.mxu0
    %v1854 = vcombine.high %v1844, %v1844
    %v1856 = vunpack.c.l.s4 1983009808
    %v1857 = vunpack.c.0.s8 %v1856
    %v1858 = vlaneseq
    %v1859 = vshrl.u32 %v1858, 7
    %v1860 = vsub.s32 %v1857, %v1859
    %v1861 = vrot.slane %v1844, %v1860
    %v1863 = vunpack.c.l.s4 1983009808
    %v1864 = vunpack.c.0.s8 %v1863
    %v1865 = vlaneseq
    %v1866 = vshrl.u32 %v1865, 7
    %v1867 = vsub.s32 %v1864, %v1866
    %v1868 = vrot.slane %v1854, %v1867
    %v1869 = vcombine.high %v1861, %v1861
    %v1870 = vcombine.high %v1868, %v1868
    %v1871 = vcombine.high %v1849, %v1849
    %v1873 = vunpack.c.l.s4 1983009808
    %v1874 = vunpack.c.0.s8 %v1873
    %v1875 = vlaneseq
    %v1876 = vshrl.u32 %v1875, 7
    %v1877 = vsub.s32 %v1874, %v1876
    %v1878 = vrot.slane %v1849, %v1877
    %v1880 = vunpack.c.l.s4 1983009808
    %v1881 = vunpack.c.0.s8 %v1880
    %v1882 = vlaneseq
    %v1883 = vshrl.u32 %v1882, 7
    %v1884 = vsub.s32 %v1881, %v1883
    %v1885 = vrot.slane %v1871, %v1884
    %v1886 = vcombine.high %v1878, %v1878
    %v1887 = vcombine.high %v1885, %v1885
    %v1896 = vadd.f32 %v1631, %v1861
    %v1897 = vadd.f32 %v1632, %v1869
    %v1898 = vadd.f32 %v1633, %v1868
    %v1899 = vadd.f32 %v1634, %v1870
    %v1900 = vadd.f32 %v1635, %v1878
    %v1901 = vadd.f32 %v1636, %v1886
    %v1902 = vadd.f32 %v1637, %v1885
    %v1903 = vadd.f32 %v1638, %v1887
    %v1912 = vcombine.low %v1896, %v1897
    %v1913 = vcombine.low %v1898, %v1899
    %v1915 = vunpack.c.l.s4 1983009808
    %v1916 = vunpack.c.0.s8 %v1915
    %v1917 = vlaneseq
    %v1918 = vshrl.u32 %v1917, 7
    %v1919 = vsub.s32 %v1916, %v1918
    %v1920 = vrot.slane %v1912, %v1919
    %v1922 = vunpack.c.l.s4 1983009808
    %v1923 = vunpack.c.0.s8 %v1922
    %v1924 = vlaneseq
    %v1925 = vshrl.u32 %v1924, 7
    %v1926 = vsub.s32 %v1923, %v1925
    %v1927 = vrot.slane %v1913, %v1926
    %v1928 = vcombine.low %v1920, %v1927
    %v1929 = vcombine.low %v1900, %v1901
    %v1930 = vcombine.low %v1902, %v1903
    %v1932 = vunpack.c.l.s4 1983009808
    %v1933 = vunpack.c.0.s8 %v1932
    %v1934 = vlaneseq
    %v1935 = vshrl.u32 %v1934, 7
    %v1936 = vsub.s32 %v1933, %v1935
    %v1937 = vrot.slane %v1929, %v1936
    %v1939 = vunpack.c.l.s4 1983009808
    %v1940 = vunpack.c.0.s8 %v1939
    %v1941 = vlaneseq
    %v1942 = vshrl.u32 %v1941, 7
    %v1943 = vsub.s32 %v1940, %v1942
    %v1944 = vrot.slane %v1930, %v1943
    %v1945 = vcombine.low %v1937, %v1944
    %v1948 = vsel %vm242, %v1928, 0.0
    %1949 = vadd.xlane.f32.xlu0 %v1948
    %v1950 = vpop.xlane.xlu0 %1949
    %v1951 = vsel %vm242, %v1945, 0.0
    %1952 = vadd.xlane.f32.xlu0 %v1951
    %v1953 = vpop.xlane.xlu0 %1952
    %v1954 = vmul.f32 %v1950, %v1356
    %v1955 = vmul.f32 %v1953, %v1356
    %v1959 = vunpack.c.l.s4 269488144
    %v1960 = vunpack.c.0.s8 %v1959
    %v1961 = vlaneseq
    %v1962 = vshrl.u32 %v1961, 7
    %v1963 = vsub.s32 %v1960, %v1962
    %v1964 = vrot.slane %v1954, %v1963
    %v1966 = vunpack.c.l.s4 842150450
    %v1967 = vunpack.c.0.s8 %v1966
    %v1968 = vlaneseq
    %v1969 = vshrl.u32 %v1968, 7
    %v1970 = vsub.s32 %v1967, %v1969
    %v1971 = vrot.slane %v1954, %v1970
    %v1973 = vunpack.c.l.s4 1414812756
    %v1974 = vunpack.c.0.s8 %v1973
    %v1975 = vlaneseq
    %v1976 = vshrl.u32 %v1975, 7
    %v1977 = vsub.s32 %v1974, %v1976
    %v1978 = vrot.slane %v1954, %v1977
    %v1980 = vunpack.c.l.s4 1987475062
    %v1981 = vunpack.c.0.s8 %v1980
    %v1982 = vlaneseq
    %v1983 = vshrl.u32 %v1982, 7
    %v1984 = vsub.s32 %v1981, %v1983
    %v1985 = vrot.slane %v1954, %v1984
    %v1987 = vunpack.c.l.s4 269488144
    %v1988 = vunpack.c.0.s8 %v1987
    %v1989 = vlaneseq
    %v1990 = vshrl.u32 %v1989, 7
    %v1991 = vsub.s32 %v1988, %v1990
    %v1992 = vrot.slane %v1955, %v1991
    %v1994 = vunpack.c.l.s4 842150450
    %v1995 = vunpack.c.0.s8 %v1994
    %v1996 = vlaneseq
    %v1997 = vshrl.u32 %v1996, 7
    %v1998 = vsub.s32 %v1995, %v1997
    %v1999 = vrot.slane %v1955, %v1998
    %v2001 = vunpack.c.l.s4 1414812756
    %v2002 = vunpack.c.0.s8 %v2001
    %v2003 = vlaneseq
    %v2004 = vshrl.u32 %v2003, 7
    %v2005 = vsub.s32 %v2002, %v2004
    %v2006 = vrot.slane %v1955, %v2005
    %v2008 = vunpack.c.l.s4 1987475062
    %v2009 = vunpack.c.0.s8 %v2008
    %v2010 = vlaneseq
    %v2011 = vshrl.u32 %v2010, 7
    %v2012 = vsub.s32 %v2009, %v2011
    %v2013 = vrot.slane %v1955, %v2012
    %v2022 = vsub.f32 %v1896, %v1964
    %v2023 = vsub.f32 %v1897, %v1971
    %v2024 = vsub.f32 %v1898, %v1978
    %v2025 = vsub.f32 %v1899, %v1985
    %v2026 = vsub.f32 %v1900, %v1992
    %v2027 = vsub.f32 %v1901, %v1999
    %v2028 = vsub.f32 %v1902, %v2006
    %v2029 = vsub.f32 %v1903, %v2013
    %v2030 = vmul.f32 %v2022, %v2022
    %v2031 = vmul.f32 %v2023, %v2023
    %v2032 = vmul.f32 %v2024, %v2024
    %v2033 = vmul.f32 %v2025, %v2025
    %v2034 = vmul.f32 %v2026, %v2026
    %v2035 = vmul.f32 %v2027, %v2027
    %v2036 = vmul.f32 %v2028, %v2028
    %v2037 = vmul.f32 %v2029, %v2029
    %v2046 = vcombine.low %v2030, %v2031
    %v2047 = vcombine.low %v2032, %v2033
    %v2049 = vunpack.c.l.s4 1983009808
    %v2050 = vunpack.c.0.s8 %v2049
    %v2051 = vlaneseq
    %v2052 = vshrl.u32 %v2051, 7
    %v2053 = vsub.s32 %v2050, %v2052
    %v2054 = vrot.slane %v2046, %v2053
    %v2056 = vunpack.c.l.s4 1983009808
    %v2057 = vunpack.c.0.s8 %v2056
    %v2058 = vlaneseq
    %v2059 = vshrl.u32 %v2058, 7
    %v2060 = vsub.s32 %v2057, %v2059
    %v2061 = vrot.slane %v2047, %v2060
    %v2062 = vcombine.low %v2054, %v2061
    %v2063 = vcombine.low %v2034, %v2035
    %v2064 = vcombine.low %v2036, %v2037
    %v2066 = vunpack.c.l.s4 1983009808
    %v2067 = vunpack.c.0.s8 %v2066
    %v2068 = vlaneseq
    %v2069 = vshrl.u32 %v2068, 7
    %v2070 = vsub.s32 %v2067, %v2069
    %v2071 = vrot.slane %v2063, %v2070
    %v2073 = vunpack.c.l.s4 1983009808
    %v2074 = vunpack.c.0.s8 %v2073
    %v2075 = vlaneseq
    %v2076 = vshrl.u32 %v2075, 7
    %v2077 = vsub.s32 %v2074, %v2076
    %v2078 = vrot.slane %v2064, %v2077
    %v2079 = vcombine.low %v2071, %v2078
    %v2082 = vsel %vm242, %v2062, 0.0
    %2083 = vadd.xlane.f32.xlu0 %v2082
    %v2084 = vpop.xlane.xlu0 %2083
    %v2085 = vsel %vm242, %v2079, 0.0
    %2086 = vadd.xlane.f32.xlu0 %v2085
    %v2087 = vpop.xlane.xlu0 %2086
    %v2088 = vmul.f32 %v2084, %v1356
    %v2089 = vmul.f32 %v2087, %v1356
    %v2090 = vadd.f32 %v2088, 1e-05
    %v2091 = vadd.f32 %v2089, 1e-05
    %v2092 = vrsqrt.pop %v2090
    %v2093 = vrsqrt.pop %v2091
    %v2097 = vunpack.c.l.s4 269488144
    %v2098 = vunpack.c.0.s8 %v2097
    %v2099 = vlaneseq
    %v2100 = vshrl.u32 %v2099, 7
    %v2101 = vsub.s32 %v2098, %v2100
    %v2102 = vrot.slane %v2092, %v2101
    %v2104 = vunpack.c.l.s4 842150450
    %v2105 = vunpack.c.0.s8 %v2104
    %v2106 = vlaneseq
    %v2107 = vshrl.u32 %v2106, 7
    %v2108 = vsub.s32 %v2105, %v2107
    %v2109 = vrot.slane %v2092, %v2108
    %v2111 = vunpack.c.l.s4 1414812756
    %v2112 = vunpack.c.0.s8 %v2111
    %v2113 = vlaneseq
    %v2114 = vshrl.u32 %v2113, 7
    %v2115 = vsub.s32 %v2112, %v2114
    %v2116 = vrot.slane %v2092, %v2115
    %v2118 = vunpack.c.l.s4 1987475062
    %v2119 = vunpack.c.0.s8 %v2118
    %v2120 = vlaneseq
    %v2121 = vshrl.u32 %v2120, 7
    %v2122 = vsub.s32 %v2119, %v2121
    %v2123 = vrot.slane %v2092, %v2122
    %v2125 = vunpack.c.l.s4 269488144
    %v2126 = vunpack.c.0.s8 %v2125
    %v2127 = vlaneseq
    %v2128 = vshrl.u32 %v2127, 7
    %v2129 = vsub.s32 %v2126, %v2128
    %v2130 = vrot.slane %v2093, %v2129
    %v2132 = vunpack.c.l.s4 842150450
    %v2133 = vunpack.c.0.s8 %v2132
    %v2134 = vlaneseq
    %v2135 = vshrl.u32 %v2134, 7
    %v2136 = vsub.s32 %v2133, %v2135
    %v2137 = vrot.slane %v2093, %v2136
    %v2139 = vunpack.c.l.s4 1414812756
    %v2140 = vunpack.c.0.s8 %v2139
    %v2141 = vlaneseq
    %v2142 = vshrl.u32 %v2141, 7
    %v2143 = vsub.s32 %v2140, %v2142
    %v2144 = vrot.slane %v2093, %v2143
    %v2146 = vunpack.c.l.s4 1987475062
    %v2147 = vunpack.c.0.s8 %v2146
    %v2148 = vlaneseq
    %v2149 = vshrl.u32 %v2148, 7
    %v2150 = vsub.s32 %v2147, %v2149
    %v2151 = vrot.slane %v2093, %v2150
    %v2160 = vmul.f32 %v2022, %v2102
    %v2161 = vmul.f32 %v2023, %v2109
    %v2162 = vmul.f32 %v2024, %v2116
    %v2163 = vmul.f32 %v2025, %v2123
    %v2164 = vmul.f32 %v2026, %v2130
    %v2165 = vmul.f32 %v2027, %v2137
    %v2166 = vmul.f32 %v2028, %v2144
    %v2167 = vmul.f32 %v2029, %v2151
    %v2168 = vlaneseq
    %v2169 = vshrl.u32 %v2168, 7
    %v2170 = vsub.s32 6, %v2169
    %v2171 = vrot.slane %v58, %v2170
    %v2173 = vcombine.high %v2171, %v2171
    %v2175 = vunpack.c.l.s4 1983009808
    %v2176 = vunpack.c.0.s8 %v2175
    %v2177 = vlaneseq
    %v2178 = vshrl.u32 %v2177, 7
    %v2179 = vsub.s32 %v2176, %v2178
    %v2180 = vrot.slane %v2171, %v2179
    %v2182 = vunpack.c.l.s4 1983009808
    %v2183 = vunpack.c.0.s8 %v2182
    %v2184 = vlaneseq
    %v2185 = vshrl.u32 %v2184, 7
    %v2186 = vsub.s32 %v2183, %v2185
    %v2187 = vrot.slane %v2173, %v2186
    %v2188 = vcombine.high %v2180, %v2180
    %v2189 = vcombine.high %v2187, %v2187
    %v2194 = vmul.f32 %v2160, %v2180
    %v2195 = vmul.f32 %v2161, %v2188
    %v2196 = vmul.f32 %v2162, %v2187
    %v2197 = vmul.f32 %v2163, %v2189
    %v2198 = vmul.f32 %v2164, %v2180
    %v2199 = vmul.f32 %v2165, %v2188
    %v2200 = vmul.f32 %v2166, %v2187
    %v2201 = vmul.f32 %v2167, %v2189
    %v2202 = vlaneseq
    %v2203 = vshrl.u32 %v2202, 7
    %v2204 = vsub.s32 7, %v2203
    %v2205 = vrot.slane %v58, %v2204
    %v2207 = vcombine.high %v2205, %v2205
    %v2209 = vunpack.c.l.s4 1983009808
    %v2210 = vunpack.c.0.s8 %v2209
    %v2211 = vlaneseq
    %v2212 = vshrl.u32 %v2211, 7
    %v2213 = vsub.s32 %v2210, %v2212
    %v2214 = vrot.slane %v2205, %v2213
    %v2216 = vunpack.c.l.s4 1983009808
    %v2217 = vunpack.c.0.s8 %v2216
    %v2218 = vlaneseq
    %v2219 = vshrl.u32 %v2218, 7
    %v2220 = vsub.s32 %v2217, %v2219
    %v2221 = vrot.slane %v2207, %v2220
    %v2222 = vcombine.high %v2214, %v2214
    %v2223 = vcombine.high %v2221, %v2221
    %v2228 = vadd.f32 %v2194, %v2214
    %v2229 = vadd.f32 %v2195, %v2222
    %v2230 = vadd.f32 %v2196, %v2221
    %v2231 = vadd.f32 %v2197, %v2223
    %v2232 = vadd.f32 %v2198, %v2214
    %v2233 = vadd.f32 %v2199, %v2222
    %v2234 = vadd.f32 %v2200, %v2221
    %v2235 = vadd.f32 %v2201, %v2223
    %v2244 = vcombine.low %v2228, %v2229
    %v2245 = vcombine.low %v2230, %v2231
    %v2247 = vunpack.c.l.s4 1983009808
    %v2248 = vunpack.c.0.s8 %v2247
    %v2249 = vlaneseq
    %v2250 = vshrl.u32 %v2249, 7
    %v2251 = vsub.s32 %v2248, %v2250
    %v2252 = vrot.slane %v2244, %v2251
    %v2254 = vunpack.c.l.s4 1983009808
    %v2255 = vunpack.c.0.s8 %v2254
    %v2256 = vlaneseq
    %v2257 = vshrl.u32 %v2256, 7
    %v2258 = vsub.s32 %v2255, %v2257
    %v2259 = vrot.slane %v2245, %v2258
    %v2260 = vcombine.low %v2252, %v2259
    %v2261 = vcombine.low %v2232, %v2233
    %v2262 = vcombine.low %v2234, %v2235
    %v2264 = vunpack.c.l.s4 1983009808
    %v2265 = vunpack.c.0.s8 %v2264
    %v2266 = vlaneseq
    %v2267 = vshrl.u32 %v2266, 7
    %v2268 = vsub.s32 %v2265, %v2267
    %v2269 = vrot.slane %v2261, %v2268
    %v2271 = vunpack.c.l.s4 1983009808
    %v2272 = vunpack.c.0.s8 %v2271
    %v2273 = vlaneseq
    %v2274 = vshrl.u32 %v2273, 7
    %v2275 = vsub.s32 %v2272, %v2274
    %v2276 = vrot.slane %v2262, %v2275
    %v2277 = vcombine.low %v2269, %v2276
    %2280 = vst.msk [vmem:[#allocation7] sm:$0xff] %vm242, %v2260
    %2281 = vst.msk [vmem:[#allocation7 + $0x8] sm:$0xff] %vm242, %v2277
    %v2282 = vsel %vm242, %v2260, 0
    %v2284 = vsel %vm242, %v2277, 0
    %2286 = vmatprep.subr.mxu0 0.0
    %2287 = vmatpush1.msra.mxu0 0.0
    %2288 = vmatprep.subr.mxu0 0.0
    %2289 = vmatpush1.msra.mxu0 0.0
    %2290 = vmatprep.subr.mxu0 0.0
    %2291 = vmatpush1.msra.mxu0 0.0
    %2292 = vmatprep.subr.mxu0 0.0
    %2293 = vmatpush1.msra.mxu0 0.0
    %2294 = vmatprep.subr.mxu0 0.0
    %2295 = vmatpush1.msra.mxu0 0.0
    %2296 = vmatprep.subr.mxu0 0.0
    %2297 = vmatpush1.msra.mxu0 0.0
    %2298 = vmatprep.subr.mxu0 0.0
    %2299 = vmatpush1.msra.mxu0 0.0
    %2300 = vmatprep.subr.mxu0 0.0
    %2301 = vmatpush1.msra.mxu0 0.0
    %2302 = vmatprep.subr.mxu0 0.0
    %2303 = vmatpush1.msra.mxu0 0.0
    %2304 = vmatprep.subr.mxu0 0.0
    %2305 = vmatpush1.msra.mxu0 0.0
    %2306 = vmatprep.subr.mxu0 0.0
    %2307 = vmatpush1.msra.mxu0 0.0
    %2308 = vmatprep.subr.mxu0 0.0
    %2309 = vmatpush1.msra.mxu0 0.0
    %2310 = vmatprep.subr.mxu0 0.0
    %2311 = vmatpush1.msra.mxu0 %v62
    %2312 = vmatprep.subr.mxu0 0.0
    %2313 = vmatpush1.msra.mxu0 %v61
    %2314 = vmatprep.subr.mxu0 0.0
    %2315 = vmatpush1.msra.mxu0 %v60
    %2316 = vmatprep.subr.mxu0 0.0
    %2317 = vmatpush1.msra.mxu0 %v59
    %2318 = vmatprep.subr.mxu0 0.0
    %2319 = vmatpush2.msra.mxu0 0.0
    %2320 = vmatprep.subr.mxu0 0.0
    %2321 = vmatpush2.msra.mxu0 0.0
    %2322 = vmatprep.subr.mxu0 0.0
    %2323 = vmatpush2.msra.mxu0 0.0
    %2324 = vmatprep.subr.mxu0 0.0
    %2325 = vmatpush2.msra.mxu0 0.0
    %2326 = vmatprep.subr.mxu0 0.0
    %2327 = vmatpush2.msra.mxu0 0.0
    %2328 = vmatprep.subr.mxu0 0.0
    %2329 = vmatpush2.msra.mxu0 0.0
    %2330 = vmatprep.subr.mxu0 0.0
    %2331 = vmatpush2.msra.mxu0 0.0
    %2332 = vmatprep.subr.mxu0 0.0
    %2333 = vmatpush2.msra.mxu0 0.0
    %2334 = vmatprep.subr.mxu0 0.0
    %2335 = vmatpush2.msra.mxu0 0.0
    %2336 = vmatprep.subr.mxu0 0.0
    %2337 = vmatpush2.msra.mxu0 0.0
    %2338 = vmatprep.subr.mxu0 0.0
    %2339 = vmatpush2.msra.mxu0 0.0
    %2340 = vmatprep.subr.mxu0 0.0
    %2341 = vmatpush2.msra.mxu0 0.0
    %2342 = vmatprep.subr.mxu0 0.0
    %2343 = vmatpush2.msra.mxu0 0.0
    %2344 = vmatprep.subr.mxu0 0.0
    %2345 = vmatpush2.msra.mxu0 0.0
    %2346 = vmatprep.subr.mxu0 0.0
    %2347 = vmatpush2.msra.mxu0 0.0
    %2348 = vmatprep.subr.mxu0 0.0
    %2349 = vmatpush2.msra.mxu0 0.0
    %2350 = vmatprep.mubr.f32.mxu0 0.0
    %2351 = vmatmul.mubr.f32.gmra.mxu0 %v2282
    %v2352 = vpop.f32.mrf.mxu0
    %v2353 = vadd.f32 %v199, %v2352
    %v2354 = vpop.f32.mrf.mxu0
    %2355 = vmatprep.mubr.f32.mxu0 0.0
    %2356 = vmatmul.mubr.f32.gmra.mxu0 %v2284
    %v2357 = vpop.f32.mrf.mxu0
    %v2358 = vadd.f32 %v199, %v2357
    %v2359 = vpop.f32.mrf.mxu0
    %2360 = vdwg.mxu0
    %2363 = vrot.lane.b32.xlu0 %v2353, 96
    %v2364 = vpop.permute.xlu0 %2363
    %2365 = vrot.lane.b32.xlu0 %v2358, 96
    %v2366 = vpop.permute.xlu0 %2365
    %v2367 = vsel %vm328, %v2353, 0
    %v2369 = vsel %vm328, %v2358, 0
    %v2371 = vsel %vm328, %v2364, 0
    %v2373 = vsel %vm328, %v2366, 0
    %2375 = vmatprep.subr.mxu0 0.0
    %2376 = vmatpush1.xpose.msra.mxu0 0.0
    %2377 = vmatprep.subr.mxu0 0.0
    %2378 = vmatpush1.xpose.msra.mxu0 0.0
    %2379 = vmatprep.subr.mxu0 0.0
    %2380 = vmatpush1.xpose.msra.mxu0 0.0
    %2381 = vmatprep.subr.mxu0 0.0
    %2382 = vmatpush1.xpose.msra.mxu0 0.0
    %2383 = vmatprep.subr.mxu0 0.0
    %2384 = vmatpush1.xpose.msra.mxu0 0.0
    %2385 = vmatprep.subr.mxu0 0.0
    %2386 = vmatpush1.xpose.msra.mxu0 0.0
    %2387 = vmatprep.subr.mxu0 0.0
    %2388 = vmatpush1.xpose.msra.mxu0 0.0
    %2389 = vmatprep.subr.mxu0 0.0
    %2390 = vmatpush1.xpose.msra.mxu0 0.0
    %2391 = vmatprep.subr.mxu0 0.0
    %2392 = vmatpush1.xpose.msra.mxu0 0.0
    %2393 = vmatprep.subr.mxu0 0.0
    %2394 = vmatpush1.xpose.msra.mxu0 0.0
    %2395 = vmatprep.subr.mxu0 0.0
    %2396 = vmatpush1.xpose.msra.mxu0 0.0
    %2397 = vmatprep.subr.mxu0 0.0
    %2398 = vmatpush1.xpose.msra.mxu0 0.0
    %2399 = vmatprep.subr.mxu0 0.0
    %2400 = vmatpush1.xpose.msra.mxu0 0.0
    %2401 = vmatprep.subr.mxu0 0.0
    %2402 = vmatpush1.xpose.msra.mxu0 0.0
    %2403 = vmatprep.subr.mxu0 0.0
    %2404 = vmatpush1.xpose.msra.mxu0 %v2373
    %2405 = vmatprep.subr.mxu0 0.0
    %2406 = vmatpush1.xpose.msra.mxu0 %v2371
    %2407 = vmatprep.subr.mxu0 0.0
    %2408 = vmatpush2.xpose.msra.mxu0 0.0
    %2409 = vmatprep.subr.mxu0 0.0
    %2410 = vmatpush2.xpose.msra.mxu0 0.0
    %2411 = vmatprep.subr.mxu0 0.0
    %2412 = vmatpush2.xpose.msra.mxu0 0.0
    %2413 = vmatprep.subr.mxu0 0.0
    %2414 = vmatpush2.xpose.msra.mxu0 0.0
    %2415 = vmatprep.subr.mxu0 0.0
    %2416 = vmatpush2.xpose.msra.mxu0 0.0
    %2417 = vmatprep.subr.mxu0 0.0
    %2418 = vmatpush2.xpose.msra.mxu0 0.0
    %2419 = vmatprep.subr.mxu0 0.0
    %2420 = vmatpush2.xpose.msra.mxu0 0.0
    %2421 = vmatprep.subr.mxu0 0.0
    %2422 = vmatpush2.xpose.msra.mxu0 0.0
    %2423 = vmatprep.subr.mxu0 0.0
    %2424 = vmatpush2.xpose.msra.mxu0 0.0
    %2425 = vmatprep.subr.mxu0 0.0
    %2426 = vmatpush2.xpose.msra.mxu0 0.0
    %2427 = vmatprep.subr.mxu0 0.0
    %2428 = vmatpush2.xpose.msra.mxu0 0.0
    %2429 = vmatprep.subr.mxu0 0.0
    %2430 = vmatpush2.xpose.msra.mxu0 0.0
    %2431 = vmatprep.subr.mxu0 0.0
    %2432 = vmatpush2.xpose.msra.mxu0 0.0
    %2433 = vmatprep.subr.mxu0 0.0
    %2434 = vmatpush2.xpose.msra.mxu0 0.0
    %2435 = vmatprep.subr.mxu0 0.0
    %2436 = vmatpush2.xpose.msra.mxu0 0.0
    %2437 = vmatprep.subr.mxu0 0.0
    %2438 = vmatpush2.xpose.msra.mxu0 0.0
    %2439 = vmatprep.mubr.f32.mxu0 0.0
    %2440 = vmatmul.mubr.f32.gmra.mxu0 %v2367
    %v2441 = vpop.f32.mrf.mxu0
    %v2442 = vadd.f32 0.0, %v2441
    %v2443 = vpop.f32.mrf.mxu0
    %2444 = vmatprep.mubr.f32.mxu0 0.0
    %2445 = vmatmul.mubr.f32.gmra.mxu0 %v2369
    %v2446 = vpop.f32.mrf.mxu0
    %v2447 = vadd.f32 0.0, %v2446
    %v2448 = vpop.f32.mrf.mxu0
    %2449 = vdwg.mxu0
    %v2450 = vmul.f32 %v2442, 0.35355338
    %v2451 = vmul.f32 %v2447, 0.35355338
    %v2452 = vadd.f32 %v2450, %v122
    %v2453 = vadd.f32 %v2451, %v123
    %v2454 = vsel %vm416, %v2452, -inf
    %2455 = vmax.xlane.f32.xlu0 %v2454
    %v2456 = vpop.xlane.xlu0 %2455
    %v2457 = vsel %vm416, %v2453, -inf
    %2458 = vmax.xlane.f32.xlu0 %v2457
    %v2459 = vpop.xlane.xlu0 %2458
    %v2460 = vsub.f32 %v2452, %v2456
    %v2461 = vsub.f32 %v2453, %v2459
    %v2462 = vmul.f32 %v2460, 1.442695
    %v2463 = vpow.pop %v2462
    %v2464 = vmul.f32 %v2461, 1.442695
    %v2465 = vpow.pop %v2464
    %v2466 = vsel %vm416, %v2463, 0.0
    %2467 = vadd.xlane.f32.xlu0 %v2466
    %v2468 = vpop.xlane.xlu0 %2467
    %v2469 = vsel %vm416, %v2465, 0.0
    %2470 = vadd.xlane.f32.xlu0 %v2469
    %v2471 = vpop.xlane.xlu0 %2470
    %v2472 = vrcp.pop %v2468
    %v2473 = vmul.f32 %v2463, %v2472
    %v2474 = vrcp.pop %v2471
    %v2475 = vmul.f32 %v2465, %v2474
    %2476 = vrot.lane.b32.xlu0 %v2353, 64
    %v2477 = vpop.permute.xlu0 %2476
    %2478 = vrot.lane.b32.xlu0 %v2358, 64
    %v2479 = vpop.permute.xlu0 %2478
    %v2483 = vsel %vm416, %v2473, 0
    %v2486 = vsel %vm416, %v2475, 0
    %2488 = vmatprep.subr.mxu0 0.0
    %2489 = vmatpush1.msra.mxu0 0.0
    %2490 = vmatprep.subr.mxu0 0.0
    %2491 = vmatpush1.msra.mxu0 0.0
    %2492 = vmatprep.subr.mxu0 0.0
    %2493 = vmatpush1.msra.mxu0 0.0
    %2494 = vmatprep.subr.mxu0 0.0
    %2495 = vmatpush1.msra.mxu0 0.0
    %2496 = vmatprep.subr.mxu0 0.0
    %2497 = vmatpush1.msra.mxu0 0.0
    %2498 = vmatprep.subr.mxu0 0.0
    %2499 = vmatpush1.msra.mxu0 0.0
    %2500 = vmatprep.subr.mxu0 0.0
    %2501 = vmatpush1.msra.mxu0 0.0
    %2502 = vmatprep.subr.mxu0 0.0
    %2503 = vmatpush1.msra.mxu0 0.0
    %2504 = vmatprep.subr.mxu0 0.0
    %2505 = vmatpush1.msra.mxu0 0.0
    %2506 = vmatprep.subr.mxu0 0.0
    %2507 = vmatpush1.msra.mxu0 0.0
    %2508 = vmatprep.subr.mxu0 0.0
    %2509 = vmatpush1.msra.mxu0 0.0
    %2510 = vmatprep.subr.mxu0 0.0
    %2511 = vmatpush1.msra.mxu0 0.0
    %2512 = vmatprep.subr.mxu0 0.0
    %2513 = vmatpush1.msra.mxu0 0.0
    %2514 = vmatprep.subr.mxu0 0.0
    %2515 = vmatpush1.msra.mxu0 0.0
    %2516 = vmatprep.subr.mxu0 0.0
    %2517 = vmatpush1.msra.mxu0 %v2479
    %2518 = vmatprep.subr.mxu0 0.0
    %2519 = vmatpush1.msra.mxu0 %v2477
    %2520 = vmatprep.subr.mxu0 0.0
    %2521 = vmatpush2.msra.mxu0 0.0
    %2522 = vmatprep.subr.mxu0 0.0
    %2523 = vmatpush2.msra.mxu0 0.0
    %2524 = vmatprep.subr.mxu0 0.0
    %2525 = vmatpush2.msra.mxu0 0.0
    %2526 = vmatprep.subr.mxu0 0.0
    %2527 = vmatpush2.msra.mxu0 0.0
    %2528 = vmatprep.subr.mxu0 0.0
    %2529 = vmatpush2.msra.mxu0 0.0
    %2530 = vmatprep.subr.mxu0 0.0
    %2531 = vmatpush2.msra.mxu0 0.0
    %2532 = vmatprep.subr.mxu0 0.0
    %2533 = vmatpush2.msra.mxu0 0.0
    %2534 = vmatprep.subr.mxu0 0.0
    %2535 = vmatpush2.msra.mxu0 0.0
    %2536 = vmatprep.subr.mxu0 0.0
    %2537 = vmatpush2.msra.mxu0 0.0
    %2538 = vmatprep.subr.mxu0 0.0
    %2539 = vmatpush2.msra.mxu0 0.0
    %2540 = vmatprep.subr.mxu0 0.0
    %2541 = vmatpush2.msra.mxu0 0.0
    %2542 = vmatprep.subr.mxu0 0.0
    %2543 = vmatpush2.msra.mxu0 0.0
    %2544 = vmatprep.subr.mxu0 0.0
    %2545 = vmatpush2.msra.mxu0 0.0
    %2546 = vmatprep.subr.mxu0 0.0
    %2547 = vmatpush2.msra.mxu0 0.0
    %2548 = vmatprep.subr.mxu0 0.0
    %2549 = vmatpush2.msra.mxu0 0.0
    %2550 = vmatprep.subr.mxu0 0.0
    %2551 = vmatpush2.msra.mxu0 0.0
    %2552 = vmatprep.mubr.f32.mxu0 0.0
    %2553 = vmatmul.mubr.f32.gmra.mxu0 %v2483
    %v2554 = vpop.f32.mrf.mxu0
    %v2555 = vadd.f32 0.0, %v2554
    %v2556 = vpop.f32.mrf.mxu0
    %2557 = vmatprep.mubr.f32.mxu0 0.0
    %2558 = vmatmul.mubr.f32.gmra.mxu0 %v2486
    %v2559 = vpop.f32.mrf.mxu0
    %v2560 = vadd.f32 0.0, %v2559
    %v2561 = vpop.f32.mrf.mxu0
    %2562 = vdwg.mxu0
    %2563 = vrot.lane.b32.xlu0 %v2353, 120
    %v2564 = vpop.permute.xlu0 %2563
    %2565 = vrot.lane.b32.xlu0 %v2358, 120
    %v2566 = vpop.permute.xlu0 %2565
    %2567 = vrot.lane.b32.xlu0 %v2353, 88
    %v2568 = vpop.permute.xlu0 %2567
    %2569 = vrot.lane.b32.xlu0 %v2358, 88
    %v2570 = vpop.permute.xlu0 %2569
    %v2571 = vsel %vm328, %v2564, 0
    %v2573 = vsel %vm328, %v2566, 0
    %v2575 = vsel %vm328, %v2568, 0
    %v2577 = vsel %vm328, %v2570, 0
    %2579 = vmatprep.subr.mxu0 0.0
    %2580 = vmatpush1.xpose.msra.mxu0 0.0
    %2581 = vmatprep.subr.mxu0 0.0
    %2582 = vmatpush1.xpose.msra.mxu0 0.0
    %2583 = vmatprep.subr.mxu0 0.0
    %2584 = vmatpush1.xpose.msra.mxu0 0.0
    %2585 = vmatprep.subr.mxu0 0.0
    %2586 = vmatpush1.xpose.msra.mxu0 0.0
    %2587 = vmatprep.subr.mxu0 0.0
    %2588 = vmatpush1.xpose.msra.mxu0 0.0
    %2589 = vmatprep.subr.mxu0 0.0
    %2590 = vmatpush1.xpose.msra.mxu0 0.0
    %2591 = vmatprep.subr.mxu0 0.0
    %2592 = vmatpush1.xpose.msra.mxu0 0.0
    %2593 = vmatprep.subr.mxu0 0.0
    %2594 = vmatpush1.xpose.msra.mxu0 0.0
    %2595 = vmatprep.subr.mxu0 0.0
    %2596 = vmatpush1.xpose.msra.mxu0 0.0
    %2597 = vmatprep.subr.mxu0 0.0
    %2598 = vmatpush1.xpose.msra.mxu0 0.0
    %2599 = vmatprep.subr.mxu0 0.0
    %2600 = vmatpush1.xpose.msra.mxu0 0.0
    %2601 = vmatprep.subr.mxu0 0.0
    %2602 = vmatpush1.xpose.msra.mxu0 0.0
    %2603 = vmatprep.subr.mxu0 0.0
    %2604 = vmatpush1.xpose.msra.mxu0 0.0
    %2605 = vmatprep.subr.mxu0 0.0
    %2606 = vmatpush1.xpose.msra.mxu0 0.0
    %2607 = vmatprep.subr.mxu0 0.0
    %2608 = vmatpush1.xpose.msra.mxu0 %v2577
    %2609 = vmatprep.subr.mxu0 0.0
    %2610 = vmatpush1.xpose.msra.mxu0 %v2575
    %2611 = vmatprep.subr.mxu0 0.0
    %2612 = vmatpush2.xpose.msra.mxu0 0.0
    %2613 = vmatprep.subr.mxu0 0.0
    %2614 = vmatpush2.xpose.msra.mxu0 0.0
    %2615 = vmatprep.subr.mxu0 0.0
    %2616 = vmatpush2.xpose.msra.mxu0 0.0
    %2617 = vmatprep.subr.mxu0 0.0
    %2618 = vmatpush2.xpose.msra.mxu0 0.0
    %2619 = vmatprep.subr.mxu0 0.0
    %2620 = vmatpush2.xpose.msra.mxu0 0.0
    %2621 = vmatprep.subr.mxu0 0.0
    %2622 = vmatpush2.xpose.msra.mxu0 0.0
    %2623 = vmatprep.subr.mxu0 0.0
    %2624 = vmatpush2.xpose.msra.mxu0 0.0
    %2625 = vmatprep.subr.mxu0 0.0
    %2626 = vmatpush2.xpose.msra.mxu0 0.0
    %2627 = vmatprep.subr.mxu0 0.0
    %2628 = vmatpush2.xpose.msra.mxu0 0.0
    %2629 = vmatprep.subr.mxu0 0.0
    %2630 = vmatpush2.xpose.msra.mxu0 0.0
    %2631 = vmatprep.subr.mxu0 0.0
    %2632 = vmatpush2.xpose.msra.mxu0 0.0
    %2633 = vmatprep.subr.mxu0 0.0
    %2634 = vmatpush2.xpose.msra.mxu0 0.0
    %2635 = vmatprep.subr.mxu0 0.0
    %2636 = vmatpush2.xpose.msra.mxu0 0.0
    %2637 = vmatprep.subr.mxu0 0.0
    %2638 = vmatpush2.xpose.msra.mxu0 0.0
    %2639 = vmatprep.subr.mxu0 0.0
    %2640 = vmatpush2.xpose.msra.mxu0 0.0
    %2641 = vmatprep.subr.mxu0 0.0
    %2642 = vmatpush2.xpose.msra.mxu0 0.0
    %2643 = vmatprep.mubr.f32.mxu0 0.0
    %2644 = vmatmul.mubr.f32.gmra.mxu0 %v2571
    %v2645 = vpop.f32.mrf.mxu0
    %v2646 = vadd.f32 0.0, %v2645
    %v2647 = vpop.f32.mrf.mxu0
    %2648 = vmatprep.mubr.f32.mxu0 0.0
    %2649 = vmatmul.mubr.f32.gmra.mxu0 %v2573
    %v2650 = vpop.f32.mrf.mxu0
    %v2651 = vadd.f32 0.0, %v2650
    %v2652 = vpop.f32.mrf.mxu0
    %2653 = vdwg.mxu0
    %v2654 = vmul.f32 %v2646, 0.35355338
    %v2655 = vmul.f32 %v2651, 0.35355338
    %v2656 = vadd.f32 %v2654, %v122
    %v2657 = vadd.f32 %v2655, %v123
    %v2658 = vsel %vm416, %v2656, -inf
    %2659 = vmax.xlane.f32.xlu0 %v2658
    %v2660 = vpop.xlane.xlu0 %2659
    %v2661 = vsel %vm416, %v2657, -inf
    %2662 = vmax.xlane.f32.xlu0 %v2661
    %v2663 = vpop.xlane.xlu0 %2662
    %v2664 = vsub.f32 %v2656, %v2660
    %v2665 = vsub.f32 %v2657, %v2663
    %v2666 = vmul.f32 %v2664, 1.442695
    %v2667 = vpow.pop %v2666
    %v2668 = vmul.f32 %v2665, 1.442695
    %v2669 = vpow.pop %v2668
    %v2670 = vsel %vm416, %v2667, 0.0
    %2671 = vadd.xlane.f32.xlu0 %v2670
    %v2672 = vpop.xlane.xlu0 %2671
    %v2673 = vsel %vm416, %v2669, 0.0
    %2674 = vadd.xlane.f32.xlu0 %v2673
    %v2675 = vpop.xlane.xlu0 %2674
    %v2676 = vrcp.pop %v2672
    %v2677 = vmul.f32 %v2667, %v2676
    %v2678 = vrcp.pop %v2675
    %v2679 = vmul.f32 %v2669, %v2678
    %2680 = vrot.lane.b32.xlu0 %v2353, 56
    %v2681 = vpop.permute.xlu0 %2680
    %2682 = vrot.lane.b32.xlu0 %v2358, 56
    %v2683 = vpop.permute.xlu0 %2682
    %v2687 = vsel %vm416, %v2677, 0
    %v2690 = vsel %vm416, %v2679, 0
    %2692 = vmatprep.subr.mxu0 0.0
    %2693 = vmatpush1.msra.mxu0 0.0
    %2694 = vmatprep.subr.mxu0 0.0
    %2695 = vmatpush1.msra.mxu0 0.0
    %2696 = vmatprep.subr.mxu0 0.0
    %2697 = vmatpush1.msra.mxu0 0.0
    %2698 = vmatprep.subr.mxu0 0.0
    %2699 = vmatpush1.msra.mxu0 0.0
    %2700 = vmatprep.subr.mxu0 0.0
    %2701 = vmatpush1.msra.mxu0 0.0
    %2702 = vmatprep.subr.mxu0 0.0
    %2703 = vmatpush1.msra.mxu0 0.0
    %2704 = vmatprep.subr.mxu0 0.0
    %2705 = vmatpush1.msra.mxu0 0.0
    %2706 = vmatprep.subr.mxu0 0.0
    %2707 = vmatpush1.msra.mxu0 0.0
    %2708 = vmatprep.subr.mxu0 0.0
    %2709 = vmatpush1.msra.mxu0 0.0
    %2710 = vmatprep.subr.mxu0 0.0
    %2711 = vmatpush1.msra.mxu0 0.0
    %2712 = vmatprep.subr.mxu0 0.0
    %2713 = vmatpush1.msra.mxu0 0.0
    %2714 = vmatprep.subr.mxu0 0.0
    %2715 = vmatpush1.msra.mxu0 0.0
    %2716 = vmatprep.subr.mxu0 0.0
    %2717 = vmatpush1.msra.mxu0 0.0
    %2718 = vmatprep.subr.mxu0 0.0
    %2719 = vmatpush1.msra.mxu0 0.0
    %2720 = vmatprep.subr.mxu0 0.0
    %2721 = vmatpush1.msra.mxu0 %v2683
    %2722 = vmatprep.subr.mxu0 0.0
    %2723 = vmatpush1.msra.mxu0 %v2681
    %2724 = vmatprep.subr.mxu0 0.0
    %2725 = vmatpush2.msra.mxu0 0.0
    %2726 = vmatprep.subr.mxu0 0.0
    %2727 = vmatpush2.msra.mxu0 0.0
    %2728 = vmatprep.subr.mxu0 0.0
    %2729 = vmatpush2.msra.mxu0 0.0
    %2730 = vmatprep.subr.mxu0 0.0
    %2731 = vmatpush2.msra.mxu0 0.0
    %2732 = vmatprep.subr.mxu0 0.0
    %2733 = vmatpush2.msra.mxu0 0.0
    %2734 = vmatprep.subr.mxu0 0.0
    %2735 = vmatpush2.msra.mxu0 0.0
    %2736 = vmatprep.subr.mxu0 0.0
    %2737 = vmatpush2.msra.mxu0 0.0
    %2738 = vmatprep.subr.mxu0 0.0
    %2739 = vmatpush2.msra.mxu0 0.0
    %2740 = vmatprep.subr.mxu0 0.0
    %2741 = vmatpush2.msra.mxu0 0.0
    %2742 = vmatprep.subr.mxu0 0.0
    %2743 = vmatpush2.msra.mxu0 0.0
    %2744 = vmatprep.subr.mxu0 0.0
    %2745 = vmatpush2.msra.mxu0 0.0
    %2746 = vmatprep.subr.mxu0 0.0
    %2747 = vmatpush2.msra.mxu0 0.0
    %2748 = vmatprep.subr.mxu0 0.0
    %2749 = vmatpush2.msra.mxu0 0.0
    %2750 = vmatprep.subr.mxu0 0.0
    %2751 = vmatpush2.msra.mxu0 0.0
    %2752 = vmatprep.subr.mxu0 0.0
    %2753 = vmatpush2.msra.mxu0 0.0
    %2754 = vmatprep.subr.mxu0 0.0
    %2755 = vmatpush2.msra.mxu0 0.0
    %2756 = vmatprep.mubr.f32.mxu0 0.0
    %2757 = vmatmul.mubr.f32.gmra.mxu0 %v2687
    %v2758 = vpop.f32.mrf.mxu0
    %v2759 = vadd.f32 0.0, %v2758
    %v2760 = vpop.f32.mrf.mxu0
    %2761 = vmatprep.mubr.f32.mxu0 0.0
    %2762 = vmatmul.mubr.f32.gmra.mxu0 %v2690
    %v2763 = vpop.f32.mrf.mxu0
    %v2764 = vadd.f32 0.0, %v2763
    %v2765 = vpop.f32.mrf.mxu0
    %2766 = vdwg.mxu0
    %2767 = vrot.lane.b32.xlu0 %v2353, 112
    %v2768 = vpop.permute.xlu0 %2767
    %2769 = vrot.lane.b32.xlu0 %v2358, 112
    %v2770 = vpop.permute.xlu0 %2769
    %2771 = vrot.lane.b32.xlu0 %v2353, 80
    %v2772 = vpop.permute.xlu0 %2771
    %2773 = vrot.lane.b32.xlu0 %v2358, 80
    %v2774 = vpop.permute.xlu0 %2773
    %v2775 = vsel %vm328, %v2768, 0
    %v2777 = vsel %vm328, %v2770, 0
    %v2779 = vsel %vm328, %v2772, 0
    %v2781 = vsel %vm328, %v2774, 0
    %2783 = vmatprep.subr.mxu0 0.0
    %2784 = vmatpush1.xpose.msra.mxu0 0.0
    %2785 = vmatprep.subr.mxu0 0.0
    %2786 = vmatpush1.xpose.msra.mxu0 0.0
    %2787 = vmatprep.subr.mxu0 0.0
    %2788 = vmatpush1.xpose.msra.mxu0 0.0
    %2789 = vmatprep.subr.mxu0 0.0
    %2790 = vmatpush1.xpose.msra.mxu0 0.0
    %2791 = vmatprep.subr.mxu0 0.0
    %2792 = vmatpush1.xpose.msra.mxu0 0.0
    %2793 = vmatprep.subr.mxu0 0.0
    %2794 = vmatpush1.xpose.msra.mxu0 0.0
    %2795 = vmatprep.subr.mxu0 0.0
    %2796 = vmatpush1.xpose.msra.mxu0 0.0
    %2797 = vmatprep.subr.mxu0 0.0
    %2798 = vmatpush1.xpose.msra.mxu0 0.0
    %2799 = vmatprep.subr.mxu0 0.0
    %2800 = vmatpush1.xpose.msra.mxu0 0.0
    %2801 = vmatprep.subr.mxu0 0.0
    %2802 = vmatpush1.xpose.msra.mxu0 0.0
    %2803 = vmatprep.subr.mxu0 0.0
    %2804 = vmatpush1.xpose.msra.mxu0 0.0
    %2805 = vmatprep.subr.mxu0 0.0
    %2806 = vmatpush1.xpose.msra.mxu0 0.0
    %2807 = vmatprep.subr.mxu0 0.0
    %2808 = vmatpush1.xpose.msra.mxu0 0.0
    %2809 = vmatprep.subr.mxu0 0.0
    %2810 = vmatpush1.xpose.msra.mxu0 0.0
    %2811 = vmatprep.subr.mxu0 0.0
    %2812 = vmatpush1.xpose.msra.mxu0 %v2781
    %2813 = vmatprep.subr.mxu0 0.0
    %2814 = vmatpush1.xpose.msra.mxu0 %v2779
    %2815 = vmatprep.subr.mxu0 0.0
    %2816 = vmatpush2.xpose.msra.mxu0 0.0
    %2817 = vmatprep.subr.mxu0 0.0
    %2818 = vmatpush2.xpose.msra.mxu0 0.0
    %2819 = vmatprep.subr.mxu0 0.0
    %2820 = vmatpush2.xpose.msra.mxu0 0.0
    %2821 = vmatprep.subr.mxu0 0.0
    %2822 = vmatpush2.xpose.msra.mxu0 0.0
    %2823 = vmatprep.subr.mxu0 0.0
    %2824 = vmatpush2.xpose.msra.mxu0 0.0
    %2825 = vmatprep.subr.mxu0 0.0
    %2826 = vmatpush2.xpose.msra.mxu0 0.0
    %2827 = vmatprep.subr.mxu0 0.0
    %2828 = vmatpush2.xpose.msra.mxu0 0.0
    %2829 = vmatprep.subr.mxu0 0.0
    %2830 = vmatpush2.xpose.msra.mxu0 0.0
    %2831 = vmatprep.subr.mxu0 0.0
    %2832 = vmatpush2.xpose.msra.mxu0 0.0
    %2833 = vmatprep.subr.mxu0 0.0
    %2834 = vmatpush2.xpose.msra.mxu0 0.0
    %2835 = vmatprep.subr.mxu0 0.0
    %2836 = vmatpush2.xpose.msra.mxu0 0.0
    %2837 = vmatprep.subr.mxu0 0.0
    %2838 = vmatpush2.xpose.msra.mxu0 0.0
    %2839 = vmatprep.subr.mxu0 0.0
    %2840 = vmatpush2.xpose.msra.mxu0 0.0
    %2841 = vmatprep.subr.mxu0 0.0
    %2842 = vmatpush2.xpose.msra.mxu0 0.0
    %2843 = vmatprep.subr.mxu0 0.0
    %2844 = vmatpush2.xpose.msra.mxu0 0.0
    %2845 = vmatprep.subr.mxu0 0.0
    %2846 = vmatpush2.xpose.msra.mxu0 0.0
    %2847 = vmatprep.mubr.f32.mxu0 0.0
    %2848 = vmatmul.mubr.f32.gmra.mxu0 %v2775
    %v2849 = vpop.f32.mrf.mxu0
    %v2850 = vadd.f32 0.0, %v2849
    %v2851 = vpop.f32.mrf.mxu0
    %2852 = vmatprep.mubr.f32.mxu0 0.0
    %2853 = vmatmul.mubr.f32.gmra.mxu0 %v2777
    %v2854 = vpop.f32.mrf.mxu0
    %v2855 = vadd.f32 0.0, %v2854
    %v2856 = vpop.f32.mrf.mxu0
    %2857 = vdwg.mxu0
    %v2858 = vmul.f32 %v2850, 0.35355338
    %v2859 = vmul.f32 %v2855, 0.35355338
    %v2860 = vadd.f32 %v2858, %v122
    %v2861 = vadd.f32 %v2859, %v123
    %v2862 = vsel %vm416, %v2860, -inf
    %2863 = vmax.xlane.f32.xlu0 %v2862
    %v2864 = vpop.xlane.xlu0 %2863
    %v2865 = vsel %vm416, %v2861, -inf
    %2866 = vmax.xlane.f32.xlu0 %v2865
    %v2867 = vpop.xlane.xlu0 %2866
    %v2868 = vsub.f32 %v2860, %v2864
    %v2869 = vsub.f32 %v2861, %v2867
    %v2870 = vmul.f32 %v2868, 1.442695
    %v2871 = vpow.pop %v2870
    %v2872 = vmul.f32 %v2869, 1.442695
    %v2873 = vpow.pop %v2872
    %v2874 = vsel %vm416, %v2871, 0.0
    %2875 = vadd.xlane.f32.xlu0 %v2874
    %v2876 = vpop.xlane.xlu0 %2875
    %v2877 = vsel %vm416, %v2873, 0.0
    %2878 = vadd.xlane.f32.xlu0 %v2877
    %v2879 = vpop.xlane.xlu0 %2878
    %v2880 = vrcp.pop %v2876
    %v2881 = vmul.f32 %v2871, %v2880
    %v2882 = vrcp.pop %v2879
    %v2883 = vmul.f32 %v2873, %v2882
    %2884 = vrot.lane.b32.xlu0 %v2353, 48
    %v2885 = vpop.permute.xlu0 %2884
    %2886 = vrot.lane.b32.xlu0 %v2358, 48
    %v2887 = vpop.permute.xlu0 %2886
    %v2891 = vsel %vm416, %v2881, 0
    %v2894 = vsel %vm416, %v2883, 0
    %2896 = vmatprep.subr.mxu0 0.0
    %2897 = vmatpush1.msra.mxu0 0.0
    %2898 = vmatprep.subr.mxu0 0.0
    %2899 = vmatpush1.msra.mxu0 0.0
    %2900 = vmatprep.subr.mxu0 0.0
    %2901 = vmatpush1.msra.mxu0 0.0
    %2902 = vmatprep.subr.mxu0 0.0
    %2903 = vmatpush1.msra.mxu0 0.0
    %2904 = vmatprep.subr.mxu0 0.0
    %2905 = vmatpush1.msra.mxu0 0.0
    %2906 = vmatprep.subr.mxu0 0.0
    %2907 = vmatpush1.msra.mxu0 0.0
    %2908 = vmatprep.subr.mxu0 0.0
    %2909 = vmatpush1.msra.mxu0 0.0
    %2910 = vmatprep.subr.mxu0 0.0
    %2911 = vmatpush1.msra.mxu0 0.0
    %2912 = vmatprep.subr.mxu0 0.0
    %2913 = vmatpush1.msra.mxu0 0.0
    %2914 = vmatprep.subr.mxu0 0.0
    %2915 = vmatpush1.msra.mxu0 0.0
    %2916 = vmatprep.subr.mxu0 0.0
    %2917 = vmatpush1.msra.mxu0 0.0
    %2918 = vmatprep.subr.mxu0 0.0
    %2919 = vmatpush1.msra.mxu0 0.0
    %2920 = vmatprep.subr.mxu0 0.0
    %2921 = vmatpush1.msra.mxu0 0.0
    %2922 = vmatprep.subr.mxu0 0.0
    %2923 = vmatpush1.msra.mxu0 0.0
    %2924 = vmatprep.subr.mxu0 0.0
    %2925 = vmatpush1.msra.mxu0 %v2887
    %2926 = vmatprep.subr.mxu0 0.0
    %2927 = vmatpush1.msra.mxu0 %v2885
    %2928 = vmatprep.subr.mxu0 0.0
    %2929 = vmatpush2.msra.mxu0 0.0
    %2930 = vmatprep.subr.mxu0 0.0
    %2931 = vmatpush2.msra.mxu0 0.0
    %2932 = vmatprep.subr.mxu0 0.0
    %2933 = vmatpush2.msra.mxu0 0.0
    %2934 = vmatprep.subr.mxu0 0.0
    %2935 = vmatpush2.msra.mxu0 0.0
    %2936 = vmatprep.subr.mxu0 0.0
    %2937 = vmatpush2.msra.mxu0 0.0
    %2938 = vmatprep.subr.mxu0 0.0
    %2939 = vmatpush2.msra.mxu0 0.0
    %2940 = vmatprep.subr.mxu0 0.0
    %2941 = vmatpush2.msra.mxu0 0.0
    %2942 = vmatprep.subr.mxu0 0.0
    %2943 = vmatpush2.msra.mxu0 0.0
    %2944 = vmatprep.subr.mxu0 0.0
    %2945 = vmatpush2.msra.mxu0 0.0
    %2946 = vmatprep.subr.mxu0 0.0
    %2947 = vmatpush2.msra.mxu0 0.0
    %2948 = vmatprep.subr.mxu0 0.0
    %2949 = vmatpush2.msra.mxu0 0.0
    %2950 = vmatprep.subr.mxu0 0.0
    %2951 = vmatpush2.msra.mxu0 0.0
    %2952 = vmatprep.subr.mxu0 0.0
    %2953 = vmatpush2.msra.mxu0 0.0
    %2954 = vmatprep.subr.mxu0 0.0
    %2955 = vmatpush2.msra.mxu0 0.0
    %2956 = vmatprep.subr.mxu0 0.0
    %2957 = vmatpush2.msra.mxu0 0.0
    %2958 = vmatprep.subr.mxu0 0.0
    %2959 = vmatpush2.msra.mxu0 0.0
    %2960 = vmatprep.mubr.f32.mxu0 0.0
    %2961 = vmatmul.mubr.f32.gmra.mxu0 %v2891
    %v2962 = vpop.f32.mrf.mxu0
    %v2963 = vadd.f32 0.0, %v2962
    %v2964 = vpop.f32.mrf.mxu0
    %2965 = vmatprep.mubr.f32.mxu0 0.0
    %2966 = vmatmul.mubr.f32.gmra.mxu0 %v2894
    %v2967 = vpop.f32.mrf.mxu0
    %v2968 = vadd.f32 0.0, %v2967
    %v2969 = vpop.f32.mrf.mxu0
    %2970 = vdwg.mxu0
    %2971 = vrot.lane.b32.xlu0 %v2353, 104
    %v2972 = vpop.permute.xlu0 %2971
    %2973 = vrot.lane.b32.xlu0 %v2358, 104
    %v2974 = vpop.permute.xlu0 %2973
    %2975 = vrot.lane.b32.xlu0 %v2353, 72
    %v2976 = vpop.permute.xlu0 %2975
    %2977 = vrot.lane.b32.xlu0 %v2358, 72
    %v2978 = vpop.permute.xlu0 %2977
    %v2979 = vsel %vm328, %v2972, 0
    %v2981 = vsel %vm328, %v2974, 0
    %v2983 = vsel %vm328, %v2976, 0
    %v2985 = vsel %vm328, %v2978, 0
    %2987 = vmatprep.subr.mxu0 0.0
    %2988 = vmatpush1.xpose.msra.mxu0 0.0
    %2989 = vmatprep.subr.mxu0 0.0
    %2990 = vmatpush1.xpose.msra.mxu0 0.0
    %2991 = vmatprep.subr.mxu0 0.0
    %2992 = vmatpush1.xpose.msra.mxu0 0.0
    %2993 = vmatprep.subr.mxu0 0.0
    %2994 = vmatpush1.xpose.msra.mxu0 0.0
    %2995 = vmatprep.subr.mxu0 0.0
    %2996 = vmatpush1.xpose.msra.mxu0 0.0
    %2997 = vmatprep.subr.mxu0 0.0
    %2998 = vmatpush1.xpose.msra.mxu0 0.0
    %2999 = vmatprep.subr.mxu0 0.0
    %3000 = vmatpush1.xpose.msra.mxu0 0.0
    %3001 = vmatprep.subr.mxu0 0.0
    %3002 = vmatpush1.xpose.msra.mxu0 0.0
    %3003 = vmatprep.subr.mxu0 0.0
    %3004 = vmatpush1.xpose.msra.mxu0 0.0
    %3005 = vmatprep.subr.mxu0 0.0
    %3006 = vmatpush1.xpose.msra.mxu0 0.0
    %3007 = vmatprep.subr.mxu0 0.0
    %3008 = vmatpush1.xpose.msra.mxu0 0.0
    %3009 = vmatprep.subr.mxu0 0.0
    %3010 = vmatpush1.xpose.msra.mxu0 0.0
    %3011 = vmatprep.subr.mxu0 0.0
    %3012 = vmatpush1.xpose.msra.mxu0 0.0
    %3013 = vmatprep.subr.mxu0 0.0
    %3014 = vmatpush1.xpose.msra.mxu0 0.0
    %3015 = vmatprep.subr.mxu0 0.0
    %3016 = vmatpush1.xpose.msra.mxu0 %v2985
    %3017 = vmatprep.subr.mxu0 0.0
    %3018 = vmatpush1.xpose.msra.mxu0 %v2983
    %3019 = vmatprep.subr.mxu0 0.0
    %3020 = vmatpush2.xpose.msra.mxu0 0.0
    %3021 = vmatprep.subr.mxu0 0.0
    %3022 = vmatpush2.xpose.msra.mxu0 0.0
    %3023 = vmatprep.subr.mxu0 0.0
    %3024 = vmatpush2.xpose.msra.mxu0 0.0
    %3025 = vmatprep.subr.mxu0 0.0
    %3026 = vmatpush2.xpose.msra.mxu0 0.0
    %3027 = vmatprep.subr.mxu0 0.0
    %3028 = vmatpush2.xpose.msra.mxu0 0.0
    %3029 = vmatprep.subr.mxu0 0.0
    %3030 = vmatpush2.xpose.msra.mxu0 0.0
    %3031 = vmatprep.subr.mxu0 0.0
    %3032 = vmatpush2.xpose.msra.mxu0 0.0
    %3033 = vmatprep.subr.mxu0 0.0
    %3034 = vmatpush2.xpose.msra.mxu0 0.0
    %3035 = vmatprep.subr.mxu0 0.0
    %3036 = vmatpush2.xpose.msra.mxu0 0.0
    %3037 = vmatprep.subr.mxu0 0.0
    %3038 = vmatpush2.xpose.msra.mxu0 0.0
    %3039 = vmatprep.subr.mxu0 0.0
    %3040 = vmatpush2.xpose.msra.mxu0 0.0
    %3041 = vmatprep.subr.mxu0 0.0
    %3042 = vmatpush2.xpose.msra.mxu0 0.0
    %3043 = vmatprep.subr.mxu0 0.0
    %3044 = vmatpush2.xpose.msra.mxu0 0.0
    %3045 = vmatprep.subr.mxu0 0.0
    %3046 = vmatpush2.xpose.msra.mxu0 0.0
    %3047 = vmatprep.subr.mxu0 0.0
    %3048 = vmatpush2.xpose.msra.mxu0 0.0
    %3049 = vmatprep.subr.mxu0 0.0
    %3050 = vmatpush2.xpose.msra.mxu0 0.0
    %3051 = vmatprep.mubr.f32.mxu0 0.0
    %3052 = vmatmul.mubr.f32.gmra.mxu0 %v2979
    %v3053 = vpop.f32.mrf.mxu0
    %v3054 = vadd.f32 0.0, %v3053
    %v3055 = vpop.f32.mrf.mxu0
    %3056 = vmatprep.mubr.f32.mxu0 0.0
    %3057 = vmatmul.mubr.f32.gmra.mxu0 %v2981
    %v3058 = vpop.f32.mrf.mxu0
    %v3059 = vadd.f32 0.0, %v3058
    %v3060 = vpop.f32.mrf.mxu0
    %3061 = vdwg.mxu0
    %v3062 = vmul.f32 %v3054, 0.35355338
    %v3063 = vmul.f32 %v3059, 0.35355338
    %v3064 = vadd.f32 %v3062, %v122
    %v3065 = vadd.f32 %v3063, %v123
    %v3066 = vsel %vm416, %v3064, -inf
    %3067 = vmax.xlane.f32.xlu0 %v3066
    %v3068 = vpop.xlane.xlu0 %3067
    %v3069 = vsel %vm416, %v3065, -inf
    %3070 = vmax.xlane.f32.xlu0 %v3069
    %v3071 = vpop.xlane.xlu0 %3070
    %v3072 = vsub.f32 %v3064, %v3068
    %v3073 = vsub.f32 %v3065, %v3071
    %v3074 = vmul.f32 %v3072, 1.442695
    %v3075 = vpow.pop %v3074
    %v3076 = vmul.f32 %v3073, 1.442695
    %v3077 = vpow.pop %v3076
    %v3078 = vsel %vm416, %v3075, 0.0
    %3079 = vadd.xlane.f32.xlu0 %v3078
    %v3080 = vpop.xlane.xlu0 %3079
    %v3081 = vsel %vm416, %v3077, 0.0
    %3082 = vadd.xlane.f32.xlu0 %v3081
    %v3083 = vpop.xlane.xlu0 %3082
    %v3084 = vrcp.pop %v3080
    %v3085 = vmul.f32 %v3075, %v3084
    %v3086 = vrcp.pop %v3083
    %v3087 = vmul.f32 %v3077, %v3086
    %3088 = vrot.lane.b32.xlu0 %v2353, 40
    %v3089 = vpop.permute.xlu0 %3088
    %3090 = vrot.lane.b32.xlu0 %v2358, 40
    %v3091 = vpop.permute.xlu0 %3090
    %v3095 = vsel %vm416, %v3085, 0
    %v3098 = vsel %vm416, %v3087, 0
    %3100 = vmatprep.subr.mxu0 0.0
    %3101 = vmatpush1.msra.mxu0 0.0
    %3102 = vmatprep.subr.mxu0 0.0
    %3103 = vmatpush1.msra.mxu0 0.0
    %3104 = vmatprep.subr.mxu0 0.0
    %3105 = vmatpush1.msra.mxu0 0.0
    %3106 = vmatprep.subr.mxu0 0.0
    %3107 = vmatpush1.msra.mxu0 0.0
    %3108 = vmatprep.subr.mxu0 0.0
    %3109 = vmatpush1.msra.mxu0 0.0
    %3110 = vmatprep.subr.mxu0 0.0
    %3111 = vmatpush1.msra.mxu0 0.0
    %3112 = vmatprep.subr.mxu0 0.0
    %3113 = vmatpush1.msra.mxu0 0.0
    %3114 = vmatprep.subr.mxu0 0.0
    %3115 = vmatpush1.msra.mxu0 0.0
    %3116 = vmatprep.subr.mxu0 0.0
    %3117 = vmatpush1.msra.mxu0 0.0
    %3118 = vmatprep.subr.mxu0 0.0
    %3119 = vmatpush1.msra.mxu0 0.0
    %3120 = vmatprep.subr.mxu0 0.0
    %3121 = vmatpush1.msra.mxu0 0.0
    %3122 = vmatprep.subr.mxu0 0.0
    %3123 = vmatpush1.msra.mxu0 0.0
    %3124 = vmatprep.subr.mxu0 0.0
    %3125 = vmatpush1.msra.mxu0 0.0
    %3126 = vmatprep.subr.mxu0 0.0
    %3127 = vmatpush1.msra.mxu0 0.0
    %3128 = vmatprep.subr.mxu0 0.0
    %3129 = vmatpush1.msra.mxu0 %v3091
    %3130 = vmatprep.subr.mxu0 0.0
    %3131 = vmatpush1.msra.mxu0 %v3089
    %3132 = vmatprep.subr.mxu0 0.0
    %3133 = vmatpush2.msra.mxu0 0.0
    %3134 = vmatprep.subr.mxu0 0.0
    %3135 = vmatpush2.msra.mxu0 0.0
    %3136 = vmatprep.subr.mxu0 0.0
    %3137 = vmatpush2.msra.mxu0 0.0
    %3138 = vmatprep.subr.mxu0 0.0
    %3139 = vmatpush2.msra.mxu0 0.0
    %3140 = vmatprep.subr.mxu0 0.0
    %3141 = vmatpush2.msra.mxu0 0.0
    %3142 = vmatprep.subr.mxu0 0.0
    %3143 = vmatpush2.msra.mxu0 0.0
    %3144 = vmatprep.subr.mxu0 0.0
    %3145 = vmatpush2.msra.mxu0 0.0
    %3146 = vmatprep.subr.mxu0 0.0
    %3147 = vmatpush2.msra.mxu0 0.0
    %3148 = vmatprep.subr.mxu0 0.0
    %3149 = vmatpush2.msra.mxu0 0.0
    %3150 = vmatprep.subr.mxu0 0.0
    %3151 = vmatpush2.msra.mxu0 0.0
    %3152 = vmatprep.subr.mxu0 0.0
    %3153 = vmatpush2.msra.mxu0 0.0
    %3154 = vmatprep.subr.mxu0 0.0
    %3155 = vmatpush2.msra.mxu0 0.0
    %3156 = vmatprep.subr.mxu0 0.0
    %3157 = vmatpush2.msra.mxu0 0.0
    %3158 = vmatprep.subr.mxu0 0.0
    %3159 = vmatpush2.msra.mxu0 0.0
    %3160 = vmatprep.subr.mxu0 0.0
    %3161 = vmatpush2.msra.mxu0 0.0
    %3162 = vmatprep.subr.mxu0 0.0
    %3163 = vmatpush2.msra.mxu0 0.0
    %3164 = vmatprep.mubr.f32.mxu0 0.0
    %3165 = vmatmul.mubr.f32.gmra.mxu0 %v3095
    %v3166 = vpop.f32.mrf.mxu0
    %v3167 = vadd.f32 0.0, %v3166
    %v3168 = vpop.f32.mrf.mxu0
    %3169 = vmatprep.mubr.f32.mxu0 0.0
    %3170 = vmatmul.mubr.f32.gmra.mxu0 %v3098
    %v3171 = vpop.f32.mrf.mxu0
    %v3172 = vadd.f32 0.0, %v3171
    %v3173 = vpop.f32.mrf.mxu0
    %3174 = vdwg.mxu0
    %3177 = vrot.lane.b32.xlu0 %v2759, 8
    %v3178 = vpop.permute.xlu0 %3177
    %3179 = vrot.lane.b32.xlu0 %v2764, 8
    %v3180 = vpop.permute.xlu0 %3179
    %3185 = vrot.lane.b32.xlu0 %v2963, 16
    %v3186 = vpop.permute.xlu0 %3185
    %3187 = vrot.lane.b32.xlu0 %v2968, 16
    %v3188 = vpop.permute.xlu0 %3187
    %3193 = vrot.lane.b32.xlu0 %v3167, 24
    %v3194 = vpop.permute.xlu0 %3193
    %3195 = vrot.lane.b32.xlu0 %v3172, 24
    %v3196 = vpop.permute.xlu0 %3195
    %v3199 = vsel %vm328, %v2555, %v3178
    %v3200 = vsel %vm328, %v2560, %v3180
    %v3201 = vsel %vm416, %v3199, %v3186
    %v3202 = vsel %vm416, %v3200, %v3188
    %v3203 = vsel %vm1166, %v3201, %v3194
    %v3204 = vsel %vm1166, %v3202, %v3196
    %v3206 = vsel %vm242, %v3203, 0
    %v3209 = vsel %vm242, %v3204, 0
    %3211 = vmatprep.subr.mxu0 0.0
    %3212 = vmatpush1.msra.mxu0 0.0
    %3213 = vmatprep.subr.mxu0 0.0
    %3214 = vmatpush1.msra.mxu0 0.0
    %3215 = vmatprep.subr.mxu0 0.0
    %3216 = vmatpush1.msra.mxu0 0.0
    %3217 = vmatprep.subr.mxu0 0.0
    %3218 = vmatpush1.msra.mxu0 0.0
    %3219 = vmatprep.subr.mxu0 0.0
    %3220 = vmatpush1.msra.mxu0 0.0
    %3221 = vmatprep.subr.mxu0 0.0
    %3222 = vmatpush1.msra.mxu0 0.0
    %3223 = vmatprep.subr.mxu0 0.0
    %3224 = vmatpush1.msra.mxu0 0.0
    %3225 = vmatprep.subr.mxu0 0.0
    %3226 = vmatpush1.msra.mxu0 0.0
    %3227 = vmatprep.subr.mxu0 0.0
    %3228 = vmatpush1.msra.mxu0 0.0
    %3229 = vmatprep.subr.mxu0 0.0
    %3230 = vmatpush1.msra.mxu0 0.0
    %3231 = vmatprep.subr.mxu0 0.0
    %3232 = vmatpush1.msra.mxu0 0.0
    %3233 = vmatprep.subr.mxu0 0.0
    %3234 = vmatpush1.msra.mxu0 0.0
    %3235 = vmatprep.subr.mxu0 0.0
    %3236 = vmatpush1.msra.mxu0 %v66
    %3237 = vmatprep.subr.mxu0 0.0
    %3238 = vmatpush1.msra.mxu0 %v65
    %3239 = vmatprep.subr.mxu0 0.0
    %3240 = vmatpush1.msra.mxu0 %v64
    %3241 = vmatprep.subr.mxu0 0.0
    %3242 = vmatpush1.msra.mxu0 %v63
    %3243 = vmatprep.subr.mxu0 0.0
    %3244 = vmatpush2.msra.mxu0 0.0
    %3245 = vmatprep.subr.mxu0 0.0
    %3246 = vmatpush2.msra.mxu0 0.0
    %3247 = vmatprep.subr.mxu0 0.0
    %3248 = vmatpush2.msra.mxu0 0.0
    %3249 = vmatprep.subr.mxu0 0.0
    %3250 = vmatpush2.msra.mxu0 0.0
    %3251 = vmatprep.subr.mxu0 0.0
    %3252 = vmatpush2.msra.mxu0 0.0
    %3253 = vmatprep.subr.mxu0 0.0
    %3254 = vmatpush2.msra.mxu0 0.0
    %3255 = vmatprep.subr.mxu0 0.0
    %3256 = vmatpush2.msra.mxu0 0.0
    %3257 = vmatprep.subr.mxu0 0.0
    %3258 = vmatpush2.msra.mxu0 0.0
    %3259 = vmatprep.subr.mxu0 0.0
    %3260 = vmatpush2.msra.mxu0 0.0
    %3261 = vmatprep.subr.mxu0 0.0
    %3262 = vmatpush2.msra.mxu0 0.0
    %3263 = vmatprep.subr.mxu0 0.0
    %3264 = vmatpush2.msra.mxu0 0.0
    %3265 = vmatprep.subr.mxu0 0.0
    %3266 = vmatpush2.msra.mxu0 0.0
    %3267 = vmatprep.subr.mxu0 0.0
    %3268 = vmatpush2.msra.mxu0 0.0
    %3269 = vmatprep.subr.mxu0 0.0
    %3270 = vmatpush2.msra.mxu0 0.0
    %3271 = vmatprep.subr.mxu0 0.0
    %3272 = vmatpush2.msra.mxu0 0.0
    %3273 = vmatprep.subr.mxu0 0.0
    %3274 = vmatpush2.msra.mxu0 0.0
    %3275 = vmatprep.mubr.f32.mxu0 0.0
    %3276 = vmatmul.mubr.f32.gmra.mxu0 %v3206
    %v3277 = vpop.f32.mrf.mxu0
    %v3278 = vadd.f32 %v1172, %v3277
    %v3279 = vpop.f32.mrf.mxu0
    %3280 = vmatprep.mubr.f32.mxu0 0.0
    %3281 = vmatmul.mubr.f32.gmra.mxu0 %v3209
    %v3282 = vpop.f32.mrf.mxu0
    %v3283 = vadd.f32 %v1172, %v3282
    %v3284 = vpop.f32.mrf.mxu0
    %3285 = vdwg.mxu0
    %v3288 = vcombine.high %v3278, %v3278
    %v3290 = vunpack.c.l.s4 1983009808
    %v3291 = vunpack.c.0.s8 %v3290
    %v3292 = vlaneseq
    %v3293 = vshrl.u32 %v3292, 7
    %v3294 = vsub.s32 %v3291, %v3293
    %v3295 = vrot.slane %v3278, %v3294
    %v3297 = vunpack.c.l.s4 1983009808
    %v3298 = vunpack.c.0.s8 %v3297
    %v3299 = vlaneseq
    %v3300 = vshrl.u32 %v3299, 7
    %v3301 = vsub.s32 %v3298, %v3300
    %v3302 = vrot.slane %v3288, %v3301
    %v3303 = vcombine.high %v3295, %v3295
    %v3304 = vcombine.high %v3302, %v3302
    %v3305 = vcombine.high %v3283, %v3283
    %v3307 = vunpack.c.l.s4 1983009808
    %v3308 = vunpack.c.0.s8 %v3307
    %v3309 = vlaneseq
    %v3310 = vshrl.u32 %v3309, 7
    %v3311 = vsub.s32 %v3308, %v3310
    %v3312 = vrot.slane %v3283, %v3311
    %v3314 = vunpack.c.l.s4 1983009808
    %v3315 = vunpack.c.0.s8 %v3314
    %v3316 = vlaneseq
    %v3317 = vshrl.u32 %v3316, 7
    %v3318 = vsub.s32 %v3315, %v3317
    %v3319 = vrot.slane %v3305, %v3318
    %v3320 = vcombine.high %v3312, %v3312
    %v3321 = vcombine.high %v3319, %v3319
    %v3330 = vadd.f32 %v2228, %v3295
    %v3331 = vadd.f32 %v2229, %v3303
    %v3332 = vadd.f32 %v2230, %v3302
    %v3333 = vadd.f32 %v2231, %v3304
    %v3334 = vadd.f32 %v2232, %v3312
    %v3335 = vadd.f32 %v2233, %v3320
    %v3336 = vadd.f32 %v2234, %v3319
    %v3337 = vadd.f32 %v2235, %v3321
    %v3346 = vcombine.low %v3330, %v3331
    %v3347 = vcombine.low %v3332, %v3333
    %v3349 = vunpack.c.l.s4 1983009808
    %v3350 = vunpack.c.0.s8 %v3349
    %v3351 = vlaneseq
    %v3352 = vshrl.u32 %v3351, 7
    %v3353 = vsub.s32 %v3350, %v3352
    %v3354 = vrot.slane %v3346, %v3353
    %v3356 = vunpack.c.l.s4 1983009808
    %v3357 = vunpack.c.0.s8 %v3356
    %v3358 = vlaneseq
    %v3359 = vshrl.u32 %v3358, 7
    %v3360 = vsub.s32 %v3357, %v3359
    %v3361 = vrot.slane %v3347, %v3360
    %v3362 = vcombine.low %v3354, %v3361
    %v3363 = vcombine.low %v3334, %v3335
    %v3364 = vcombine.low %v3336, %v3337
    %v3366 = vunpack.c.l.s4 1983009808
    %v3367 = vunpack.c.0.s8 %v3366
    %v3368 = vlaneseq
    %v3369 = vshrl.u32 %v3368, 7
    %v3370 = vsub.s32 %v3367, %v3369
    %v3371 = vrot.slane %v3363, %v3370
    %v3373 = vunpack.c.l.s4 1983009808
    %v3374 = vunpack.c.0.s8 %v3373
    %v3375 = vlaneseq
    %v3376 = vshrl.u32 %v3375, 7
    %v3377 = vsub.s32 %v3374, %v3376
    %v3378 = vrot.slane %v3364, %v3377
    %v3379 = vcombine.low %v3371, %v3378
    %v3382 = vsel %vm242, %v3362, 0.0
    %3383 = vadd.xlane.f32.xlu0 %v3382
    %v3384 = vpop.xlane.xlu0 %3383
    %v3385 = vsel %vm242, %v3379, 0.0
    %3386 = vadd.xlane.f32.xlu0 %v3385
    %v3387 = vpop.xlane.xlu0 %3386
    %v3388 = vmul.f32 %v3384, %v1356
    %v3389 = vmul.f32 %v3387, %v1356
    %v3393 = vunpack.c.l.s4 269488144
    %v3394 = vunpack.c.0.s8 %v3393
    %v3395 = vlaneseq
    %v3396 = vshrl.u32 %v3395, 7
    %v3397 = vsub.s32 %v3394, %v3396
    %v3398 = vrot.slane %v3388, %v3397
    %v3400 = vunpack.c.l.s4 842150450
    %v3401 = vunpack.c.0.s8 %v3400
    %v3402 = vlaneseq
    %v3403 = vshrl.u32 %v3402, 7
    %v3404 = vsub.s32 %v3401, %v3403
    %v3405 = vrot.slane %v3388, %v3404
    %v3407 = vunpack.c.l.s4 1414812756
    %v3408 = vunpack.c.0.s8 %v3407
    %v3409 = vlaneseq
    %v3410 = vshrl.u32 %v3409, 7
    %v3411 = vsub.s32 %v3408, %v3410
    %v3412 = vrot.slane %v3388, %v3411
    %v3414 = vunpack.c.l.s4 1987475062
    %v3415 = vunpack.c.0.s8 %v3414
    %v3416 = vlaneseq
    %v3417 = vshrl.u32 %v3416, 7
    %v3418 = vsub.s32 %v3415, %v3417
    %v3419 = vrot.slane %v3388, %v3418
    %v3421 = vunpack.c.l.s4 269488144
    %v3422 = vunpack.c.0.s8 %v3421
    %v3423 = vlaneseq
    %v3424 = vshrl.u32 %v3423, 7
    %v3425 = vsub.s32 %v3422, %v3424
    %v3426 = vrot.slane %v3389, %v3425
    %v3428 = vunpack.c.l.s4 842150450
    %v3429 = vunpack.c.0.s8 %v3428
    %v3430 = vlaneseq
    %v3431 = vshrl.u32 %v3430, 7
    %v3432 = vsub.s32 %v3429, %v3431
    %v3433 = vrot.slane %v3389, %v3432
    %v3435 = vunpack.c.l.s4 1414812756
    %v3436 = vunpack.c.0.s8 %v3435
    %v3437 = vlaneseq
    %v3438 = vshrl.u32 %v3437, 7
    %v3439 = vsub.s32 %v3436, %v3438
    %v3440 = vrot.slane %v3389, %v3439
    %v3442 = vunpack.c.l.s4 1987475062
    %v3443 = vunpack.c.0.s8 %v3442
    %v3444 = vlaneseq
    %v3445 = vshrl.u32 %v3444, 7
    %v3446 = vsub.s32 %v3443, %v3445
    %v3447 = vrot.slane %v3389, %v3446
    %v3456 = vsub.f32 %v3330, %v3398
    %v3457 = vsub.f32 %v3331, %v3405
    %v3458 = vsub.f32 %v3332, %v3412
    %v3459 = vsub.f32 %v3333, %v3419
    %v3460 = vsub.f32 %v3334, %v3426
    %v3461 = vsub.f32 %v3335, %v3433
    %v3462 = vsub.f32 %v3336, %v3440
    %v3463 = vsub.f32 %v3337, %v3447
    %v3464 = vmul.f32 %v3456, %v3456
    %v3465 = vmul.f32 %v3457, %v3457
    %v3466 = vmul.f32 %v3458, %v3458
    %v3467 = vmul.f32 %v3459, %v3459
    %v3468 = vmul.f32 %v3460, %v3460
    %v3469 = vmul.f32 %v3461, %v3461
    %v3470 = vmul.f32 %v3462, %v3462
    %v3471 = vmul.f32 %v3463, %v3463
    %v3480 = vcombine.low %v3464, %v3465
    %v3481 = vcombine.low %v3466, %v3467
    %v3483 = vunpack.c.l.s4 1983009808
    %v3484 = vunpack.c.0.s8 %v3483
    %v3485 = vlaneseq
    %v3486 = vshrl.u32 %v3485, 7
    %v3487 = vsub.s32 %v3484, %v3486
    %v3488 = vrot.slane %v3480, %v3487
    %v3490 = vunpack.c.l.s4 1983009808
    %v3491 = vunpack.c.0.s8 %v3490
    %v3492 = vlaneseq
    %v3493 = vshrl.u32 %v3492, 7
    %v3494 = vsub.s32 %v3491, %v3493
    %v3495 = vrot.slane %v3481, %v3494
    %v3496 = vcombine.low %v3488, %v3495
    %v3497 = vcombine.low %v3468, %v3469
    %v3498 = vcombine.low %v3470, %v3471
    %v3500 = vunpack.c.l.s4 1983009808
    %v3501 = vunpack.c.0.s8 %v3500
    %v3502 = vlaneseq
    %v3503 = vshrl.u32 %v3502, 7
    %v3504 = vsub.s32 %v3501, %v3503
    %v3505 = vrot.slane %v3497, %v3504
    %v3507 = vunpack.c.l.s4 1983009808
    %v3508 = vunpack.c.0.s8 %v3507
    %v3509 = vlaneseq
    %v3510 = vshrl.u32 %v3509, 7
    %v3511 = vsub.s32 %v3508, %v3510
    %v3512 = vrot.slane %v3498, %v3511
    %v3513 = vcombine.low %v3505, %v3512
    %v3516 = vsel %vm242, %v3496, 0.0
    %3517 = vadd.xlane.f32.xlu0 %v3516
    %v3518 = vpop.xlane.xlu0 %3517
    %v3519 = vsel %vm242, %v3513, 0.0
    %3520 = vadd.xlane.f32.xlu0 %v3519
    %v3521 = vpop.xlane.xlu0 %3520
    %v3522 = vmul.f32 %v3518, %v1356
    %v3523 = vmul.f32 %v3521, %v1356
    %v3524 = vadd.f32 %v3522, 1e-05
    %v3525 = vadd.f32 %v3523, 1e-05
    %v3526 = vrsqrt.pop %v3524
    %v3527 = vrsqrt.pop %v3525
    %v3531 = vunpack.c.l.s4 269488144
    %v3532 = vunpack.c.0.s8 %v3531
    %v3533 = vlaneseq
    %v3534 = vshrl.u32 %v3533, 7
    %v3535 = vsub.s32 %v3532, %v3534
    %v3536 = vrot.slane %v3526, %v3535
    %v3538 = vunpack.c.l.s4 842150450
    %v3539 = vunpack.c.0.s8 %v3538
    %v3540 = vlaneseq
    %v3541 = vshrl.u32 %v3540, 7
    %v3542 = vsub.s32 %v3539, %v3541
    %v3543 = vrot.slane %v3526, %v3542
    %v3545 = vunpack.c.l.s4 1414812756
    %v3546 = vunpack.c.0.s8 %v3545
    %v3547 = vlaneseq
    %v3548 = vshrl.u32 %v3547, 7
    %v3549 = vsub.s32 %v3546, %v3548
    %v3550 = vrot.slane %v3526, %v3549
    %v3552 = vunpack.c.l.s4 1987475062
    %v3553 = vunpack.c.0.s8 %v3552
    %v3554 = vlaneseq
    %v3555 = vshrl.u32 %v3554, 7
    %v3556 = vsub.s32 %v3553, %v3555
    %v3557 = vrot.slane %v3526, %v3556
    %v3559 = vunpack.c.l.s4 269488144
    %v3560 = vunpack.c.0.s8 %v3559
    %v3561 = vlaneseq
    %v3562 = vshrl.u32 %v3561, 7
    %v3563 = vsub.s32 %v3560, %v3562
    %v3564 = vrot.slane %v3527, %v3563
    %v3566 = vunpack.c.l.s4 842150450
    %v3567 = vunpack.c.0.s8 %v3566
    %v3568 = vlaneseq
    %v3569 = vshrl.u32 %v3568, 7
    %v3570 = vsub.s32 %v3567, %v3569
    %v3571 = vrot.slane %v3527, %v3570
    %v3573 = vunpack.c.l.s4 1414812756
    %v3574 = vunpack.c.0.s8 %v3573
    %v3575 = vlaneseq
    %v3576 = vshrl.u32 %v3575, 7
    %v3577 = vsub.s32 %v3574, %v3576
    %v3578 = vrot.slane %v3527, %v3577
    %v3580 = vunpack.c.l.s4 1987475062
    %v3581 = vunpack.c.0.s8 %v3580
    %v3582 = vlaneseq
    %v3583 = vshrl.u32 %v3582, 7
    %v3584 = vsub.s32 %v3581, %v3583
    %v3585 = vrot.slane %v3527, %v3584
    %v3594 = vmul.f32 %v3456, %v3536
    %v3595 = vmul.f32 %v3457, %v3543
    %v3596 = vmul.f32 %v3458, %v3550
    %v3597 = vmul.f32 %v3459, %v3557
    %v3598 = vmul.f32 %v3460, %v3564
    %v3599 = vmul.f32 %v3461, %v3571
    %v3600 = vmul.f32 %v3462, %v3578
    %v3601 = vmul.f32 %v3463, %v3585
    %v3602 = vmul.f32 %v3594, %v1583
    %v3603 = vmul.f32 %v3595, %v1591
    %v3604 = vmul.f32 %v3596, %v1590
    %v3605 = vmul.f32 %v3597, %v1592
    %v3606 = vmul.f32 %v3598, %v1583
    %v3607 = vmul.f32 %v3599, %v1591
    %v3608 = vmul.f32 %v3600, %v1590
    %v3609 = vmul.f32 %v3601, %v1592
    %v3610 = vadd.f32 %v3602, %v1617
    %v3611 = vadd.f32 %v3603, %v1625
    %v3612 = vadd.f32 %v3604, %v1624
    %v3613 = vadd.f32 %v3605, %v1626
    %v3614 = vadd.f32 %v3606, %v1617
    %v3615 = vadd.f32 %v3607, %v1625
    %v3616 = vadd.f32 %v3608, %v1624
    %v3617 = vadd.f32 %v3609, %v1626
    %v3626 = vcombine.low %v3610, %v3611
    %v3627 = vcombine.low %v3612, %v3613
    %v3629 = vunpack.c.l.s4 1983009808
    %v3630 = vunpack.c.0.s8 %v3629
    %v3631 = vlaneseq
    %v3632 = vshrl.u32 %v3631, 7
    %v3633 = vsub.s32 %v3630, %v3632
    %v3634 = vrot.slane %v3626, %v3633
    %v3636 = vunpack.c.l.s4 1983009808
    %v3637 = vunpack.c.0.s8 %v3636
    %v3638 = vlaneseq
    %v3639 = vshrl.u32 %v3638, 7
    %v3640 = vsub.s32 %v3637, %v3639
    %v3641 = vrot.slane %v3627, %v3640
    %v3642 = vcombine.low %v3634, %v3641
    %v3643 = vcombine.low %v3614, %v3615
    %v3644 = vcombine.low %v3616, %v3617
    %v3646 = vunpack.c.l.s4 1983009808
    %v3647 = vunpack.c.0.s8 %v3646
    %v3648 = vlaneseq
    %v3649 = vshrl.u32 %v3648, 7
    %v3650 = vsub.s32 %v3647, %v3649
    %v3651 = vrot.slane %v3643, %v3650
    %v3653 = vunpack.c.l.s4 1983009808
    %v3654 = vunpack.c.0.s8 %v3653
    %v3655 = vlaneseq
    %v3656 = vshrl.u32 %v3655, 7
    %v3657 = vsub.s32 %v3654, %v3656
    %v3658 = vrot.slane %v3644, %v3657
    %v3659 = vcombine.low %v3651, %v3658
    %v3660 = vsel %vm242, %v3642, 0
    %v3662 = vsel %vm242, %v3659, 0
    %3664 = vmatprep.subr.mxu0 0.0
    %3665 = vmatpush1.msra.mxu0 0.0
    %3666 = vmatprep.subr.mxu0 0.0
    %3667 = vmatpush1.msra.mxu0 0.0
    %3668 = vmatprep.subr.mxu0 0.0
    %3669 = vmatpush1.msra.mxu0 0.0
    %3670 = vmatprep.subr.mxu0 0.0
    %3671 = vmatpush1.msra.mxu0 0.0
    %3672 = vmatprep.subr.mxu0 0.0
    %3673 = vmatpush1.msra.mxu0 0.0
    %3674 = vmatprep.subr.mxu0 0.0
    %3675 = vmatpush1.msra.mxu0 0.0
    %3676 = vmatprep.subr.mxu0 0.0
    %3677 = vmatpush1.msra.mxu0 0.0
    %3678 = vmatprep.subr.mxu0 0.0
    %3679 = vmatpush1.msra.mxu0 0.0
    %3680 = vmatprep.subr.mxu0 0.0
    %3681 = vmatpush1.msra.mxu0 0.0
    %3682 = vmatprep.subr.mxu0 0.0
    %3683 = vmatpush1.msra.mxu0 0.0
    %3684 = vmatprep.subr.mxu0 0.0
    %3685 = vmatpush1.msra.mxu0 0.0
    %3686 = vmatprep.subr.mxu0 0.0
    %3687 = vmatpush1.msra.mxu0 0.0
    %3688 = vmatprep.subr.mxu0 0.0
    %3689 = vmatpush1.msra.mxu0 %v70
    %3690 = vmatprep.subr.mxu0 0.0
    %3691 = vmatpush1.msra.mxu0 %v69
    %3692 = vmatprep.subr.mxu0 0.0
    %3693 = vmatpush1.msra.mxu0 %v68
    %3694 = vmatprep.subr.mxu0 0.0
    %3695 = vmatpush1.msra.mxu0 %v67
    %3696 = vmatprep.subr.mxu0 0.0
    %3697 = vmatpush2.msra.mxu0 0.0
    %3698 = vmatprep.subr.mxu0 0.0
    %3699 = vmatpush2.msra.mxu0 0.0
    %3700 = vmatprep.subr.mxu0 0.0
    %3701 = vmatpush2.msra.mxu0 0.0
    %3702 = vmatprep.subr.mxu0 0.0
    %3703 = vmatpush2.msra.mxu0 0.0
    %3704 = vmatprep.subr.mxu0 0.0
    %3705 = vmatpush2.msra.mxu0 0.0
    %3706 = vmatprep.subr.mxu0 0.0
    %3707 = vmatpush2.msra.mxu0 0.0
    %3708 = vmatprep.subr.mxu0 0.0
    %3709 = vmatpush2.msra.mxu0 0.0
    %3710 = vmatprep.subr.mxu0 0.0
    %3711 = vmatpush2.msra.mxu0 0.0
    %3712 = vmatprep.subr.mxu0 0.0
    %3713 = vmatpush2.msra.mxu0 0.0
    %3714 = vmatprep.subr.mxu0 0.0
    %3715 = vmatpush2.msra.mxu0 0.0
    %3716 = vmatprep.subr.mxu0 0.0
    %3717 = vmatpush2.msra.mxu0 0.0
    %3718 = vmatprep.subr.mxu0 0.0
    %3719 = vmatpush2.msra.mxu0 0.0
    %3720 = vmatprep.subr.mxu0 0.0
    %3721 = vmatpush2.msra.mxu0 0.0
    %3722 = vmatprep.subr.mxu0 0.0
    %3723 = vmatpush2.msra.mxu0 0.0
    %3724 = vmatprep.subr.mxu0 0.0
    %3725 = vmatpush2.msra.mxu0 0.0
    %3726 = vmatprep.subr.mxu0 0.0
    %3727 = vmatpush2.msra.mxu0 0.0
    %3728 = vmatprep.mubr.f32.mxu0 0.0
    %3729 = vmatmul.mubr.f32.gmra.mxu0 %v3660
    %v3730 = vpop.f32.mrf.mxu0
    %v3731 = vadd.f32 %v1642, %v3730
    %v3732 = vpop.f32.mrf.mxu0
    %3733 = vmatprep.mubr.f32.mxu0 0.0
    %3734 = vmatmul.mubr.f32.gmra.mxu0 %v3662
    %v3735 = vpop.f32.mrf.mxu0
    %v3736 = vadd.f32 %v1642, %v3735
    %v3737 = vpop.f32.mrf.mxu0
    %3738 = vdwg.mxu0
    %v3739 = vmax.f32 %v3731, 0.0
    %v3740 = vmax.f32 %v3736, 0.0
    %v3742 = vsel %vm1770, %v3739, 0
    %v3745 = vsel %vm1770, %v3740, 0
    %3747 = vmatprep.subr.mxu0 0.0
    %3748 = vmatpush1.msra.mxu0 0.0
    %3749 = vmatprep.subr.mxu0 0.0
    %3750 = vmatpush1.msra.mxu0 0.0
    %3751 = vmatprep.subr.mxu0 0.0
    %3752 = vmatpush1.msra.mxu0 0.0
    %3753 = vmatprep.subr.mxu0 0.0
    %3754 = vmatpush1.msra.mxu0 0.0
    %3755 = vmatprep.subr.mxu0 0.0
    %3756 = vmatpush1.msra.mxu0 0.0
    %3757 = vmatprep.subr.mxu0 0.0
    %3758 = vmatpush1.msra.mxu0 0.0
    %3759 = vmatprep.subr.mxu0 0.0
    %3760 = vmatpush1.msra.mxu0 0.0
    %3761 = vmatprep.subr.mxu0 0.0
    %3762 = vmatpush1.msra.mxu0 0.0
    %3763 = vmatprep.subr.mxu0 0.0
    %3764 = vmatpush1.msra.mxu0 %v78
    %3765 = vmatprep.subr.mxu0 0.0
    %3766 = vmatpush1.msra.mxu0 %v77
    %3767 = vmatprep.subr.mxu0 0.0
    %3768 = vmatpush1.msra.mxu0 %v76
    %3769 = vmatprep.subr.mxu0 0.0
    %3770 = vmatpush1.msra.mxu0 %v75
    %3771 = vmatprep.subr.mxu0 0.0
    %3772 = vmatpush1.msra.mxu0 %v74
    %3773 = vmatprep.subr.mxu0 0.0
    %3774 = vmatpush1.msra.mxu0 %v73
    %3775 = vmatprep.subr.mxu0 0.0
    %3776 = vmatpush1.msra.mxu0 %v72
    %3777 = vmatprep.subr.mxu0 0.0
    %3778 = vmatpush1.msra.mxu0 %v71
    %3779 = vmatprep.subr.mxu0 0.0
    %3780 = vmatpush2.msra.mxu0 0.0
    %3781 = vmatprep.subr.mxu0 0.0
    %3782 = vmatpush2.msra.mxu0 0.0
    %3783 = vmatprep.subr.mxu0 0.0
    %3784 = vmatpush2.msra.mxu0 0.0
    %3785 = vmatprep.subr.mxu0 0.0
    %3786 = vmatpush2.msra.mxu0 0.0
    %3787 = vmatprep.subr.mxu0 0.0
    %3788 = vmatpush2.msra.mxu0 0.0
    %3789 = vmatprep.subr.mxu0 0.0
    %3790 = vmatpush2.msra.mxu0 0.0
    %3791 = vmatprep.subr.mxu0 0.0
    %3792 = vmatpush2.msra.mxu0 0.0
    %3793 = vmatprep.subr.mxu0 0.0
    %3794 = vmatpush2.msra.mxu0 0.0
    %3795 = vmatprep.subr.mxu0 0.0
    %3796 = vmatpush2.msra.mxu0 0.0
    %3797 = vmatprep.subr.mxu0 0.0
    %3798 = vmatpush2.msra.mxu0 0.0
    %3799 = vmatprep.subr.mxu0 0.0
    %3800 = vmatpush2.msra.mxu0 0.0
    %3801 = vmatprep.subr.mxu0 0.0
    %3802 = vmatpush2.msra.mxu0 0.0
    %3803 = vmatprep.subr.mxu0 0.0
    %3804 = vmatpush2.msra.mxu0 0.0
    %3805 = vmatprep.subr.mxu0 0.0
    %3806 = vmatpush2.msra.mxu0 0.0
    %3807 = vmatprep.subr.mxu0 0.0
    %3808 = vmatpush2.msra.mxu0 0.0
    %3809 = vmatprep.subr.mxu0 0.0
    %3810 = vmatpush2.msra.mxu0 0.0
    %3811 = vmatprep.mubr.f32.mxu0 0.0
    %3812 = vmatmul.mubr.f32.gmra.mxu0 %v3742
    %v3813 = vpop.f32.mrf.mxu0
    %v3814 = vadd.f32 %v1769, %v3813
    %v3815 = vpop.f32.mrf.mxu0
    %3816 = vmatprep.mubr.f32.mxu0 0.0
    %3817 = vmatmul.mubr.f32.gmra.mxu0 %v3745
    %v3818 = vpop.f32.mrf.mxu0
    %v3819 = vadd.f32 %v1769, %v3818
    %v3820 = vpop.f32.mrf.mxu0
    %3821 = vdwg.mxu0
    %v3824 = vcombine.high %v3814, %v3814
    %v3826 = vunpack.c.l.s4 1983009808
    %v3827 = vunpack.c.0.s8 %v3826
    %v3828 = vlaneseq
    %v3829 = vshrl.u32 %v3828, 7
    %v3830 = vsub.s32 %v3827, %v3829
    %v3831 = vrot.slane %v3814, %v3830
    %v3833 = vunpack.c.l.s4 1983009808
    %v3834 = vunpack.c.0.s8 %v3833
    %v3835 = vlaneseq
    %v3836 = vshrl.u32 %v3835, 7
    %v3837 = vsub.s32 %v3834, %v3836
    %v3838 = vrot.slane %v3824, %v3837
    %v3839 = vcombine.high %v3831, %v3831
    %v3840 = vcombine.high %v3838, %v3838
    %v3841 = vcombine.high %v3819, %v3819
    %v3843 = vunpack.c.l.s4 1983009808
    %v3844 = vunpack.c.0.s8 %v3843
    %v3845 = vlaneseq
    %v3846 = vshrl.u32 %v3845, 7
    %v3847 = vsub.s32 %v3844, %v3846
    %v3848 = vrot.slane %v3819, %v3847
    %v3850 = vunpack.c.l.s4 1983009808
    %v3851 = vunpack.c.0.s8 %v3850
    %v3852 = vlaneseq
    %v3853 = vshrl.u32 %v3852, 7
    %v3854 = vsub.s32 %v3851, %v3853
    %v3855 = vrot.slane %v3841, %v3854
    %v3856 = vcombine.high %v3848, %v3848
    %v3857 = vcombine.high %v3855, %v3855
    %v3866 = vadd.f32 %v3610, %v3831
    %v3867 = vadd.f32 %v3611, %v3839
    %v3868 = vadd.f32 %v3612, %v3838
    %v3869 = vadd.f32 %v3613, %v3840
    %v3870 = vadd.f32 %v3614, %v3848
    %v3871 = vadd.f32 %v3615, %v3856
    %v3872 = vadd.f32 %v3616, %v3855
    %v3873 = vadd.f32 %v3617, %v3857
    %v3882 = vcombine.low %v3866, %v3867
    %v3883 = vcombine.low %v3868, %v3869
    %v3885 = vunpack.c.l.s4 1983009808
    %v3886 = vunpack.c.0.s8 %v3885
    %v3887 = vlaneseq
    %v3888 = vshrl.u32 %v3887, 7
    %v3889 = vsub.s32 %v3886, %v3888
    %v3890 = vrot.slane %v3882, %v3889
    %v3892 = vunpack.c.l.s4 1983009808
    %v3893 = vunpack.c.0.s8 %v3892
    %v3894 = vlaneseq
    %v3895 = vshrl.u32 %v3894, 7
    %v3896 = vsub.s32 %v3893, %v3895
    %v3897 = vrot.slane %v3883, %v3896
    %v3898 = vcombine.low %v3890, %v3897
    %v3899 = vcombine.low %v3870, %v3871
    %v3900 = vcombine.low %v3872, %v3873
    %v3902 = vunpack.c.l.s4 1983009808
    %v3903 = vunpack.c.0.s8 %v3902
    %v3904 = vlaneseq
    %v3905 = vshrl.u32 %v3904, 7
    %v3906 = vsub.s32 %v3903, %v3905
    %v3907 = vrot.slane %v3899, %v3906
    %v3909 = vunpack.c.l.s4 1983009808
    %v3910 = vunpack.c.0.s8 %v3909
    %v3911 = vlaneseq
    %v3912 = vshrl.u32 %v3911, 7
    %v3913 = vsub.s32 %v3910, %v3912
    %v3914 = vrot.slane %v3900, %v3913
    %v3915 = vcombine.low %v3907, %v3914
    %v3918 = vsel %vm242, %v3898, 0.0
    %3919 = vadd.xlane.f32.xlu0 %v3918
    %v3920 = vpop.xlane.xlu0 %3919
    %v3921 = vsel %vm242, %v3915, 0.0
    %3922 = vadd.xlane.f32.xlu0 %v3921
    %v3923 = vpop.xlane.xlu0 %3922
    %v3924 = vmul.f32 %v3920, %v1356
    %v3925 = vmul.f32 %v3923, %v1356
    %v3929 = vunpack.c.l.s4 269488144
    %v3930 = vunpack.c.0.s8 %v3929
    %v3931 = vlaneseq
    %v3932 = vshrl.u32 %v3931, 7
    %v3933 = vsub.s32 %v3930, %v3932
    %v3934 = vrot.slane %v3924, %v3933
    %v3936 = vunpack.c.l.s4 842150450
    %v3937 = vunpack.c.0.s8 %v3936
    %v3938 = vlaneseq
    %v3939 = vshrl.u32 %v3938, 7
    %v3940 = vsub.s32 %v3937, %v3939
    %v3941 = vrot.slane %v3924, %v3940
    %v3943 = vunpack.c.l.s4 1414812756
    %v3944 = vunpack.c.0.s8 %v3943
    %v3945 = vlaneseq
    %v3946 = vshrl.u32 %v3945, 7
    %v3947 = vsub.s32 %v3944, %v3946
    %v3948 = vrot.slane %v3924, %v3947
    %v3950 = vunpack.c.l.s4 1987475062
    %v3951 = vunpack.c.0.s8 %v3950
    %v3952 = vlaneseq
    %v3953 = vshrl.u32 %v3952, 7
    %v3954 = vsub.s32 %v3951, %v3953
    %v3955 = vrot.slane %v3924, %v3954
    %v3957 = vunpack.c.l.s4 269488144
    %v3958 = vunpack.c.0.s8 %v3957
    %v3959 = vlaneseq
    %v3960 = vshrl.u32 %v3959, 7
    %v3961 = vsub.s32 %v3958, %v3960
    %v3962 = vrot.slane %v3925, %v3961
    %v3964 = vunpack.c.l.s4 842150450
    %v3965 = vunpack.c.0.s8 %v3964
    %v3966 = vlaneseq
    %v3967 = vshrl.u32 %v3966, 7
    %v3968 = vsub.s32 %v3965, %v3967
    %v3969 = vrot.slane %v3925, %v3968
    %v3971 = vunpack.c.l.s4 1414812756
    %v3972 = vunpack.c.0.s8 %v3971
    %v3973 = vlaneseq
    %v3974 = vshrl.u32 %v3973, 7
    %v3975 = vsub.s32 %v3972, %v3974
    %v3976 = vrot.slane %v3925, %v3975
    %v3978 = vunpack.c.l.s4 1987475062
    %v3979 = vunpack.c.0.s8 %v3978
    %v3980 = vlaneseq
    %v3981 = vshrl.u32 %v3980, 7
    %v3982 = vsub.s32 %v3979, %v3981
    %v3983 = vrot.slane %v3925, %v3982
    %v3992 = vsub.f32 %v3866, %v3934
    %v3993 = vsub.f32 %v3867, %v3941
    %v3994 = vsub.f32 %v3868, %v3948
    %v3995 = vsub.f32 %v3869, %v3955
    %v3996 = vsub.f32 %v3870, %v3962
    %v3997 = vsub.f32 %v3871, %v3969
    %v3998 = vsub.f32 %v3872, %v3976
    %v3999 = vsub.f32 %v3873, %v3983
    %v4000 = vmul.f32 %v3992, %v3992
    %v4001 = vmul.f32 %v3993, %v3993
    %v4002 = vmul.f32 %v3994, %v3994
    %v4003 = vmul.f32 %v3995, %v3995
    %v4004 = vmul.f32 %v3996, %v3996
    %v4005 = vmul.f32 %v3997, %v3997
    %v4006 = vmul.f32 %v3998, %v3998
    %v4007 = vmul.f32 %v3999, %v3999
    %v4016 = vcombine.low %v4000, %v4001
    %v4017 = vcombine.low %v4002, %v4003
    %v4019 = vunpack.c.l.s4 1983009808
    %v4020 = vunpack.c.0.s8 %v4019
    %v4021 = vlaneseq
    %v4022 = vshrl.u32 %v4021, 7
    %v4023 = vsub.s32 %v4020, %v4022
    %v4024 = vrot.slane %v4016, %v4023
    %v4026 = vunpack.c.l.s4 1983009808
    %v4027 = vunpack.c.0.s8 %v4026
    %v4028 = vlaneseq
    %v4029 = vshrl.u32 %v4028, 7
    %v4030 = vsub.s32 %v4027, %v4029
    %v4031 = vrot.slane %v4017, %v4030
    %v4032 = vcombine.low %v4024, %v4031
    %v4033 = vcombine.low %v4004, %v4005
    %v4034 = vcombine.low %v4006, %v4007
    %v4036 = vunpack.c.l.s4 1983009808
    %v4037 = vunpack.c.0.s8 %v4036
    %v4038 = vlaneseq
    %v4039 = vshrl.u32 %v4038, 7
    %v4040 = vsub.s32 %v4037, %v4039
    %v4041 = vrot.slane %v4033, %v4040
    %v4043 = vunpack.c.l.s4 1983009808
    %v4044 = vunpack.c.0.s8 %v4043
    %v4045 = vlaneseq
    %v4046 = vshrl.u32 %v4045, 7
    %v4047 = vsub.s32 %v4044, %v4046
    %v4048 = vrot.slane %v4034, %v4047
    %v4049 = vcombine.low %v4041, %v4048
    %v4052 = vsel %vm242, %v4032, 0.0
    %4053 = vadd.xlane.f32.xlu0 %v4052
    %v4054 = vpop.xlane.xlu0 %4053
    %v4055 = vsel %vm242, %v4049, 0.0
    %4056 = vadd.xlane.f32.xlu0 %v4055
    %v4057 = vpop.xlane.xlu0 %4056
    %v4058 = vmul.f32 %v4054, %v1356
    %v4059 = vmul.f32 %v4057, %v1356
    %v4060 = vadd.f32 %v4058, 1e-05
    %v4061 = vadd.f32 %v4059, 1e-05
    %v4062 = vrsqrt.pop %v4060
    %v4063 = vrsqrt.pop %v4061
    %v4067 = vunpack.c.l.s4 269488144
    %v4068 = vunpack.c.0.s8 %v4067
    %v4069 = vlaneseq
    %v4070 = vshrl.u32 %v4069, 7
    %v4071 = vsub.s32 %v4068, %v4070
    %v4072 = vrot.slane %v4062, %v4071
    %v4074 = vunpack.c.l.s4 842150450
    %v4075 = vunpack.c.0.s8 %v4074
    %v4076 = vlaneseq
    %v4077 = vshrl.u32 %v4076, 7
    %v4078 = vsub.s32 %v4075, %v4077
    %v4079 = vrot.slane %v4062, %v4078
    %v4081 = vunpack.c.l.s4 1414812756
    %v4082 = vunpack.c.0.s8 %v4081
    %v4083 = vlaneseq
    %v4084 = vshrl.u32 %v4083, 7
    %v4085 = vsub.s32 %v4082, %v4084
    %v4086 = vrot.slane %v4062, %v4085
    %v4088 = vunpack.c.l.s4 1987475062
    %v4089 = vunpack.c.0.s8 %v4088
    %v4090 = vlaneseq
    %v4091 = vshrl.u32 %v4090, 7
    %v4092 = vsub.s32 %v4089, %v4091
    %v4093 = vrot.slane %v4062, %v4092
    %v4095 = vunpack.c.l.s4 269488144
    %v4096 = vunpack.c.0.s8 %v4095
    %v4097 = vlaneseq
    %v4098 = vshrl.u32 %v4097, 7
    %v4099 = vsub.s32 %v4096, %v4098
    %v4100 = vrot.slane %v4063, %v4099
    %v4102 = vunpack.c.l.s4 842150450
    %v4103 = vunpack.c.0.s8 %v4102
    %v4104 = vlaneseq
    %v4105 = vshrl.u32 %v4104, 7
    %v4106 = vsub.s32 %v4103, %v4105
    %v4107 = vrot.slane %v4063, %v4106
    %v4109 = vunpack.c.l.s4 1414812756
    %v4110 = vunpack.c.0.s8 %v4109
    %v4111 = vlaneseq
    %v4112 = vshrl.u32 %v4111, 7
    %v4113 = vsub.s32 %v4110, %v4112
    %v4114 = vrot.slane %v4063, %v4113
    %v4116 = vunpack.c.l.s4 1987475062
    %v4117 = vunpack.c.0.s8 %v4116
    %v4118 = vlaneseq
    %v4119 = vshrl.u32 %v4118, 7
    %v4120 = vsub.s32 %v4117, %v4119
    %v4121 = vrot.slane %v4063, %v4120
    %v4130 = vmul.f32 %v3992, %v4072
    %v4131 = vmul.f32 %v3993, %v4079
    %v4132 = vmul.f32 %v3994, %v4086
    %v4133 = vmul.f32 %v3995, %v4093
    %v4134 = vmul.f32 %v3996, %v4100
    %v4135 = vmul.f32 %v3997, %v4107
    %v4136 = vmul.f32 %v3998, %v4114
    %v4137 = vmul.f32 %v3999, %v4121
    %v4138 = vmul.f32 %v4130, %v2180
    %v4139 = vmul.f32 %v4131, %v2188
    %v4140 = vmul.f32 %v4132, %v2187
    %v4141 = vmul.f32 %v4133, %v2189
    %v4142 = vmul.f32 %v4134, %v2180
    %v4143 = vmul.f32 %v4135, %v2188
    %v4144 = vmul.f32 %v4136, %v2187
    %v4145 = vmul.f32 %v4137, %v2189
    %v4146 = vadd.f32 %v4138, %v2214
    %v4147 = vadd.f32 %v4139, %v2222
    %v4148 = vadd.f32 %v4140, %v2221
    %v4149 = vadd.f32 %v4141, %v2223
    %v4150 = vadd.f32 %v4142, %v2214
    %v4151 = vadd.f32 %v4143, %v2222
    %v4152 = vadd.f32 %v4144, %v2221
    %v4153 = vadd.f32 %v4145, %v2223
    %v4162 = vcombine.low %v4146, %v4147
    %v4163 = vcombine.low %v4148, %v4149
    %v4165 = vunpack.c.l.s4 1983009808
    %v4166 = vunpack.c.0.s8 %v4165
    %v4167 = vlaneseq
    %v4168 = vshrl.u32 %v4167, 7
    %v4169 = vsub.s32 %v4166, %v4168
    %v4170 = vrot.slane %v4162, %v4169
    %v4172 = vunpack.c.l.s4 1983009808
    %v4173 = vunpack.c.0.s8 %v4172
    %v4174 = vlaneseq
    %v4175 = vshrl.u32 %v4174, 7
    %v4176 = vsub.s32 %v4173, %v4175
    %v4177 = vrot.slane %v4163, %v4176
    %v4178 = vcombine.low %v4170, %v4177
    %v4179 = vcombine.low %v4150, %v4151
    %v4180 = vcombine.low %v4152, %v4153
    %v4182 = vunpack.c.l.s4 1983009808
    %v4183 = vunpack.c.0.s8 %v4182
    %v4184 = vlaneseq
    %v4185 = vshrl.u32 %v4184, 7
    %v4186 = vsub.s32 %v4183, %v4185
    %v4187 = vrot.slane %v4179, %v4186
    %v4189 = vunpack.c.l.s4 1983009808
    %v4190 = vunpack.c.0.s8 %v4189
    %v4191 = vlaneseq
    %v4192 = vshrl.u32 %v4191, 7
    %v4193 = vsub.s32 %v4190, %v4192
    %v4194 = vrot.slane %v4180, %v4193
    %v4195 = vcombine.low %v4187, %v4194
    %4198 = vst.msk [vmem:[#allocation8] sm:$0xff] %vm242, %v4178
    %4199 = vst.msk [vmem:[#allocation8 + $0x8] sm:$0xff] %vm242, %v4195
    // Predicated region
    $region38: #{tpu_custom_call.1} parent=1 // pred_check
      _
    $region39: #{tpu_custom_call.1} parent=1 // pred_check_branch
      %4201 = sbr.rel (0) target = $region41
    $region40: #{tpu_custom_call.1} parent=1 // pred_region
      %s4203 = ssub.s32 256, 256
      %4204 = vsyncadd [#allocation4], %s4203
      %s4205 = sshll.u32 [#allocation7], 4
      %s4206 = int_to_ptr.vmem [resolvable:$true] %s4205
      %4211 = dma.vmem_to_hbm [thread:$0]  %s4206, 256, %s7, [#allocation4], 128, 128, 8
    $region41: #{tpu_custom_call.1} parent=1 // pred_fallthru
      _
    // Predicated region
    $region42: #{tpu_custom_call.1} parent=1 // pred_check
      _
    $region43: #{tpu_custom_call.1} parent=1 // pred_check_branch
      %4213 = sbr.rel (0) target = $region45
    $region44: #{tpu_custom_call.1} parent=1 // pred_region
      %s4215 = ssub.s32 256, 256
      %4216 = vsyncadd [#allocation9], %s4215
      %s4217 = sshll.u32 [#allocation8], 4
      %s4218 = int_to_ptr.vmem [resolvable:$true] %s4217
      %4223 = dma.vmem_to_hbm [thread:$0]  %s4218, 256, %s8, [#allocation9], 128, 128, 8
    $region45: #{tpu_custom_call.1} parent=1 // pred_fallthru
      _
    // Predicated region
    $region46: #{tpu_custom_call.1} parent=1 // pred_check
      _
    $region47: #{tpu_custom_call.1} parent=1 // pred_check_branch
      %4225 = sbr.rel (0) target = $region49
    $region48: #{tpu_custom_call.1} parent=1 // pred_region
      %4226 = dma.done [#allocation4], 256
    $region49: #{tpu_custom_call.1} parent=1 // pred_fallthru
      _
    // Predicated region
    $region50: #{tpu_custom_call.1} parent=1 // pred_check
      _
    $region51: #{tpu_custom_call.1} parent=1 // pred_check_branch
      %4228 = sbr.rel (0) target = $region53
    $region52: #{tpu_custom_call.1} parent=1 // pred_region
      %4229 = dma.done [#allocation9], 256
    $region53: #{tpu_custom_call.1} parent=1 // pred_fallthru
      _
    %4230 = vsyncpa [#allocation3], 1
    %4231 = vsyncpa [#allocation6], 1
    %4232 = vsyncpa [#allocation4], 1
    %4233 = vsyncpa [#allocation9], 1

</llo_original>
